<compile_context>
chip_gen: v5e
topology: v5e:2x2
jax: 0.10.0
libtpu: 0.0.40
codegen_flags: <defaults>
</compile_context>

<pallas_src>
import functools

import jax
import jax.numpy as jnp
from jax.experimental import pallas as pl
from jax.experimental.pallas import tpu as pltpu


def _round_up(v, m):
    return ((v + m - 1) // m) * m


def _sign(v):
    # torch.sign semantics (sign(0) == 0), explicit selects for robust lowering.
    return jnp.where(v > 0, 1.0, jnp.where(v < 0, -1.0, 0.0))


def _default_compute_dtype(group, cpg, K):
    """bf16 on chips with bf16 VALUs (v6e/v7x), f32 elsewhere (v5e has none).

    bf16 accumulation is exact here: activations/weights are in {-1,0,+1} and
    |partial sums| <= cpg*K*K (= 36) < 256.  The group%2 guard keeps the bf16
    scratch row-slice offsets pack-aligned (sublane pairs)."""
    if cpg * K * K > 256 or group % 2 != 0:
        return jnp.float32
    try:
        kind = jax.devices()[0].device_kind.lower()
    except Exception:
        return jnp.float32
    if ("v6" in kind) or ("v7" in kind):
        return jnp.bfloat16
    return jnp.float32


def _bdgc_kernel(scale_ref, shift_ref, w_ref, mask_ref, x_ref, out_ref, xp_ref, *,
                 K, dil, pad, W, HW, C, cpg, doff, loff, cdt, row_step,
                 kw_needs_mask, inv_perm):
    """One grid step = one batch element, full channel dim, H*W on lanes.

    scale/shift: (C, 1)   f32 VMEM   folded BatchNorm scale / shift
    w_ref:       (C, NT)  cdt VMEM   per-(delta,kh,kw) signed weight columns,
                                     rows already in channel-shuffled order
    mask_ref:    (K, HW)  cdt VMEM   per-kw width-boundary masks
    x_ref:       (C, HW)  f32 VMEM   input block (channels x flat spatial)
    out_ref:     (C, HW)  f32 VMEM   output block (shuffled conv + residual)
    xp_ref:      (CROWS, LEXT) cdt   scratch: height-padded, channel-padded,
                                     channel-shuffled binarized activations
    """
    # 1) Zero the whole (tiny, tile-aligned) scratch.  It persists across grid
    #    steps, so this runs EVERY step and is not gated on program_id
    #    (megacore-safe on v7x).
    xp_ref[...] = jnp.zeros(xp_ref.shape, xp_ref.dtype)

    # 2) BatchNorm (pre-folded scale/shift) + sign over the whole (C, HW) slab.
    xb = _sign(x_ref[...] * scale_ref[...] + shift_ref[...]).astype(cdt)

    # 3) Write the binarized rows into the scratch in *shuffled* channel order
    #    (fuses ShuffleBlock into the conv) at a sublane/lane-aligned offset.
    lane0 = loff + pad * W
    for rho in range(C):
        c = inv_perm[rho]
        xp_ref[doff + rho:doff + rho + 1, lane0:lane0 + HW] = xb[c:c + 1, :]

    # 4) Grouped dilated conv as 63 uniformly-shifted whole-slab MACs on the
    #    VPU (the 4-wide contraction is too skinny for the MXU).  Contributions
    #    are bucketed per kw so the width-boundary mask is applied once per kw,
    #    not per term.  Each shifted slice is consumed immediately, keeping the
    #    live-vreg count low.
    w_all = w_ref[...]
    accs = [jnp.zeros((C, HW), cdt) for _ in range(K)]
    for di in range(2 * cpg - 1):
        delta = di - (cpg - 1)
        r0 = doff + delta * row_step
        for kh in range(K):
            c_row = loff + kh * dil * W - pad
            for kw in range(K):
                t = (di * K + kh) * K + kw
                c0 = c_row + kw * dil
                xs = xp_ref[r0:r0 + C, c0:c0 + HW]
                accs[kw] = accs[kw] + w_all[:, t:t + 1] * xs

    # 5) Per-kw masks (only taps that can read across a row edge), one upcast,
    #    one fused residual add, one dense unmasked (C, HW) store.
    conv = None
    for kw in range(K):
        part = accs[kw] * mask_ref[kw:kw + 1, :] if kw_needs_mask[kw] else accs[kw]
        conv = part if conv is None else conv + part
    out_ref[...] = conv.astype(jnp.float32) + x_ref[...]


@functools.partial(
    jax.jit,
    static_argnames=("kernel_size", "stride", "padding", "dilation", "eps",
                     "compute_dtype"))
def binary_dil_group_conv(x, gamma, beta, weight, *, kernel_size=3, stride=1,
                          padding=2, dilation=2, eps=1e-5, compute_dtype=None):
    N, C, H, W = x.shape
    cpg = 4
    assert C % cpg == 0
    group = C // cpg
    K = kernel_size
    assert weight.shape == (C, cpg, K, K)
    # TODO(synk): stride != 1 shortcut branches (options A/B/C/D) not implemented.
    assert stride == 1, "only stride=1 (identity shortcut) supported"
    h_out = (H + 2 * padding - dilation * (K - 1) - 1) // stride + 1
    w_out = (W + 2 * padding - dilation * (K - 1) - 1) // stride + 1
    assert h_out == H and w_out == W, "conv must be shape-preserving for the residual"

    HW = H * W
    x = x.astype(jnp.float32)
    cdt = compute_dtype if compute_dtype is not None else _default_compute_dtype(group, cpg, K)

    # ---- BatchNorm2d training-mode batch statistics folded into per-channel
    #      scale/shift: sum and sum-of-squares in one fused pass over x.
    cnt = N * H * W
    s1 = jnp.sum(x, axis=(0, 2, 3))
    s2 = jnp.sum(x * x, axis=(0, 2, 3))
    mean = s1 / cnt
    var = jnp.maximum(s2 / cnt - mean * mean, 0.0)
    scale = gamma.astype(jnp.float32) * jax.lax.rsqrt(var + eps)
    shift = beta.astype(jnp.float32) - mean * scale
    scale2 = scale.reshape(C, 1)
    shift2 = shift.reshape(C, 1)

    # ---- per-(delta, kh, kw) signed weight columns, rows in channel-SHUFFLED
    #      output order (the shuffle is folded into the kernel's row layout).
    nd = 2 * cpg - 1
    s_idx = jnp.arange(C)
    j_idx = s_idx // group              # within-group output index of row s
    g_idx = s_idx % group               # conv group of row s
    co = g_idx * cpg + j_idx            # conv output channel landing at row s
    deltas = jnp.arange(-(cpg - 1), cpg)
    d = j_idx[:, None] + deltas[None, :]                       # (C, nd)
    dvalid = (d >= 0) & (d < cpg)
    dcl = jnp.clip(d, 0, cpg - 1)
    wsign = jnp.sign(weight.astype(jnp.float32))               # (C, cpg, K, K)
    wterm = wsign[co[:, None], dcl, :, :]                      # (C, nd, K, K)
    wterm = jnp.where(dvalid[:, :, None, None], wterm, 0.0)
    wcols = wterm.reshape(C, nd * K * K).astype(cdt)

    # ---- per-kw masks for the width boundary (zero padding along W).
    w_of_lane = jnp.arange(HW) % W
    off_ws = [kw * dilation - padding for kw in range(K)]
    masks = jnp.stack(
        [(w_of_lane >= max(0, -o)) & (w_of_lane < W - max(0, o)) for o in off_ws]
    ).astype(cdt)                                              # (K, HW)
    kw_needs_mask = tuple(o != 0 for o in off_ws)

    # ---- scratch geometry, rounded to (8, 128) hardware tiles.
    doff = _round_up((cpg - 1) * group, 8)              # channel padding above
    crows = _round_up(doff + C + (cpg - 1) * group, 8)
    loff = (-(padding * W)) % 128                       # data starts lane-aligned
    if loff < padding:
        loff += 128
    Hp = H + 2 * padding
    lext = _round_up(loff + Hp * W + padding, 128)

    # shuffled scratch row rho holds input channel inv_perm[rho]
    inv_perm = tuple((r % group) * cpg + (r // group) for r in range(C))

    kern = functools.partial(
        _bdgc_kernel, K=K, dil=dilation, pad=padding, W=W, HW=HW, C=C, cpg=cpg,
        doff=doff, loff=loff, cdt=cdt, row_step=group,
        kw_needs_mask=kw_needs_mask, inv_perm=inv_perm)

    cbytes = jnp.dtype(cdt).itemsize
    # Double-buffered pipeline blocks + persistent scratch; set the VMEM limit
    # from the computed footprint (with headroom) instead of a blanket 32 MiB.
    vmem_bytes = (2 * 2 * C * HW * 4                    # x + out blocks (x2 buffers)
                  + 2 * 2 * C * 4                       # scale + shift
                  + 2 * C * nd * K * K * cbytes         # weight columns
                  + 2 * K * HW * cbytes                 # masks
                  + crows * lext * cbytes)              # scratch
    vmem_limit = min(128 * 1024 * 1024, max(4 * vmem_bytes, 2 * 1024 * 1024))

    flops = 2 * N * C * HW * cpg * K * K + 10 * N * C * HW
    bytes_accessed = (2 * N * C * HW * 4 + 2 * C * 4
                      + (C * nd * K * K + K * HW) * cbytes)

    out3 = pl.pallas_call(
        kern,
        grid=(N,),
        out_shape=jax.ShapeDtypeStruct((N, C, HW), jnp.float32),
        in_specs=[
            pl.BlockSpec((C, 1), lambda n: (0, 0)),             # scale
            pl.BlockSpec((C, 1), lambda n: (0, 0)),             # shift
            pl.BlockSpec((C, nd * K * K), lambda n: (0, 0)),    # weight columns
            pl.BlockSpec((K, HW), lambda n: (0, 0)),            # width masks
            pl.BlockSpec((None, C, HW), lambda n: (n, 0, 0)),   # x block
        ],
        out_specs=pl.BlockSpec((None, C, HW), lambda n: (n, 0, 0)),
        scratch_shapes=[pltpu.VMEM((crows, lext), cdt)],
        compiler_params=pltpu.CompilerParams(
            dimension_semantics=("parallel",),
            vmem_limit_bytes=int(vmem_limit)),
        cost_estimate=pl.CostEstimate(flops=int(flops), transcendentals=0,
                                      bytes_accessed=int(bytes_accessed)),
    )(scale2, shift2, wcols, masks, x.reshape(N, C, HW))

    # (N, C, H*W) -> (N, C, H, W): free reshape; channel shuffle + residual are
    # already applied inside the kernel.
    return out3.reshape(N, C, H, W)


def _reference(x, gamma, beta, weight, *, kernel_size, stride, padding, dilation):
    """Pure-JAX reference of the PyTorch forward (for validation)."""
    N, C, H, W = x.shape
    group = C // 4
    mean = x.mean(axis=(0, 2, 3), keepdims=True)
    var = ((x - mean) ** 2).mean(axis=(0, 2, 3), keepdims=True)
    xn = (x - mean) / jnp.sqrt(var + 1e-5) * gamma.reshape(1, C, 1, 1) + beta.reshape(1, C, 1, 1)
    xb = jnp.sign(xn)
    wb = jnp.sign(weight)
    conv = jax.lax.conv_general_dilated(
        xb, wb, window_strides=(stride, stride),
        padding=[(padding, padding), (padding, padding)],
        rhs_dilation=(dilation, dilation),
        dimension_numbers=("NCHW", "OIHW", "NCHW"),
        feature_group_count=group)
    shuffled = conv.reshape(N, group, C // group, H, W).transpose(0, 2, 1, 3, 4).reshape(N, C, H, W)
    return shuffled + x


if __name__ == "__main__":
    # Small shapes consistent with the module: C_in == C_out, C_in % 4 == 0.
    N, C, H, W = 2, 8, 16, 16
    K, stride, padding, dilation = 3, 1, 2, 2

    key = jax.random.PRNGKey(0)
    kx, kw_, kg, kb = jax.random.split(key, 4)
    x = jax.random.normal(kx, (N, C, H, W), dtype=jnp.float32)
    weight = jax.random.normal(kw_, (C, 4, K, K), dtype=jnp.float32)
    gamma = jax.random.uniform(kg, (C,), minval=0.5, maxval=1.5, dtype=jnp.float32)
    beta = 0.1 * jax.random.normal(kb, (C,), dtype=jnp.float32)

    def run(cdt):
        o = binary_dil_group_conv(x, gamma, beta, weight, kernel_size=K,
                                  stride=stride, padding=padding,
                                  dilation=dilation, compute_dtype=cdt)
        return jax.block_until_ready(o)

    try:
        out = run(None)            # auto: bf16 compute on v6e/v7x, f32 elsewhere
    except Exception:
        out = run(jnp.float32)     # conservative fallback keeps the run clean

    ref = _reference(x, gamma, beta, weight, kernel_size=K, stride=stride,
                     padding=padding, dilation=dilation)
    assert out.shape == (N, C, H, W)
    err = float(jnp.max(jnp.abs(out - ref)))
    assert jnp.allclose(out, ref, atol=1e-4, rtol=1e-4), err
    print("KERNEL_OK")
</pallas_src>

<mosaic_0001>
module attributes {stable_mosaic.version = 11 : i64} {
  func.func @_bdgc_kernel(%arg0: i32, %arg1: memref<8x1xf32, #tpu.memory_space<vmem>>, %arg2: memref<8x1xf32, #tpu.memory_space<vmem>>, %arg3: memref<8x63xf32, #tpu.memory_space<vmem>>, %arg4: memref<3x256xf32, #tpu.memory_space<vmem>>, %arg5: memref<1x8x256xf32, #tpu.memory_space<vmem>>, %arg6: memref<1x8x256xf32, #tpu.memory_space<vmem>>, %arg7: memref<24x512xf32, #tpu.memory_space<vmem>>) attributes {dimension_semantics = [#tpu.dimension_semantics<parallel>], iteration_bounds = array<i64: 2>, scalar_prefetch = 0 : i64, scratch_operands = 1 : i64, tpu.core_type = #tpu.core_type<tc>, window_params = [{pipeline_mode = #tpu.pipeline_mode<synchronous>, transform_indices = @transform_0, window_bounds = array<i64: 8, 1>}, {pipeline_mode = #tpu.pipeline_mode<synchronous>, transform_indices = @transform_1, window_bounds = array<i64: 8, 1>}, {pipeline_mode = #tpu.pipeline_mode<synchronous>, transform_indices = @transform_2, window_bounds = array<i64: 8, 63>}, {pipeline_mode = #tpu.pipeline_mode<synchronous>, transform_indices = @transform_3, window_bounds = array<i64: 3, 256>}, {transform_indices = @transform_4, window_bounds = array<i64: 1, 8, 256>}, {transform_indices = @transform_5, window_bounds = array<i64: 1, 8, 256>}]} {
    %cst = arith.constant 0.000000e+00 : f32
    %0 = vector.broadcast %cst : f32 to vector<24x512xf32>
    %c0 = arith.constant 0 : index
    %c0_0 = arith.constant 0 : index
    %1 = vector.load %arg7[%c0, %c0_0] : memref<24x512xf32, #tpu.memory_space<vmem>>, vector<24x512xf32>
    tpu.vector_store %arg7[%c0, %c0_0], %0 {strides = array<i32>} : memref<24x512xf32, #tpu.memory_space<vmem>>, vector<24x512xf32>,
    %c0_1 = arith.constant 0 : index
    %c0_2 = arith.constant 0 : index
    %c0_3 = arith.constant 0 : index
    %2 = vector.load %arg5[%c0_1, %c0_2, %c0_3] : memref<1x8x256xf32, #tpu.memory_space<vmem>>, vector<1x8x256xf32>
    %3 = vector.shape_cast %2 : vector<1x8x256xf32> to vector<8x256xf32>
    %c0_4 = arith.constant 0 : index
    %c0_5 = arith.constant 0 : index
    %4 = vector.load %arg1[%c0_4, %c0_5] : memref<8x1xf32, #tpu.memory_space<vmem>>, vector<8x1xf32>
    %5 = vector.broadcast %4 : vector<8x1xf32> to vector<8x256xf32>
    %6 = arith.mulf %3, %5 : vector<8x256xf32>
    %c0_6 = arith.constant 0 : index
    %c0_7 = arith.constant 0 : index
    %7 = vector.load %arg2[%c0_6, %c0_7] : memref<8x1xf32, #tpu.memory_space<vmem>>, vector<8x1xf32>
    %8 = vector.broadcast %7 : vector<8x1xf32> to vector<8x256xf32>
    %9 = arith.addf %6, %8 : vector<8x256xf32>
    %cst_8 = arith.constant 0.000000e+00 : f32
    %10 = vector.broadcast %cst_8 : f32 to vector<8x256xf32>
    %11 = arith.cmpf ogt, %9, %10 : vector<8x256xf32>
    %cst_9 = arith.constant 0.000000e+00 : f32
    %12 = vector.broadcast %cst_9 : f32 to vector<8x256xf32>
    %13 = arith.cmpf olt, %9, %12 : vector<8x256xf32>
    %cst_10 = arith.constant -1.000000e+00 : f32
    %cst_11 = arith.constant 0.000000e+00 : f32
    %14 = vector.broadcast %cst_10 : f32 to vector<8x256xf32>
    %15 = vector.broadcast %cst_11 : f32 to vector<8x256xf32>
    %16 = arith.select %13, %14, %15 : vector<8x256xi1>, vector<8x256xf32>
    %cst_12 = arith.constant 1.000000e+00 : f32
    %17 = vector.broadcast %cst_12 : f32 to vector<8x256xf32>
    %18 = arith.select %11, %17, %16 : vector<8x256xi1>, vector<8x256xf32>
    %19 = vector.extract_strided_slice %18 {offsets = [0, 0], sizes = [1, 256], strides = [1, 1]} : vector<8x256xf32> to vector<1x256xf32>
    %c8 = arith.constant 8 : index
    %c128 = arith.constant 128 : index
    %20 = vector.load %arg7[%c8, %c128] : memref<24x512xf32, #tpu.memory_space<vmem>>, vector<1x256xf32>
    tpu.vector_store %arg7[%c8, %c128], %19 {strides = array<i32>} : memref<24x512xf32, #tpu.memory_space<vmem>>, vector<1x256xf32>,
    %21 = vector.extract_strided_slice %18 {offsets = [4, 0], sizes = [1, 256], strides = [1, 1]} : vector<8x256xf32> to vector<1x256xf32>
    %c9 = arith.constant 9 : index
    %c128_13 = arith.constant 128 : index
    %22 = vector.load %arg7[%c9, %c128_13] : memref<24x512xf32, #tpu.memory_space<vmem>>, vector<1x256xf32>
    tpu.vector_store %arg7[%c9, %c128_13], %21 {strides = array<i32>} : memref<24x512xf32, #tpu.memory_space<vmem>>, vector<1x256xf32>,
    %23 = vector.extract_strided_slice %18 {offsets = [1, 0], sizes = [1, 256], strides = [1, 1]} : vector<8x256xf32> to vector<1x256xf32>
    %c10 = arith.constant 10 : index
    %c128_14 = arith.constant 128 : index
    %24 = vector.load %arg7[%c10, %c128_14] : memref<24x512xf32, #tpu.memory_space<vmem>>, vector<1x256xf32>
    tpu.vector_store %arg7[%c10, %c128_14], %23 {strides = array<i32>} : memref<24x512xf32, #tpu.memory_space<vmem>>, vector<1x256xf32>,
    %25 = vector.extract_strided_slice %18 {offsets = [5, 0], sizes = [1, 256], strides = [1, 1]} : vector<8x256xf32> to vector<1x256xf32>
    %c11 = arith.constant 11 : index
    %c128_15 = arith.constant 128 : index
    %26 = vector.load %arg7[%c11, %c128_15] : memref<24x512xf32, #tpu.memory_space<vmem>>, vector<1x256xf32>
    tpu.vector_store %arg7[%c11, %c128_15], %25 {strides = array<i32>} : memref<24x512xf32, #tpu.memory_space<vmem>>, vector<1x256xf32>,
    %27 = vector.extract_strided_slice %18 {offsets = [2, 0], sizes = [1, 256], strides = [1, 1]} : vector<8x256xf32> to vector<1x256xf32>
    %c12 = arith.constant 12 : index
    %c128_16 = arith.constant 128 : index
    %28 = vector.load %arg7[%c12, %c128_16] : memref<24x512xf32, #tpu.memory_space<vmem>>, vector<1x256xf32>
    tpu.vector_store %arg7[%c12, %c128_16], %27 {strides = array<i32>} : memref<24x512xf32, #tpu.memory_space<vmem>>, vector<1x256xf32>,
    %29 = vector.extract_strided_slice %18 {offsets = [6, 0], sizes = [1, 256], strides = [1, 1]} : vector<8x256xf32> to vector<1x256xf32>
    %c13 = arith.constant 13 : index
    %c128_17 = arith.constant 128 : index
    %30 = vector.load %arg7[%c13, %c128_17] : memref<24x512xf32, #tpu.memory_space<vmem>>, vector<1x256xf32>
    tpu.vector_store %arg7[%c13, %c128_17], %29 {strides = array<i32>} : memref<24x512xf32, #tpu.memory_space<vmem>>, vector<1x256xf32>,
    %31 = vector.extract_strided_slice %18 {offsets = [3, 0], sizes = [1, 256], strides = [1, 1]} : vector<8x256xf32> to vector<1x256xf32>
    %c14 = arith.constant 14 : index
    %c128_18 = arith.constant 128 : index
    %32 = vector.load %arg7[%c14, %c128_18] : memref<24x512xf32, #tpu.memory_space<vmem>>, vector<1x256xf32>
    tpu.vector_store %arg7[%c14, %c128_18], %31 {strides = array<i32>} : memref<24x512xf32, #tpu.memory_space<vmem>>, vector<1x256xf32>,
    %33 = vector.extract_strided_slice %18 {offsets = [7, 0], sizes = [1, 256], strides = [1, 1]} : vector<8x256xf32> to vector<1x256xf32>
    %c15 = arith.constant 15 : index
    %c128_19 = arith.constant 128 : index
    %34 = vector.load %arg7[%c15, %c128_19] : memref<24x512xf32, #tpu.memory_space<vmem>>, vector<1x256xf32>
    tpu.vector_store %arg7[%c15, %c128_19], %33 {strides = array<i32>} : memref<24x512xf32, #tpu.memory_space<vmem>>, vector<1x256xf32>,
    %c0_20 = arith.constant 0 : index
    %c0_21 = arith.constant 0 : index
    %35 = vector.load %arg3[%c0_20, %c0_21] : memref<8x63xf32, #tpu.memory_space<vmem>>, vector<8x63xf32>
    %cst_22 = arith.constant 0.000000e+00 : f32
    %36 = vector.broadcast %cst_22 : f32 to vector<8x256xf32>
    %cst_23 = arith.constant 0.000000e+00 : f32
    %37 = vector.broadcast %cst_23 : f32 to vector<8x256xf32>
    %cst_24 = arith.constant 0.000000e+00 : f32
    %38 = vector.broadcast %cst_24 : f32 to vector<8x256xf32>
    %c2 = arith.constant 2 : index
    %c94 = arith.constant 94 : index
    %39 = vector.load %arg7[%c2, %c94] : memref<24x512xf32, #tpu.memory_space<vmem>>, vector<8x256xf32>
    %40 = vector.extract_strided_slice %35 {offsets = [0, 0], sizes = [8, 1], strides = [1, 1]} : vector<8x63xf32> to vector<8x1xf32>
    %41 = vector.broadcast %40 : vector<8x1xf32> to vector<8x256xf32>
    %42 = arith.mulf %41, %39 : vector<8x256xf32>
    %43 = arith.addf %36, %42 : vector<8x256xf32>
    %c2_25 = arith.constant 2 : index
    %c96 = arith.constant 96 : index
    %44 = vector.load %arg7[%c2_25, %c96] : memref<24x512xf32, #tpu.memory_space<vmem>>, vector<8x256xf32>
    %45 = vector.extract_strided_slice %35 {offsets = [0, 1], sizes = [8, 1], strides = [1, 1]} : vector<8x63xf32> to vector<8x1xf32>
    %46 = vector.broadcast %45 : vector<8x1xf32> to vector<8x256xf32>
    %47 = arith.mulf %46, %44 : vector<8x256xf32>
    %48 = arith.addf %37, %47 : vector<8x256xf32>
    %c2_26 = arith.constant 2 : index
    %c98 = arith.constant 98 : index
    %49 = vector.load %arg7[%c2_26, %c98] : memref<24x512xf32, #tpu.memory_space<vmem>>, vector<8x256xf32>
    %50 = vector.extract_strided_slice %35 {offsets = [0, 2], sizes = [8, 1], strides = [1, 1]} : vector<8x63xf32> to vector<8x1xf32>
    %51 = vector.broadcast %50 : vector<8x1xf32> to vector<8x256xf32>
    %52 = arith.mulf %51, %49 : vector<8x256xf32>
    %53 = arith.addf %38, %52 : vector<8x256xf32>
    %c2_27 = arith.constant 2 : index
    %c126 = arith.constant 126 : index
    %54 = vector.load %arg7[%c2_27, %c126] : memref<24x512xf32, #tpu.memory_space<vmem>>, vector<8x256xf32>
    %55 = vector.extract_strided_slice %35 {offsets = [0, 3], sizes = [8, 1], strides = [1, 1]} : vector<8x63xf32> to vector<8x1xf32>
    %56 = vector.broadcast %55 : vector<8x1xf32> to vector<8x256xf32>
    %57 = arith.mulf %56, %54 : vector<8x256xf32>
    %58 = arith.addf %43, %57 : vector<8x256xf32>
    %c2_28 = arith.constant 2 : index
    %c128_29 = arith.constant 128 : index
    %59 = vector.load %arg7[%c2_28, %c128_29] : memref<24x512xf32, #tpu.memory_space<vmem>>, vector<8x256xf32>
    %60 = vector.extract_strided_slice %35 {offsets = [0, 4], sizes = [8, 1], strides = [1, 1]} : vector<8x63xf32> to vector<8x1xf32>
    %61 = vector.broadcast %60 : vector<8x1xf32> to vector<8x256xf32>
    %62 = arith.mulf %61, %59 : vector<8x256xf32>
    %63 = arith.addf %48, %62 : vector<8x256xf32>
    %c2_30 = arith.constant 2 : index
    %c130 = arith.constant 130 : index
    %64 = vector.load %arg7[%c2_30, %c130] : memref<24x512xf32, #tpu.memory_space<vmem>>, vector<8x256xf32>
    %65 = vector.extract_strided_slice %35 {offsets = [0, 5], sizes = [8, 1], strides = [1, 1]} : vector<8x63xf32> to vector<8x1xf32>
    %66 = vector.broadcast %65 : vector<8x1xf32> to vector<8x256xf32>
    %67 = arith.mulf %66, %64 : vector<8x256xf32>
    %68 = arith.addf %53, %67 : vector<8x256xf32>
    %c2_31 = arith.constant 2 : index
    %c158 = arith.constant 158 : index
    %69 = vector.load %arg7[%c2_31, %c158] : memref<24x512xf32, #tpu.memory_space<vmem>>, vector<8x256xf32>
    %70 = vector.extract_strided_slice %35 {offsets = [0, 6], sizes = [8, 1], strides = [1, 1]} : vector<8x63xf32> to vector<8x1xf32>
    %71 = vector.broadcast %70 : vector<8x1xf32> to vector<8x256xf32>
    %72 = arith.mulf %71, %69 : vector<8x256xf32>
    %73 = arith.addf %58, %72 : vector<8x256xf32>
    %c2_32 = arith.constant 2 : index
    %c160 = arith.constant 160 : index
    %74 = vector.load %arg7[%c2_32, %c160] : memref<24x512xf32, #tpu.memory_space<vmem>>, vector<8x256xf32>
    %75 = vector.extract_strided_slice %35 {offsets = [0, 7], sizes = [8, 1], strides = [1, 1]} : vector<8x63xf32> to vector<8x1xf32>
    %76 = vector.broadcast %75 : vector<8x1xf32> to vector<8x256xf32>
    %77 = arith.mulf %76, %74 : vector<8x256xf32>
    %78 = arith.addf %63, %77 : vector<8x256xf32>
    %c2_33 = arith.constant 2 : index
    %c162 = arith.constant 162 : index
    %79 = vector.load %arg7[%c2_33, %c162] : memref<24x512xf32, #tpu.memory_space<vmem>>, vector<8x256xf32>
    %80 = vector.extract_strided_slice %35 {offsets = [0, 8], sizes = [8, 1], strides = [1, 1]} : vector<8x63xf32> to vector<8x1xf32>
    %81 = vector.broadcast %80 : vector<8x1xf32> to vector<8x256xf32>
    %82 = arith.mulf %81, %79 : vector<8x256xf32>
    %83 = arith.addf %68, %82 : vector<8x256xf32>
    %c4 = arith.constant 4 : index
    %c94_34 = arith.constant 94 : index
    %84 = vector.load %arg7[%c4, %c94_34] : memref<24x512xf32, #tpu.memory_space<vmem>>, vector<8x256xf32>
    %85 = vector.extract_strided_slice %35 {offsets = [0, 9], sizes = [8, 1], strides = [1, 1]} : vector<8x63xf32> to vector<8x1xf32>
    %86 = vector.broadcast %85 : vector<8x1xf32> to vector<8x256xf32>
    %87 = arith.mulf %86, %84 : vector<8x256xf32>
    %88 = arith.addf %73, %87 : vector<8x256xf32>
    %c4_35 = arith.constant 4 : index
    %c96_36 = arith.constant 96 : index
    %89 = vector.load %arg7[%c4_35, %c96_36] : memref<24x512xf32, #tpu.memory_space<vmem>>, vector<8x256xf32>
    %90 = vector.extract_strided_slice %35 {offsets = [0, 10], sizes = [8, 1], strides = [1, 1]} : vector<8x63xf32> to vector<8x1xf32>
    %91 = vector.broadcast %90 : vector<8x1xf32> to vector<8x256xf32>
    %92 = arith.mulf %91, %89 : vector<8x256xf32>
    %93 = arith.addf %78, %92 : vector<8x256xf32>
    %c4_37 = arith.constant 4 : index
    %c98_38 = arith.constant 98 : index
    %94 = vector.load %arg7[%c4_37, %c98_38] : memref<24x512xf32, #tpu.memory_space<vmem>>, vector<8x256xf32>
    %95 = vector.extract_strided_slice %35 {offsets = [0, 11], sizes = [8, 1], strides = [1, 1]} : vector<8x63xf32> to vector<8x1xf32>
    %96 = vector.broadcast %95 : vector<8x1xf32> to vector<8x256xf32>
    %97 = arith.mulf %96, %94 : vector<8x256xf32>
    %98 = arith.addf %83, %97 : vector<8x256xf32>
    %c4_39 = arith.constant 4 : index
    %c126_40 = arith.constant 126 : index
    %99 = vector.load %arg7[%c4_39, %c126_40] : memref<24x512xf32, #tpu.memory_space<vmem>>, vector<8x256xf32>
    %100 = vector.extract_strided_slice %35 {offsets = [0, 12], sizes = [8, 1], strides = [1, 1]} : vector<8x63xf32> to vector<8x1xf32>
    %101 = vector.broadcast %100 : vector<8x1xf32> to vector<8x256xf32>
    %102 = arith.mulf %101, %99 : vector<8x256xf32>
    %103 = arith.addf %88, %102 : vector<8x256xf32>
    %c4_41 = arith.constant 4 : index
    %c128_42 = arith.constant 128 : index
    %104 = vector.load %arg7[%c4_41, %c128_42] : memref<24x512xf32, #tpu.memory_space<vmem>>, vector<8x256xf32>
    %105 = vector.extract_strided_slice %35 {offsets = [0, 13], sizes = [8, 1], strides = [1, 1]} : vector<8x63xf32> to vector<8x1xf32>
    %106 = vector.broadcast %105 : vector<8x1xf32> to vector<8x256xf32>
    %107 = arith.mulf %106, %104 : vector<8x256xf32>
    %108 = arith.addf %93, %107 : vector<8x256xf32>
    %c4_43 = arith.constant 4 : index
    %c130_44 = arith.constant 130 : index
    %109 = vector.load %arg7[%c4_43, %c130_44] : memref<24x512xf32, #tpu.memory_space<vmem>>, vector<8x256xf32>
    %110 = vector.extract_strided_slice %35 {offsets = [0, 14], sizes = [8, 1], strides = [1, 1]} : vector<8x63xf32> to vector<8x1xf32>
    %111 = vector.broadcast %110 : vector<8x1xf32> to vector<8x256xf32>
    %112 = arith.mulf %111, %109 : vector<8x256xf32>
    %113 = arith.addf %98, %112 : vector<8x256xf32>
    %c4_45 = arith.constant 4 : index
    %c158_46 = arith.constant 158 : index
    %114 = vector.load %arg7[%c4_45, %c158_46] : memref<24x512xf32, #tpu.memory_space<vmem>>, vector<8x256xf32>
    %115 = vector.extract_strided_slice %35 {offsets = [0, 15], sizes = [8, 1], strides = [1, 1]} : vector<8x63xf32> to vector<8x1xf32>
    %116 = vector.broadcast %115 : vector<8x1xf32> to vector<8x256xf32>
    %117 = arith.mulf %116, %114 : vector<8x256xf32>
    %118 = arith.addf %103, %117 : vector<8x256xf32>
    %c4_47 = arith.constant 4 : index
    %c160_48 = arith.constant 160 : index
    %119 = vector.load %arg7[%c4_47, %c160_48] : memref<24x512xf32, #tpu.memory_space<vmem>>, vector<8x256xf32>
    %120 = vector.extract_strided_slice %35 {offsets = [0, 16], sizes = [8, 1], strides = [1, 1]} : vector<8x63xf32> to vector<8x1xf32>
    %121 = vector.broadcast %120 : vector<8x1xf32> to vector<8x256xf32>
    %122 = arith.mulf %121, %119 : vector<8x256xf32>
    %123 = arith.addf %108, %122 : vector<8x256xf32>
    %c4_49 = arith.constant 4 : index
    %c162_50 = arith.constant 162 : index
    %124 = vector.load %arg7[%c4_49, %c162_50] : memref<24x512xf32, #tpu.memory_space<vmem>>, vector<8x256xf32>
    %125 = vector.extract_strided_slice %35 {offsets = [0, 17], sizes = [8, 1], strides = [1, 1]} : vector<8x63xf32> to vector<8x1xf32>
    %126 = vector.broadcast %125 : vector<8x1xf32> to vector<8x256xf32>
    %127 = arith.mulf %126, %124 : vector<8x256xf32>
    %128 = arith.addf %113, %127 : vector<8x256xf32>
    %c6 = arith.constant 6 : index
    %c94_51 = arith.constant 94 : index
    %129 = vector.load %arg7[%c6, %c94_51] : memref<24x512xf32, #tpu.memory_space<vmem>>, vector<8x256xf32>
    %130 = vector.extract_strided_slice %35 {offsets = [0, 18], sizes = [8, 1], strides = [1, 1]} : vector<8x63xf32> to vector<8x1xf32>
    %131 = vector.broadcast %130 : vector<8x1xf32> to vector<8x256xf32>
    %132 = arith.mulf %131, %129 : vector<8x256xf32>
    %133 = arith.addf %118, %132 : vector<8x256xf32>
    %c6_52 = arith.constant 6 : index
    %c96_53 = arith.constant 96 : index
    %134 = vector.load %arg7[%c6_52, %c96_53] : memref<24x512xf32, #tpu.memory_space<vmem>>, vector<8x256xf32>
    %135 = vector.extract_strided_slice %35 {offsets = [0, 19], sizes = [8, 1], strides = [1, 1]} : vector<8x63xf32> to vector<8x1xf32>
    %136 = vector.broadcast %135 : vector<8x1xf32> to vector<8x256xf32>
    %137 = arith.mulf %136, %134 : vector<8x256xf32>
    %138 = arith.addf %123, %137 : vector<8x256xf32>
    %c6_54 = arith.constant 6 : index
    %c98_55 = arith.constant 98 : index
    %139 = vector.load %arg7[%c6_54, %c98_55] : memref<24x512xf32, #tpu.memory_space<vmem>>, vector<8x256xf32>
    %140 = vector.extract_strided_slice %35 {offsets = [0, 20], sizes = [8, 1], strides = [1, 1]} : vector<8x63xf32> to vector<8x1xf32>
    %141 = vector.broadcast %140 : vector<8x1xf32> to vector<8x256xf32>
    %142 = arith.mulf %141, %139 : vector<8x256xf32>
    %143 = arith.addf %128, %142 : vector<8x256xf32>
    %c6_56 = arith.constant 6 : index
    %c126_57 = arith.constant 126 : index
    %144 = vector.load %arg7[%c6_56, %c126_57] : memref<24x512xf32, #tpu.memory_space<vmem>>, vector<8x256xf32>
    %145 = vector.extract_strided_slice %35 {offsets = [0, 21], sizes = [8, 1], strides = [1, 1]} : vector<8x63xf32> to vector<8x1xf32>
    %146 = vector.broadcast %145 : vector<8x1xf32> to vector<8x256xf32>
    %147 = arith.mulf %146, %144 : vector<8x256xf32>
    %148 = arith.addf %133, %147 : vector<8x256xf32>
    %c6_58 = arith.constant 6 : index
    %c128_59 = arith.constant 128 : index
    %149 = vector.load %arg7[%c6_58, %c128_59] : memref<24x512xf32, #tpu.memory_space<vmem>>, vector<8x256xf32>
    %150 = vector.extract_strided_slice %35 {offsets = [0, 22], sizes = [8, 1], strides = [1, 1]} : vector<8x63xf32> to vector<8x1xf32>
    %151 = vector.broadcast %150 : vector<8x1xf32> to vector<8x256xf32>
    %152 = arith.mulf %151, %149 : vector<8x256xf32>
    %153 = arith.addf %138, %152 : vector<8x256xf32>
    %c6_60 = arith.constant 6 : index
    %c130_61 = arith.constant 130 : index
    %154 = vector.load %arg7[%c6_60, %c130_61] : memref<24x512xf32, #tpu.memory_space<vmem>>, vector<8x256xf32>
    %155 = vector.extract_strided_slice %35 {offsets = [0, 23], sizes = [8, 1], strides = [1, 1]} : vector<8x63xf32> to vector<8x1xf32>
    %156 = vector.broadcast %155 : vector<8x1xf32> to vector<8x256xf32>
    %157 = arith.mulf %156, %154 : vector<8x256xf32>
    %158 = arith.addf %143, %157 : vector<8x256xf32>
    %c6_62 = arith.constant 6 : index
    %c158_63 = arith.constant 158 : index
    %159 = vector.load %arg7[%c6_62, %c158_63] : memref<24x512xf32, #tpu.memory_space<vmem>>, vector<8x256xf32>
    %160 = vector.extract_strided_slice %35 {offsets = [0, 24], sizes = [8, 1], strides = [1, 1]} : vector<8x63xf32> to vector<8x1xf32>
    %161 = vector.broadcast %160 : vector<8x1xf32> to vector<8x256xf32>
    %162 = arith.mulf %161, %159 : vector<8x256xf32>
    %163 = arith.addf %148, %162 : vector<8x256xf32>
    %c6_64 = arith.constant 6 : index
    %c160_65 = arith.constant 160 : index
    %164 = vector.load %arg7[%c6_64, %c160_65] : memref<24x512xf32, #tpu.memory_space<vmem>>, vector<8x256xf32>
    %165 = vector.extract_strided_slice %35 {offsets = [0, 25], sizes = [8, 1], strides = [1, 1]} : vector<8x63xf32> to vector<8x1xf32>
    %166 = vector.broadcast %165 : vector<8x1xf32> to vector<8x256xf32>
    %167 = arith.mulf %166, %164 : vector<8x256xf32>
    %168 = arith.addf %153, %167 : vector<8x256xf32>
    %c6_66 = arith.constant 6 : index
    %c162_67 = arith.constant 162 : index
    %169 = vector.load %arg7[%c6_66, %c162_67] : memref<24x512xf32, #tpu.memory_space<vmem>>, vector<8x256xf32>
    %170 = vector.extract_strided_slice %35 {offsets = [0, 26], sizes = [8, 1], strides = [1, 1]} : vector<8x63xf32> to vector<8x1xf32>
    %171 = vector.broadcast %170 : vector<8x1xf32> to vector<8x256xf32>
    %172 = arith.mulf %171, %169 : vector<8x256xf32>
    %173 = arith.addf %158, %172 : vector<8x256xf32>
    %c8_68 = arith.constant 8 : index
    %c94_69 = arith.constant 94 : index
    %174 = vector.load %arg7[%c8_68, %c94_69] : memref<24x512xf32, #tpu.memory_space<vmem>>, vector<8x256xf32>
    %175 = vector.extract_strided_slice %35 {offsets = [0, 27], sizes = [8, 1], strides = [1, 1]} : vector<8x63xf32> to vector<8x1xf32>
    %176 = vector.broadcast %175 : vector<8x1xf32> to vector<8x256xf32>
    %177 = arith.mulf %176, %174 : vector<8x256xf32>
    %178 = arith.addf %163, %177 : vector<8x256xf32>
    %c8_70 = arith.constant 8 : index
    %c96_71 = arith.constant 96 : index
    %179 = vector.load %arg7[%c8_70, %c96_71] : memref<24x512xf32, #tpu.memory_space<vmem>>, vector<8x256xf32>
    %180 = vector.extract_strided_slice %35 {offsets = [0, 28], sizes = [8, 1], strides = [1, 1]} : vector<8x63xf32> to vector<8x1xf32>
    %181 = vector.broadcast %180 : vector<8x1xf32> to vector<8x256xf32>
    %182 = arith.mulf %181, %179 : vector<8x256xf32>
    %183 = arith.addf %168, %182 : vector<8x256xf32>
    %c8_72 = arith.constant 8 : index
    %c98_73 = arith.constant 98 : index
    %184 = vector.load %arg7[%c8_72, %c98_73] : memref<24x512xf32, #tpu.memory_space<vmem>>, vector<8x256xf32>
    %185 = vector.extract_strided_slice %35 {offsets = [0, 29], sizes = [8, 1], strides = [1, 1]} : vector<8x63xf32> to vector<8x1xf32>
    %186 = vector.broadcast %185 : vector<8x1xf32> to vector<8x256xf32>
    %187 = arith.mulf %186, %184 : vector<8x256xf32>
    %188 = arith.addf %173, %187 : vector<8x256xf32>
    %c8_74 = arith.constant 8 : index
    %c126_75 = arith.constant 126 : index
    %189 = vector.load %arg7[%c8_74, %c126_75] : memref<24x512xf32, #tpu.memory_space<vmem>>, vector<8x256xf32>
    %190 = vector.extract_strided_slice %35 {offsets = [0, 30], sizes = [8, 1], strides = [1, 1]} : vector<8x63xf32> to vector<8x1xf32>
    %191 = vector.broadcast %190 : vector<8x1xf32> to vector<8x256xf32>
    %192 = arith.mulf %191, %189 : vector<8x256xf32>
    %193 = arith.addf %178, %192 : vector<8x256xf32>
    %c8_76 = arith.constant 8 : index
    %c128_77 = arith.constant 128 : index
    %194 = vector.load %arg7[%c8_76, %c128_77] : memref<24x512xf32, #tpu.memory_space<vmem>>, vector<8x256xf32>
    %195 = vector.extract_strided_slice %35 {offsets = [0, 31], sizes = [8, 1], strides = [1, 1]} : vector<8x63xf32> to vector<8x1xf32>
    %196 = vector.broadcast %195 : vector<8x1xf32> to vector<8x256xf32>
    %197 = arith.mulf %196, %194 : vector<8x256xf32>
    %198 = arith.addf %183, %197 : vector<8x256xf32>
    %c8_78 = arith.constant 8 : index
    %c130_79 = arith.constant 130 : index
    %199 = vector.load %arg7[%c8_78, %c130_79] : memref<24x512xf32, #tpu.memory_space<vmem>>, vector<8x256xf32>
    %200 = vector.extract_strided_slice %35 {offsets = [0, 32], sizes = [8, 1], strides = [1, 1]} : vector<8x63xf32> to vector<8x1xf32>
    %201 = vector.broadcast %200 : vector<8x1xf32> to vector<8x256xf32>
    %202 = arith.mulf %201, %199 : vector<8x256xf32>
    %203 = arith.addf %188, %202 : vector<8x256xf32>
    %c8_80 = arith.constant 8 : index
    %c158_81 = arith.constant 158 : index
    %204 = vector.load %arg7[%c8_80, %c158_81] : memref<24x512xf32, #tpu.memory_space<vmem>>, vector<8x256xf32>
    %205 = vector.extract_strided_slice %35 {offsets = [0, 33], sizes = [8, 1], strides = [1, 1]} : vector<8x63xf32> to vector<8x1xf32>
    %206 = vector.broadcast %205 : vector<8x1xf32> to vector<8x256xf32>
    %207 = arith.mulf %206, %204 : vector<8x256xf32>
    %208 = arith.addf %193, %207 : vector<8x256xf32>
    %c8_82 = arith.constant 8 : index
    %c160_83 = arith.constant 160 : index
    %209 = vector.load %arg7[%c8_82, %c160_83] : memref<24x512xf32, #tpu.memory_space<vmem>>, vector<8x256xf32>
    %210 = vector.extract_strided_slice %35 {offsets = [0, 34], sizes = [8, 1], strides = [1, 1]} : vector<8x63xf32> to vector<8x1xf32>
    %211 = vector.broadcast %210 : vector<8x1xf32> to vector<8x256xf32>
    %212 = arith.mulf %211, %209 : vector<8x256xf32>
    %213 = arith.addf %198, %212 : vector<8x256xf32>
    %c8_84 = arith.constant 8 : index
    %c162_85 = arith.constant 162 : index
    %214 = vector.load %arg7[%c8_84, %c162_85] : memref<24x512xf32, #tpu.memory_space<vmem>>, vector<8x256xf32>
    %215 = vector.extract_strided_slice %35 {offsets = [0, 35], sizes = [8, 1], strides = [1, 1]} : vector<8x63xf32> to vector<8x1xf32>
    %216 = vector.broadcast %215 : vector<8x1xf32> to vector<8x256xf32>
    %217 = arith.mulf %216, %214 : vector<8x256xf32>
    %218 = arith.addf %203, %217 : vector<8x256xf32>
    %c10_86 = arith.constant 10 : index
    %c94_87 = arith.constant 94 : index
    %219 = vector.load %arg7[%c10_86, %c94_87] : memref<24x512xf32, #tpu.memory_space<vmem>>, vector<8x256xf32>
    %220 = vector.extract_strided_slice %35 {offsets = [0, 36], sizes = [8, 1], strides = [1, 1]} : vector<8x63xf32> to vector<8x1xf32>
    %221 = vector.broadcast %220 : vector<8x1xf32> to vector<8x256xf32>
    %222 = arith.mulf %221, %219 : vector<8x256xf32>
    %223 = arith.addf %208, %222 : vector<8x256xf32>
    %c10_88 = arith.constant 10 : index
    %c96_89 = arith.constant 96 : index
    %224 = vector.load %arg7[%c10_88, %c96_89] : memref<24x512xf32, #tpu.memory_space<vmem>>, vector<8x256xf32>
    %225 = vector.extract_strided_slice %35 {offsets = [0, 37], sizes = [8, 1], strides = [1, 1]} : vector<8x63xf32> to vector<8x1xf32>
    %226 = vector.broadcast %225 : vector<8x1xf32> to vector<8x256xf32>
    %227 = arith.mulf %226, %224 : vector<8x256xf32>
    %228 = arith.addf %213, %227 : vector<8x256xf32>
    %c10_90 = arith.constant 10 : index
    %c98_91 = arith.constant 98 : index
    %229 = vector.load %arg7[%c10_90, %c98_91] : memref<24x512xf32, #tpu.memory_space<vmem>>, vector<8x256xf32>
    %230 = vector.extract_strided_slice %35 {offsets = [0, 38], sizes = [8, 1], strides = [1, 1]} : vector<8x63xf32> to vector<8x1xf32>
    %231 = vector.broadcast %230 : vector<8x1xf32> to vector<8x256xf32>
    %232 = arith.mulf %231, %229 : vector<8x256xf32>
    %233 = arith.addf %218, %232 : vector<8x256xf32>
    %c10_92 = arith.constant 10 : index
    %c126_93 = arith.constant 126 : index
    %234 = vector.load %arg7[%c10_92, %c126_93] : memref<24x512xf32, #tpu.memory_space<vmem>>, vector<8x256xf32>
    %235 = vector.extract_strided_slice %35 {offsets = [0, 39], sizes = [8, 1], strides = [1, 1]} : vector<8x63xf32> to vector<8x1xf32>
    %236 = vector.broadcast %235 : vector<8x1xf32> to vector<8x256xf32>
    %237 = arith.mulf %236, %234 : vector<8x256xf32>
    %238 = arith.addf %223, %237 : vector<8x256xf32>
    %c10_94 = arith.constant 10 : index
    %c128_95 = arith.constant 128 : index
    %239 = vector.load %arg7[%c10_94, %c128_95] : memref<24x512xf32, #tpu.memory_space<vmem>>, vector<8x256xf32>
    %240 = vector.extract_strided_slice %35 {offsets = [0, 40], sizes = [8, 1], strides = [1, 1]} : vector<8x63xf32> to vector<8x1xf32>
    %241 = vector.broadcast %240 : vector<8x1xf32> to vector<8x256xf32>
    %242 = arith.mulf %241, %239 : vector<8x256xf32>
    %243 = arith.addf %228, %242 : vector<8x256xf32>
    %c10_96 = arith.constant 10 : index
    %c130_97 = arith.constant 130 : index
    %244 = vector.load %arg7[%c10_96, %c130_97] : memref<24x512xf32, #tpu.memory_space<vmem>>, vector<8x256xf32>
    %245 = vector.extract_strided_slice %35 {offsets = [0, 41], sizes = [8, 1], strides = [1, 1]} : vector<8x63xf32> to vector<8x1xf32>
    %246 = vector.broadcast %245 : vector<8x1xf32> to vector<8x256xf32>
    %247 = arith.mulf %246, %244 : vector<8x256xf32>
    %248 = arith.addf %233, %247 : vector<8x256xf32>
    %c10_98 = arith.constant 10 : index
    %c158_99 = arith.constant 158 : index
    %249 = vector.load %arg7[%c10_98, %c158_99] : memref<24x512xf32, #tpu.memory_space<vmem>>, vector<8x256xf32>
    %250 = vector.extract_strided_slice %35 {offsets = [0, 42], sizes = [8, 1], strides = [1, 1]} : vector<8x63xf32> to vector<8x1xf32>
    %251 = vector.broadcast %250 : vector<8x1xf32> to vector<8x256xf32>
    %252 = arith.mulf %251, %249 : vector<8x256xf32>
    %253 = arith.addf %238, %252 : vector<8x256xf32>
    %c10_100 = arith.constant 10 : index
    %c160_101 = arith.constant 160 : index
    %254 = vector.load %arg7[%c10_100, %c160_101] : memref<24x512xf32, #tpu.memory_space<vmem>>, vector<8x256xf32>
    %255 = vector.extract_strided_slice %35 {offsets = [0, 43], sizes = [8, 1], strides = [1, 1]} : vector<8x63xf32> to vector<8x1xf32>
    %256 = vector.broadcast %255 : vector<8x1xf32> to vector<8x256xf32>
    %257 = arith.mulf %256, %254 : vector<8x256xf32>
    %258 = arith.addf %243, %257 : vector<8x256xf32>
    %c10_102 = arith.constant 10 : index
    %c162_103 = arith.constant 162 : index
    %259 = vector.load %arg7[%c10_102, %c162_103] : memref<24x512xf32, #tpu.memory_space<vmem>>, vector<8x256xf32>
    %260 = vector.extract_strided_slice %35 {offsets = [0, 44], sizes = [8, 1], strides = [1, 1]} : vector<8x63xf32> to vector<8x1xf32>
    %261 = vector.broadcast %260 : vector<8x1xf32> to vector<8x256xf32>
    %262 = arith.mulf %261, %259 : vector<8x256xf32>
    %263 = arith.addf %248, %262 : vector<8x256xf32>
    %c12_104 = arith.constant 12 : index
    %c94_105 = arith.constant 94 : index
    %264 = vector.load %arg7[%c12_104, %c94_105] : memref<24x512xf32, #tpu.memory_space<vmem>>, vector<8x256xf32>
    %265 = vector.extract_strided_slice %35 {offsets = [0, 45], sizes = [8, 1], strides = [1, 1]} : vector<8x63xf32> to vector<8x1xf32>
    %266 = vector.broadcast %265 : vector<8x1xf32> to vector<8x256xf32>
    %267 = arith.mulf %266, %264 : vector<8x256xf32>
    %268 = arith.addf %253, %267 : vector<8x256xf32>
    %c12_106 = arith.constant 12 : index
    %c96_107 = arith.constant 96 : index
    %269 = vector.load %arg7[%c12_106, %c96_107] : memref<24x512xf32, #tpu.memory_space<vmem>>, vector<8x256xf32>
    %270 = vector.extract_strided_slice %35 {offsets = [0, 46], sizes = [8, 1], strides = [1, 1]} : vector<8x63xf32> to vector<8x1xf32>
    %271 = vector.broadcast %270 : vector<8x1xf32> to vector<8x256xf32>
    %272 = arith.mulf %271, %269 : vector<8x256xf32>
    %273 = arith.addf %258, %272 : vector<8x256xf32>
    %c12_108 = arith.constant 12 : index
    %c98_109 = arith.constant 98 : index
    %274 = vector.load %arg7[%c12_108, %c98_109] : memref<24x512xf32, #tpu.memory_space<vmem>>, vector<8x256xf32>
    %275 = vector.extract_strided_slice %35 {offsets = [0, 47], sizes = [8, 1], strides = [1, 1]} : vector<8x63xf32> to vector<8x1xf32>
    %276 = vector.broadcast %275 : vector<8x1xf32> to vector<8x256xf32>
    %277 = arith.mulf %276, %274 : vector<8x256xf32>
    %278 = arith.addf %263, %277 : vector<8x256xf32>
    %c12_110 = arith.constant 12 : index
    %c126_111 = arith.constant 126 : index
    %279 = vector.load %arg7[%c12_110, %c126_111] : memref<24x512xf32, #tpu.memory_space<vmem>>, vector<8x256xf32>
    %280 = vector.extract_strided_slice %35 {offsets = [0, 48], sizes = [8, 1], strides = [1, 1]} : vector<8x63xf32> to vector<8x1xf32>
    %281 = vector.broadcast %280 : vector<8x1xf32> to vector<8x256xf32>
    %282 = arith.mulf %281, %279 : vector<8x256xf32>
    %283 = arith.addf %268, %282 : vector<8x256xf32>
    %c12_112 = arith.constant 12 : index
    %c128_113 = arith.constant 128 : index
    %284 = vector.load %arg7[%c12_112, %c128_113] : memref<24x512xf32, #tpu.memory_space<vmem>>, vector<8x256xf32>
    %285 = vector.extract_strided_slice %35 {offsets = [0, 49], sizes = [8, 1], strides = [1, 1]} : vector<8x63xf32> to vector<8x1xf32>
    %286 = vector.broadcast %285 : vector<8x1xf32> to vector<8x256xf32>
    %287 = arith.mulf %286, %284 : vector<8x256xf32>
    %288 = arith.addf %273, %287 : vector<8x256xf32>
    %c12_114 = arith.constant 12 : index
    %c130_115 = arith.constant 130 : index
    %289 = vector.load %arg7[%c12_114, %c130_115] : memref<24x512xf32, #tpu.memory_space<vmem>>, vector<8x256xf32>
    %290 = vector.extract_strided_slice %35 {offsets = [0, 50], sizes = [8, 1], strides = [1, 1]} : vector<8x63xf32> to vector<8x1xf32>
    %291 = vector.broadcast %290 : vector<8x1xf32> to vector<8x256xf32>
    %292 = arith.mulf %291, %289 : vector<8x256xf32>
    %293 = arith.addf %278, %292 : vector<8x256xf32>
    %c12_116 = arith.constant 12 : index
    %c158_117 = arith.constant 158 : index
    %294 = vector.load %arg7[%c12_116, %c158_117] : memref<24x512xf32, #tpu.memory_space<vmem>>, vector<8x256xf32>
    %295 = vector.extract_strided_slice %35 {offsets = [0, 51], sizes = [8, 1], strides = [1, 1]} : vector<8x63xf32> to vector<8x1xf32>
    %296 = vector.broadcast %295 : vector<8x1xf32> to vector<8x256xf32>
    %297 = arith.mulf %296, %294 : vector<8x256xf32>
    %298 = arith.addf %283, %297 : vector<8x256xf32>
    %c12_118 = arith.constant 12 : index
    %c160_119 = arith.constant 160 : index
    %299 = vector.load %arg7[%c12_118, %c160_119] : memref<24x512xf32, #tpu.memory_space<vmem>>, vector<8x256xf32>
    %300 = vector.extract_strided_slice %35 {offsets = [0, 52], sizes = [8, 1], strides = [1, 1]} : vector<8x63xf32> to vector<8x1xf32>
    %301 = vector.broadcast %300 : vector<8x1xf32> to vector<8x256xf32>
    %302 = arith.mulf %301, %299 : vector<8x256xf32>
    %303 = arith.addf %288, %302 : vector<8x256xf32>
    %c12_120 = arith.constant 12 : index
    %c162_121 = arith.constant 162 : index
    %304 = vector.load %arg7[%c12_120, %c162_121] : memref<24x512xf32, #tpu.memory_space<vmem>>, vector<8x256xf32>
    %305 = vector.extract_strided_slice %35 {offsets = [0, 53], sizes = [8, 1], strides = [1, 1]} : vector<8x63xf32> to vector<8x1xf32>
    %306 = vector.broadcast %305 : vector<8x1xf32> to vector<8x256xf32>
    %307 = arith.mulf %306, %304 : vector<8x256xf32>
    %308 = arith.addf %293, %307 : vector<8x256xf32>
    %c14_122 = arith.constant 14 : index
    %c94_123 = arith.constant 94 : index
    %309 = vector.load %arg7[%c14_122, %c94_123] : memref<24x512xf32, #tpu.memory_space<vmem>>, vector<8x256xf32>
    %310 = vector.extract_strided_slice %35 {offsets = [0, 54], sizes = [8, 1], strides = [1, 1]} : vector<8x63xf32> to vector<8x1xf32>
    %311 = vector.broadcast %310 : vector<8x1xf32> to vector<8x256xf32>
    %312 = arith.mulf %311, %309 : vector<8x256xf32>
    %313 = arith.addf %298, %312 : vector<8x256xf32>
    %c14_124 = arith.constant 14 : index
    %c96_125 = arith.constant 96 : index
    %314 = vector.load %arg7[%c14_124, %c96_125] : memref<24x512xf32, #tpu.memory_space<vmem>>, vector<8x256xf32>
    %315 = vector.extract_strided_slice %35 {offsets = [0, 55], sizes = [8, 1], strides = [1, 1]} : vector<8x63xf32> to vector<8x1xf32>
    %316 = vector.broadcast %315 : vector<8x1xf32> to vector<8x256xf32>
    %317 = arith.mulf %316, %314 : vector<8x256xf32>
    %318 = arith.addf %303, %317 : vector<8x256xf32>
    %c14_126 = arith.constant 14 : index
    %c98_127 = arith.constant 98 : index
    %319 = vector.load %arg7[%c14_126, %c98_127] : memref<24x512xf32, #tpu.memory_space<vmem>>, vector<8x256xf32>
    %320 = vector.extract_strided_slice %35 {offsets = [0, 56], sizes = [8, 1], strides = [1, 1]} : vector<8x63xf32> to vector<8x1xf32>
    %321 = vector.broadcast %320 : vector<8x1xf32> to vector<8x256xf32>
    %322 = arith.mulf %321, %319 : vector<8x256xf32>
    %323 = arith.addf %308, %322 : vector<8x256xf32>
    %c14_128 = arith.constant 14 : index
    %c126_129 = arith.constant 126 : index
    %324 = vector.load %arg7[%c14_128, %c126_129] : memref<24x512xf32, #tpu.memory_space<vmem>>, vector<8x256xf32>
    %325 = vector.extract_strided_slice %35 {offsets = [0, 57], sizes = [8, 1], strides = [1, 1]} : vector<8x63xf32> to vector<8x1xf32>
    %326 = vector.broadcast %325 : vector<8x1xf32> to vector<8x256xf32>
    %327 = arith.mulf %326, %324 : vector<8x256xf32>
    %328 = arith.addf %313, %327 : vector<8x256xf32>
    %c14_130 = arith.constant 14 : index
    %c128_131 = arith.constant 128 : index
    %329 = vector.load %arg7[%c14_130, %c128_131] : memref<24x512xf32, #tpu.memory_space<vmem>>, vector<8x256xf32>
    %330 = vector.extract_strided_slice %35 {offsets = [0, 58], sizes = [8, 1], strides = [1, 1]} : vector<8x63xf32> to vector<8x1xf32>
    %331 = vector.broadcast %330 : vector<8x1xf32> to vector<8x256xf32>
    %332 = arith.mulf %331, %329 : vector<8x256xf32>
    %333 = arith.addf %318, %332 : vector<8x256xf32>
    %c14_132 = arith.constant 14 : index
    %c130_133 = arith.constant 130 : index
    %334 = vector.load %arg7[%c14_132, %c130_133] : memref<24x512xf32, #tpu.memory_space<vmem>>, vector<8x256xf32>
    %335 = vector.extract_strided_slice %35 {offsets = [0, 59], sizes = [8, 1], strides = [1, 1]} : vector<8x63xf32> to vector<8x1xf32>
    %336 = vector.broadcast %335 : vector<8x1xf32> to vector<8x256xf32>
    %337 = arith.mulf %336, %334 : vector<8x256xf32>
    %338 = arith.addf %323, %337 : vector<8x256xf32>
    %c14_134 = arith.constant 14 : index
    %c158_135 = arith.constant 158 : index
    %339 = vector.load %arg7[%c14_134, %c158_135] : memref<24x512xf32, #tpu.memory_space<vmem>>, vector<8x256xf32>
    %340 = vector.extract_strided_slice %35 {offsets = [0, 60], sizes = [8, 1], strides = [1, 1]} : vector<8x63xf32> to vector<8x1xf32>
    %341 = vector.broadcast %340 : vector<8x1xf32> to vector<8x256xf32>
    %342 = arith.mulf %341, %339 : vector<8x256xf32>
    %343 = arith.addf %328, %342 : vector<8x256xf32>
    %c14_136 = arith.constant 14 : index
    %c160_137 = arith.constant 160 : index
    %344 = vector.load %arg7[%c14_136, %c160_137] : memref<24x512xf32, #tpu.memory_space<vmem>>, vector<8x256xf32>
    %345 = vector.extract_strided_slice %35 {offsets = [0, 61], sizes = [8, 1], strides = [1, 1]} : vector<8x63xf32> to vector<8x1xf32>
    %346 = vector.broadcast %345 : vector<8x1xf32> to vector<8x256xf32>
    %347 = arith.mulf %346, %344 : vector<8x256xf32>
    %348 = arith.addf %333, %347 : vector<8x256xf32>
    %c14_138 = arith.constant 14 : index
    %c162_139 = arith.constant 162 : index
    %349 = vector.load %arg7[%c14_138, %c162_139] : memref<24x512xf32, #tpu.memory_space<vmem>>, vector<8x256xf32>
    %350 = vector.extract_strided_slice %35 {offsets = [0, 62], sizes = [8, 1], strides = [1, 1]} : vector<8x63xf32> to vector<8x1xf32>
    %351 = vector.broadcast %350 : vector<8x1xf32> to vector<8x256xf32>
    %352 = arith.mulf %351, %349 : vector<8x256xf32>
    %353 = arith.addf %338, %352 : vector<8x256xf32>
    %c0_140 = arith.constant 0 : index
    %c0_141 = arith.constant 0 : index
    %354 = vector.load %arg4[%c0_140, %c0_141] : memref<3x256xf32, #tpu.memory_space<vmem>>, vector<1x256xf32>
    %355 = vector.broadcast %354 : vector<1x256xf32> to vector<8x256xf32>
    %356 = arith.mulf %343, %355 : vector<8x256xf32>
    %357 = arith.addf %356, %348 : vector<8x256xf32>
    %c2_142 = arith.constant 2 : index
    %c0_143 = arith.constant 0 : index
    %358 = vector.load %arg4[%c2_142, %c0_143] : memref<3x256xf32, #tpu.memory_space<vmem>>, vector<1x256xf32>
    %359 = vector.broadcast %358 : vector<1x256xf32> to vector<8x256xf32>
    %360 = arith.mulf %353, %359 : vector<8x256xf32>
    %361 = arith.addf %357, %360 : vector<8x256xf32>
    %c0_144 = arith.constant 0 : index
    %c0_145 = arith.constant 0 : index
    %c0_146 = arith.constant 0 : index
    %362 = vector.load %arg5[%c0_144, %c0_145, %c0_146] : memref<1x8x256xf32, #tpu.memory_space<vmem>>, vector<1x8x256xf32>
    %363 = vector.shape_cast %362 : vector<1x8x256xf32> to vector<8x256xf32>
    %364 = arith.addf %361, %363 : vector<8x256xf32>
    %c0_147 = arith.constant 0 : index
    %c0_148 = arith.constant 0 : index
    %c0_149 = arith.constant 0 : index
    %365 = vector.load %arg6[%c0_147, %c0_148, %c0_149] : memref<1x8x256xf32, #tpu.memory_space<vmem>>, vector<1x8x256xf32>
    %366 = vector.shape_cast %365 : vector<1x8x256xf32> to vector<8x256xf32>
    %367 = vector.shape_cast %364 : vector<8x256xf32> to vector<1x8x256xf32>
    tpu.vector_store %arg6[%c0_147, %c0_148, %c0_149], %367 {strides = array<i32>} : memref<1x8x256xf32, #tpu.memory_space<vmem>>, vector<1x8x256xf32>,
    return
  }
  func.func @transform_0(%arg0: i32) -> (i32, i32) {
    %c0_i32 = arith.constant 0 : i32
    %c0_i32_0 = arith.constant 0 : i32
    %c0_i32_1 = arith.constant 0 : i32
    return %c0_i32, %c0_i32_0 : i32, i32
  }
  func.func @transform_1(%arg0: i32) -> (i32, i32) {
    %c0_i32 = arith.constant 0 : i32
    %c0_i32_0 = arith.constant 0 : i32
    %c0_i32_1 = arith.constant 0 : i32
    return %c0_i32, %c0_i32_0 : i32, i32
  }
  func.func @transform_2(%arg0: i32) -> (i32, i32) {
    %c0_i32 = arith.constant 0 : i32
    %c0_i32_0 = arith.constant 0 : i32
    %c0_i32_1 = arith.constant 0 : i32
    return %c0_i32, %c0_i32_0 : i32, i32
  }
  func.func @transform_3(%arg0: i32) -> (i32, i32) {
    %c0_i32 = arith.constant 0 : i32
    %c0_i32_0 = arith.constant 0 : i32
    %c0_i32_1 = arith.constant 0 : i32
    return %c0_i32, %c0_i32_0 : i32, i32
  }
  func.func @transform_4(%arg0: i32) -> (i32, i32, i32) {
    %c0_i32 = arith.constant 0 : i32
    %c0_i32_0 = arith.constant 0 : i32
    %c0_i32_1 = arith.constant 0 : i32
    return %arg0, %c0_i32, %c0_i32_0 : i32, i32, i32
  }
  func.func @transform_5(%arg0: i32) -> (i32, i32, i32) {
    %c0_i32 = arith.constant 0 : i32
    %c0_i32_0 = arith.constant 0 : i32
    %c0_i32_1 = arith.constant 0 : i32
    return %arg0, %c0_i32, %c0_i32_0 : i32, i32, i32
  }
}

module attributes {stable_mosaic.version = 11 : i64} {
  func.func @_bdgc_kernel(%arg0: i32, %arg1: memref<8x1xf32, #tpu.memory_space<vmem>>, %arg2: memref<8x1xf32, #tpu.memory_space<vmem>>, %arg3: memref<8x63xf32, #tpu.memory_space<vmem>>, %arg4: memref<3x256xf32, #tpu.memory_space<vmem>>, %arg5: memref<1x8x256xf32, #tpu.memory_space<vmem>>, %arg6: memref<1x8x256xf32, #tpu.memory_space<vmem>>, %arg7: memref<24x512xf32, #tpu.memory_space<vmem>>) attributes {dimension_semantics = [#tpu.dimension_semantics<parallel>], iteration_bounds = array<i64: 2>, scalar_prefetch = 0 : i64, scratch_operands = 1 : i64, tpu.core_type = #tpu.core_type<tc>, window_params = [{pipeline_mode = #tpu.pipeline_mode<synchronous>, transform_indices = @transform_0, window_bounds = array<i64: 8, 1>}, {pipeline_mode = #tpu.pipeline_mode<synchronous>, transform_indices = @transform_1, window_bounds = array<i64: 8, 1>}, {pipeline_mode = #tpu.pipeline_mode<synchronous>, transform_indices = @transform_2, window_bounds = array<i64: 8, 63>}, {pipeline_mode = #tpu.pipeline_mode<synchronous>, transform_indices = @transform_3, window_bounds = array<i64: 3, 256>}, {transform_indices = @transform_4, window_bounds = array<i64: 1, 8, 256>}, {transform_indices = @transform_5, window_bounds = array<i64: 1, 8, 256>}]} {
    %cst = arith.constant 0.000000e+00 : f32
    %0 = vector.broadcast %cst : f32 to vector<24x512xf32>
    %c0 = arith.constant 0 : index
    %c0_0 = arith.constant 0 : index
    %1 = vector.load %arg7[%c0, %c0_0] : memref<24x512xf32, #tpu.memory_space<vmem>>, vector<24x512xf32>
    tpu.vector_store %arg7[%c0, %c0_0], %0 {strides = array<i32>} : memref<24x512xf32, #tpu.memory_space<vmem>>, vector<24x512xf32>,
    %c0_1 = arith.constant 0 : index
    %c0_2 = arith.constant 0 : index
    %c0_3 = arith.constant 0 : index
    %2 = vector.load %arg5[%c0_1, %c0_2, %c0_3] : memref<1x8x256xf32, #tpu.memory_space<vmem>>, vector<1x8x256xf32>
    %3 = vector.shape_cast %2 : vector<1x8x256xf32> to vector<8x256xf32>
    %c0_4 = arith.constant 0 : index
    %c0_5 = arith.constant 0 : index
    %4 = vector.load %arg1[%c0_4, %c0_5] : memref<8x1xf32, #tpu.memory_space<vmem>>, vector<8x1xf32>
    %5 = vector.broadcast %4 : vector<8x1xf32> to vector<8x256xf32>
    %6 = arith.mulf %3, %5 : vector<8x256xf32>
    %c0_6 = arith.constant 0 : index
    %c0_7 = arith.constant 0 : index
    %7 = vector.load %arg2[%c0_6, %c0_7] : memref<8x1xf32, #tpu.memory_space<vmem>>, vector<8x1xf32>
    %8 = vector.broadcast %7 : vector<8x1xf32> to vector<8x256xf32>
    %9 = arith.addf %6, %8 : vector<8x256xf32>
    %cst_8 = arith.constant 0.000000e+00 : f32
    %10 = vector.broadcast %cst_8 : f32 to vector<8x256xf32>
    %11 = arith.cmpf ogt, %9, %10 : vector<8x256xf32>
    %cst_9 = arith.constant 0.000000e+00 : f32
    %12 = vector.broadcast %cst_9 : f32 to vector<8x256xf32>
    %13 = arith.cmpf olt, %9, %12 : vector<8x256xf32>
    %cst_10 = arith.constant -1.000000e+00 : f32
    %cst_11 = arith.constant 0.000000e+00 : f32
    %14 = vector.broadcast %cst_10 : f32 to vector<8x256xf32>
    %15 = vector.broadcast %cst_11 : f32 to vector<8x256xf32>
    %16 = arith.select %13, %14, %15 : vector<8x256xi1>, vector<8x256xf32>
    %cst_12 = arith.constant 1.000000e+00 : f32
    %17 = vector.broadcast %cst_12 : f32 to vector<8x256xf32>
    %18 = arith.select %11, %17, %16 : vector<8x256xi1>, vector<8x256xf32>
    %19 = vector.extract_strided_slice %18 {offsets = [0, 0], sizes = [1, 256], strides = [1, 1]} : vector<8x256xf32> to vector<1x256xf32>
    %c8 = arith.constant 8 : index
    %c128 = arith.constant 128 : index
    %20 = vector.load %arg7[%c8, %c128] : memref<24x512xf32, #tpu.memory_space<vmem>>, vector<1x256xf32>
    tpu.vector_store %arg7[%c8, %c128], %19 {strides = array<i32>} : memref<24x512xf32, #tpu.memory_space<vmem>>, vector<1x256xf32>,
    %21 = vector.extract_strided_slice %18 {offsets = [4, 0], sizes = [1, 256], strides = [1, 1]} : vector<8x256xf32> to vector<1x256xf32>
    %c9 = arith.constant 9 : index
    %c128_13 = arith.constant 128 : index
    %22 = vector.load %arg7[%c9, %c128_13] : memref<24x512xf32, #tpu.memory_space<vmem>>, vector<1x256xf32>
    tpu.vector_store %arg7[%c9, %c128_13], %21 {strides = array<i32>} : memref<24x512xf32, #tpu.memory_space<vmem>>, vector<1x256xf32>,
    %23 = vector.extract_strided_slice %18 {offsets = [1, 0], sizes = [1, 256], strides = [1, 1]} : vector<8x256xf32> to vector<1x256xf32>
    %c10 = arith.constant 10 : index
    %c128_14 = arith.constant 128 : index
    %24 = vector.load %arg7[%c10, %c128_14] : memref<24x512xf32, #tpu.memory_space<vmem>>, vector<1x256xf32>
    tpu.vector_store %arg7[%c10, %c128_14], %23 {strides = array<i32>} : memref<24x512xf32, #tpu.memory_space<vmem>>, vector<1x256xf32>,
    %25 = vector.extract_strided_slice %18 {offsets = [5, 0], sizes = [1, 256], strides = [1, 1]} : vector<8x256xf32> to vector<1x256xf32>
    %c11 = arith.constant 11 : index
    %c128_15 = arith.constant 128 : index
    %26 = vector.load %arg7[%c11, %c128_15] : memref<24x512xf32, #tpu.memory_space<vmem>>, vector<1x256xf32>
    tpu.vector_store %arg7[%c11, %c128_15], %25 {strides = array<i32>} : memref<24x512xf32, #tpu.memory_space<vmem>>, vector<1x256xf32>,
    %27 = vector.extract_strided_slice %18 {offsets = [2, 0], sizes = [1, 256], strides = [1, 1]} : vector<8x256xf32> to vector<1x256xf32>
    %c12 = arith.constant 12 : index
    %c128_16 = arith.constant 128 : index
    %28 = vector.load %arg7[%c12, %c128_16] : memref<24x512xf32, #tpu.memory_space<vmem>>, vector<1x256xf32>
    tpu.vector_store %arg7[%c12, %c128_16], %27 {strides = array<i32>} : memref<24x512xf32, #tpu.memory_space<vmem>>, vector<1x256xf32>,
    %29 = vector.extract_strided_slice %18 {offsets = [6, 0], sizes = [1, 256], strides = [1, 1]} : vector<8x256xf32> to vector<1x256xf32>
    %c13 = arith.constant 13 : index
    %c128_17 = arith.constant 128 : index
    %30 = vector.load %arg7[%c13, %c128_17] : memref<24x512xf32, #tpu.memory_space<vmem>>, vector<1x256xf32>
    tpu.vector_store %arg7[%c13, %c128_17], %29 {strides = array<i32>} : memref<24x512xf32, #tpu.memory_space<vmem>>, vector<1x256xf32>,
    %31 = vector.extract_strided_slice %18 {offsets = [3, 0], sizes = [1, 256], strides = [1, 1]} : vector<8x256xf32> to vector<1x256xf32>
    %c14 = arith.constant 14 : index
    %c128_18 = arith.constant 128 : index
    %32 = vector.load %arg7[%c14, %c128_18] : memref<24x512xf32, #tpu.memory_space<vmem>>, vector<1x256xf32>
    tpu.vector_store %arg7[%c14, %c128_18], %31 {strides = array<i32>} : memref<24x512xf32, #tpu.memory_space<vmem>>, vector<1x256xf32>,
    %33 = vector.extract_strided_slice %18 {offsets = [7, 0], sizes = [1, 256], strides = [1, 1]} : vector<8x256xf32> to vector<1x256xf32>
    %c15 = arith.constant 15 : index
    %c128_19 = arith.constant 128 : index
    %34 = vector.load %arg7[%c15, %c128_19] : memref<24x512xf32, #tpu.memory_space<vmem>>, vector<1x256xf32>
    tpu.vector_store %arg7[%c15, %c128_19], %33 {strides = array<i32>} : memref<24x512xf32, #tpu.memory_space<vmem>>, vector<1x256xf32>,
    %c0_20 = arith.constant 0 : index
    %c0_21 = arith.constant 0 : index
    %35 = vector.load %arg3[%c0_20, %c0_21] : memref<8x63xf32, #tpu.memory_space<vmem>>, vector<8x63xf32>
    %cst_22 = arith.constant 0.000000e+00 : f32
    %36 = vector.broadcast %cst_22 : f32 to vector<8x256xf32>
    %cst_23 = arith.constant 0.000000e+00 : f32
    %37 = vector.broadcast %cst_23 : f32 to vector<8x256xf32>
    %cst_24 = arith.constant 0.000000e+00 : f32
    %38 = vector.broadcast %cst_24 : f32 to vector<8x256xf32>
    %c2 = arith.constant 2 : index
    %c94 = arith.constant 94 : index
    %39 = vector.load %arg7[%c2, %c94] : memref<24x512xf32, #tpu.memory_space<vmem>>, vector<8x256xf32>
    %40 = vector.extract_strided_slice %35 {offsets = [0, 0], sizes = [8, 1], strides = [1, 1]} : vector<8x63xf32> to vector<8x1xf32>
    %41 = vector.broadcast %40 : vector<8x1xf32> to vector<8x256xf32>
    %42 = arith.mulf %41, %39 : vector<8x256xf32>
    %43 = arith.addf %36, %42 : vector<8x256xf32>
    %c2_25 = arith.constant 2 : index
    %c96 = arith.constant 96 : index
    %44 = vector.load %arg7[%c2_25, %c96] : memref<24x512xf32, #tpu.memory_space<vmem>>, vector<8x256xf32>
    %45 = vector.extract_strided_slice %35 {offsets = [0, 1], sizes = [8, 1], strides = [1, 1]} : vector<8x63xf32> to vector<8x1xf32>
    %46 = vector.broadcast %45 : vector<8x1xf32> to vector<8x256xf32>
    %47 = arith.mulf %46, %44 : vector<8x256xf32>
    %48 = arith.addf %37, %47 : vector<8x256xf32>
    %c2_26 = arith.constant 2 : index
    %c98 = arith.constant 98 : index
    %49 = vector.load %arg7[%c2_26, %c98] : memref<24x512xf32, #tpu.memory_space<vmem>>, vector<8x256xf32>
    %50 = vector.extract_strided_slice %35 {offsets = [0, 2], sizes = [8, 1], strides = [1, 1]} : vector<8x63xf32> to vector<8x1xf32>
    %51 = vector.broadcast %50 : vector<8x1xf32> to vector<8x256xf32>
    %52 = arith.mulf %51, %49 : vector<8x256xf32>
    %53 = arith.addf %38, %52 : vector<8x256xf32>
    %c2_27 = arith.constant 2 : index
    %c126 = arith.constant 126 : index
    %54 = vector.load %arg7[%c2_27, %c126] : memref<24x512xf32, #tpu.memory_space<vmem>>, vector<8x256xf32>
    %55 = vector.extract_strided_slice %35 {offsets = [0, 3], sizes = [8, 1], strides = [1, 1]} : vector<8x63xf32> to vector<8x1xf32>
    %56 = vector.broadcast %55 : vector<8x1xf32> to vector<8x256xf32>
    %57 = arith.mulf %56, %54 : vector<8x256xf32>
    %58 = arith.addf %43, %57 : vector<8x256xf32>
    %c2_28 = arith.constant 2 : index
    %c128_29 = arith.constant 128 : index
    %59 = vector.load %arg7[%c2_28, %c128_29] : memref<24x512xf32, #tpu.memory_space<vmem>>, vector<8x256xf32>
    %60 = vector.extract_strided_slice %35 {offsets = [0, 4], sizes = [8, 1], strides = [1, 1]} : vector<8x63xf32> to vector<8x1xf32>
    %61 = vector.broadcast %60 : vector<8x1xf32> to vector<8x256xf32>
    %62 = arith.mulf %61, %59 : vector<8x256xf32>
    %63 = arith.addf %48, %62 : vector<8x256xf32>
    %c2_30 = arith.constant 2 : index
    %c130 = arith.constant 130 : index
    %64 = vector.load %arg7[%c2_30, %c130] : memref<24x512xf32, #tpu.memory_space<vmem>>, vector<8x256xf32>
    %65 = vector.extract_strided_slice %35 {offsets = [0, 5], sizes = [8, 1], strides = [1, 1]} : vector<8x63xf32> to vector<8x1xf32>
    %66 = vector.broadcast %65 : vector<8x1xf32> to vector<8x256xf32>
    %67 = arith.mulf %66, %64 : vector<8x256xf32>
    %68 = arith.addf %53, %67 : vector<8x256xf32>
    %c2_31 = arith.constant 2 : index
    %c158 = arith.constant 158 : index
    %69 = vector.load %arg7[%c2_31, %c158] : memref<24x512xf32, #tpu.memory_space<vmem>>, vector<8x256xf32>
    %70 = vector.extract_strided_slice %35 {offsets = [0, 6], sizes = [8, 1], strides = [1, 1]} : vector<8x63xf32> to vector<8x1xf32>
    %71 = vector.broadcast %70 : vector<8x1xf32> to vector<8x256xf32>
    %72 = arith.mulf %71, %69 : vector<8x256xf32>
    %73 = arith.addf %58, %72 : vector<8x256xf32>
    %c2_32 = arith.constant 2 : index
    %c160 = arith.constant 160 : index
    %74 = vector.load %arg7[%c2_32, %c160] : memref<24x512xf32, #tpu.memory_space<vmem>>, vector<8x256xf32>
    %75 = vector.extract_strided_slice %35 {offsets = [0, 7], sizes = [8, 1], strides = [1, 1]} : vector<8x63xf32> to vector<8x1xf32>
    %76 = vector.broadcast %75 : vector<8x1xf32> to vector<8x256xf32>
    %77 = arith.mulf %76, %74 : vector<8x256xf32>
    %78 = arith.addf %63, %77 : vector<8x256xf32>
    %c2_33 = arith.constant 2 : index
    %c162 = arith.constant 162 : index
    %79 = vector.load %arg7[%c2_33, %c162] : memref<24x512xf32, #tpu.memory_space<vmem>>, vector<8x256xf32>
    %80 = vector.extract_strided_slice %35 {offsets = [0, 8], sizes = [8, 1], strides = [1, 1]} : vector<8x63xf32> to vector<8x1xf32>
    %81 = vector.broadcast %80 : vector<8x1xf32> to vector<8x256xf32>
    %82 = arith.mulf %81, %79 : vector<8x256xf32>
    %83 = arith.addf %68, %82 : vector<8x256xf32>
    %c4 = arith.constant 4 : index
    %c94_34 = arith.constant 94 : index
    %84 = vector.load %arg7[%c4, %c94_34] : memref<24x512xf32, #tpu.memory_space<vmem>>, vector<8x256xf32>
    %85 = vector.extract_strided_slice %35 {offsets = [0, 9], sizes = [8, 1], strides = [1, 1]} : vector<8x63xf32> to vector<8x1xf32>
    %86 = vector.broadcast %85 : vector<8x1xf32> to vector<8x256xf32>
    %87 = arith.mulf %86, %84 : vector<8x256xf32>
    %88 = arith.addf %73, %87 : vector<8x256xf32>
    %c4_35 = arith.constant 4 : index
    %c96_36 = arith.constant 96 : index
    %89 = vector.load %arg7[%c4_35, %c96_36] : memref<24x512xf32, #tpu.memory_space<vmem>>, vector<8x256xf32>
    %90 = vector.extract_strided_slice %35 {offsets = [0, 10], sizes = [8, 1], strides = [1, 1]} : vector<8x63xf32> to vector<8x1xf32>
    %91 = vector.broadcast %90 : vector<8x1xf32> to vector<8x256xf32>
    %92 = arith.mulf %91, %89 : vector<8x256xf32>
    %93 = arith.addf %78, %92 : vector<8x256xf32>
    %c4_37 = arith.constant 4 : index
    %c98_38 = arith.constant 98 : index
    %94 = vector.load %arg7[%c4_37, %c98_38] : memref<24x512xf32, #tpu.memory_space<vmem>>, vector<8x256xf32>
    %95 = vector.extract_strided_slice %35 {offsets = [0, 11], sizes = [8, 1], strides = [1, 1]} : vector<8x63xf32> to vector<8x1xf32>
    %96 = vector.broadcast %95 : vector<8x1xf32> to vector<8x256xf32>
    %97 = arith.mulf %96, %94 : vector<8x256xf32>
    %98 = arith.addf %83, %97 : vector<8x256xf32>
    %c4_39 = arith.constant 4 : index
    %c126_40 = arith.constant 126 : index
    %99 = vector.load %arg7[%c4_39, %c126_40] : memref<24x512xf32, #tpu.memory_space<vmem>>, vector<8x256xf32>
    %100 = vector.extract_strided_slice %35 {offsets = [0, 12], sizes = [8, 1], strides = [1, 1]} : vector<8x63xf32> to vector<8x1xf32>
    %101 = vector.broadcast %100 : vector<8x1xf32> to vector<8x256xf32>
    %102 = arith.mulf %101, %99 : vector<8x256xf32>
    %103 = arith.addf %88, %102 : vector<8x256xf32>
    %c4_41 = arith.constant 4 : index
    %c128_42 = arith.constant 128 : index
    %104 = vector.load %arg7[%c4_41, %c128_42] : memref<24x512xf32, #tpu.memory_space<vmem>>, vector<8x256xf32>
    %105 = vector.extract_strided_slice %35 {offsets = [0, 13], sizes = [8, 1], strides = [1, 1]} : vector<8x63xf32> to vector<8x1xf32>
    %106 = vector.broadcast %105 : vector<8x1xf32> to vector<8x256xf32>
    %107 = arith.mulf %106, %104 : vector<8x256xf32>
    %108 = arith.addf %93, %107 : vector<8x256xf32>
    %c4_43 = arith.constant 4 : index
    %c130_44 = arith.constant 130 : index
    %109 = vector.load %arg7[%c4_43, %c130_44] : memref<24x512xf32, #tpu.memory_space<vmem>>, vector<8x256xf32>
    %110 = vector.extract_strided_slice %35 {offsets = [0, 14], sizes = [8, 1], strides = [1, 1]} : vector<8x63xf32> to vector<8x1xf32>
    %111 = vector.broadcast %110 : vector<8x1xf32> to vector<8x256xf32>
    %112 = arith.mulf %111, %109 : vector<8x256xf32>
    %113 = arith.addf %98, %112 : vector<8x256xf32>
    %c4_45 = arith.constant 4 : index
    %c158_46 = arith.constant 158 : index
    %114 = vector.load %arg7[%c4_45, %c158_46] : memref<24x512xf32, #tpu.memory_space<vmem>>, vector<8x256xf32>
    %115 = vector.extract_strided_slice %35 {offsets = [0, 15], sizes = [8, 1], strides = [1, 1]} : vector<8x63xf32> to vector<8x1xf32>
    %116 = vector.broadcast %115 : vector<8x1xf32> to vector<8x256xf32>
    %117 = arith.mulf %116, %114 : vector<8x256xf32>
    %118 = arith.addf %103, %117 : vector<8x256xf32>
    %c4_47 = arith.constant 4 : index
    %c160_48 = arith.constant 160 : index
    %119 = vector.load %arg7[%c4_47, %c160_48] : memref<24x512xf32, #tpu.memory_space<vmem>>, vector<8x256xf32>
    %120 = vector.extract_strided_slice %35 {offsets = [0, 16], sizes = [8, 1], strides = [1, 1]} : vector<8x63xf32> to vector<8x1xf32>
    %121 = vector.broadcast %120 : vector<8x1xf32> to vector<8x256xf32>
    %122 = arith.mulf %121, %119 : vector<8x256xf32>
    %123 = arith.addf %108, %122 : vector<8x256xf32>
    %c4_49 = arith.constant 4 : index
    %c162_50 = arith.constant 162 : index
    %124 = vector.load %arg7[%c4_49, %c162_50] : memref<24x512xf32, #tpu.memory_space<vmem>>, vector<8x256xf32>
    %125 = vector.extract_strided_slice %35 {offsets = [0, 17], sizes = [8, 1], strides = [1, 1]} : vector<8x63xf32> to vector<8x1xf32>
    %126 = vector.broadcast %125 : vector<8x1xf32> to vector<8x256xf32>
    %127 = arith.mulf %126, %124 : vector<8x256xf32>
    %128 = arith.addf %113, %127 : vector<8x256xf32>
    %c6 = arith.constant 6 : index
    %c94_51 = arith.constant 94 : index
    %129 = vector.load %arg7[%c6, %c94_51] : memref<24x512xf32, #tpu.memory_space<vmem>>, vector<8x256xf32>
    %130 = vector.extract_strided_slice %35 {offsets = [0, 18], sizes = [8, 1], strides = [1, 1]} : vector<8x63xf32> to vector<8x1xf32>
    %131 = vector.broadcast %130 : vector<8x1xf32> to vector<8x256xf32>
    %132 = arith.mulf %131, %129 : vector<8x256xf32>
    %133 = arith.addf %118, %132 : vector<8x256xf32>
    %c6_52 = arith.constant 6 : index
    %c96_53 = arith.constant 96 : index
    %134 = vector.load %arg7[%c6_52, %c96_53] : memref<24x512xf32, #tpu.memory_space<vmem>>, vector<8x256xf32>
    %135 = vector.extract_strided_slice %35 {offsets = [0, 19], sizes = [8, 1], strides = [1, 1]} : vector<8x63xf32> to vector<8x1xf32>
    %136 = vector.broadcast %135 : vector<8x1xf32> to vector<8x256xf32>
    %137 = arith.mulf %136, %134 : vector<8x256xf32>
    %138 = arith.addf %123, %137 : vector<8x256xf32>
    %c6_54 = arith.constant 6 : index
    %c98_55 = arith.constant 98 : index
    %139 = vector.load %arg7[%c6_54, %c98_55] : memref<24x512xf32, #tpu.memory_space<vmem>>, vector<8x256xf32>
    %140 = vector.extract_strided_slice %35 {offsets = [0, 20], sizes = [8, 1], strides = [1, 1]} : vector<8x63xf32> to vector<8x1xf32>
    %141 = vector.broadcast %140 : vector<8x1xf32> to vector<8x256xf32>
    %142 = arith.mulf %141, %139 : vector<8x256xf32>
    %143 = arith.addf %128, %142 : vector<8x256xf32>
    %c6_56 = arith.constant 6 : index
    %c126_57 = arith.constant 126 : index
    %144 = vector.load %arg7[%c6_56, %c126_57] : memref<24x512xf32, #tpu.memory_space<vmem>>, vector<8x256xf32>
    %145 = vector.extract_strided_slice %35 {offsets = [0, 21], sizes = [8, 1], strides = [1, 1]} : vector<8x63xf32> to vector<8x1xf32>
    %146 = vector.broadcast %145 : vector<8x1xf32> to vector<8x256xf32>
    %147 = arith.mulf %146, %144 : vector<8x256xf32>
    %148 = arith.addf %133, %147 : vector<8x256xf32>
    %c6_58 = arith.constant 6 : index
    %c128_59 = arith.constant 128 : index
    %149 = vector.load %arg7[%c6_58, %c128_59] : memref<24x512xf32, #tpu.memory_space<vmem>>, vector<8x256xf32>
    %150 = vector.extract_strided_slice %35 {offsets = [0, 22], sizes = [8, 1], strides = [1, 1]} : vector<8x63xf32> to vector<8x1xf32>
    %151 = vector.broadcast %150 : vector<8x1xf32> to vector<8x256xf32>
    %152 = arith.mulf %151, %149 : vector<8x256xf32>
    %153 = arith.addf %138, %152 : vector<8x256xf32>
    %c6_60 = arith.constant 6 : index
    %c130_61 = arith.constant 130 : index
    %154 = vector.load %arg7[%c6_60, %c130_61] : memref<24x512xf32, #tpu.memory_space<vmem>>, vector<8x256xf32>
    %155 = vector.extract_strided_slice %35 {offsets = [0, 23], sizes = [8, 1], strides = [1, 1]} : vector<8x63xf32> to vector<8x1xf32>
    %156 = vector.broadcast %155 : vector<8x1xf32> to vector<8x256xf32>
    %157 = arith.mulf %156, %154 : vector<8x256xf32>
    %158 = arith.addf %143, %157 : vector<8x256xf32>
    %c6_62 = arith.constant 6 : index
    %c158_63 = arith.constant 158 : index
    %159 = vector.load %arg7[%c6_62, %c158_63] : memref<24x512xf32, #tpu.memory_space<vmem>>, vector<8x256xf32>
    %160 = vector.extract_strided_slice %35 {offsets = [0, 24], sizes = [8, 1], strides = [1, 1]} : vector<8x63xf32> to vector<8x1xf32>
    %161 = vector.broadcast %160 : vector<8x1xf32> to vector<8x256xf32>
    %162 = arith.mulf %161, %159 : vector<8x256xf32>
    %163 = arith.addf %148, %162 : vector<8x256xf32>
    %c6_64 = arith.constant 6 : index
    %c160_65 = arith.constant 160 : index
    %164 = vector.load %arg7[%c6_64, %c160_65] : memref<24x512xf32, #tpu.memory_space<vmem>>, vector<8x256xf32>
    %165 = vector.extract_strided_slice %35 {offsets = [0, 25], sizes = [8, 1], strides = [1, 1]} : vector<8x63xf32> to vector<8x1xf32>
    %166 = vector.broadcast %165 : vector<8x1xf32> to vector<8x256xf32>
    %167 = arith.mulf %166, %164 : vector<8x256xf32>
    %168 = arith.addf %153, %167 : vector<8x256xf32>
    %c6_66 = arith.constant 6 : index
    %c162_67 = arith.constant 162 : index
    %169 = vector.load %arg7[%c6_66, %c162_67] : memref<24x512xf32, #tpu.memory_space<vmem>>, vector<8x256xf32>
    %170 = vector.extract_strided_slice %35 {offsets = [0, 26], sizes = [8, 1], strides = [1, 1]} : vector<8x63xf32> to vector<8x1xf32>
    %171 = vector.broadcast %170 : vector<8x1xf32> to vector<8x256xf32>
    %172 = arith.mulf %171, %169 : vector<8x256xf32>
    %173 = arith.addf %158, %172 : vector<8x256xf32>
    %c8_68 = arith.constant 8 : index
    %c94_69 = arith.constant 94 : index
    %174 = vector.load %arg7[%c8_68, %c94_69] : memref<24x512xf32, #tpu.memory_space<vmem>>, vector<8x256xf32>
    %175 = vector.extract_strided_slice %35 {offsets = [0, 27], sizes = [8, 1], strides = [1, 1]} : vector<8x63xf32> to vector<8x1xf32>
    %176 = vector.broadcast %175 : vector<8x1xf32> to vector<8x256xf32>
    %177 = arith.mulf %176, %174 : vector<8x256xf32>
    %178 = arith.addf %163, %177 : vector<8x256xf32>
    %c8_70 = arith.constant 8 : index
    %c96_71 = arith.constant 96 : index
    %179 = vector.load %arg7[%c8_70, %c96_71] : memref<24x512xf32, #tpu.memory_space<vmem>>, vector<8x256xf32>
    %180 = vector.extract_strided_slice %35 {offsets = [0, 28], sizes = [8, 1], strides = [1, 1]} : vector<8x63xf32> to vector<8x1xf32>
    %181 = vector.broadcast %180 : vector<8x1xf32> to vector<8x256xf32>
    %182 = arith.mulf %181, %179 : vector<8x256xf32>
    %183 = arith.addf %168, %182 : vector<8x256xf32>
    %c8_72 = arith.constant 8 : index
    %c98_73 = arith.constant 98 : index
    %184 = vector.load %arg7[%c8_72, %c98_73] : memref<24x512xf32, #tpu.memory_space<vmem>>, vector<8x256xf32>
    %185 = vector.extract_strided_slice %35 {offsets = [0, 29], sizes = [8, 1], strides = [1, 1]} : vector<8x63xf32> to vector<8x1xf32>
    %186 = vector.broadcast %185 : vector<8x1xf32> to vector<8x256xf32>
    %187 = arith.mulf %186, %184 : vector<8x256xf32>
    %188 = arith.addf %173, %187 : vector<8x256xf32>
    %c8_74 = arith.constant 8 : index
    %c126_75 = arith.constant 126 : index
    %189 = vector.load %arg7[%c8_74, %c126_75] : memref<24x512xf32, #tpu.memory_space<vmem>>, vector<8x256xf32>
    %190 = vector.extract_strided_slice %35 {offsets = [0, 30], sizes = [8, 1], strides = [1, 1]} : vector<8x63xf32> to vector<8x1xf32>
    %191 = vector.broadcast %190 : vector<8x1xf32> to vector<8x256xf32>
    %192 = arith.mulf %191, %189 : vector<8x256xf32>
    %193 = arith.addf %178, %192 : vector<8x256xf32>
    %c8_76 = arith.constant 8 : index
    %c128_77 = arith.constant 128 : index
    %194 = vector.load %arg7[%c8_76, %c128_77] : memref<24x512xf32, #tpu.memory_space<vmem>>, vector<8x256xf32>
    %195 = vector.extract_strided_slice %35 {offsets = [0, 31], sizes = [8, 1], strides = [1, 1]} : vector<8x63xf32> to vector<8x1xf32>
    %196 = vector.broadcast %195 : vector<8x1xf32> to vector<8x256xf32>
    %197 = arith.mulf %196, %194 : vector<8x256xf32>
    %198 = arith.addf %183, %197 : vector<8x256xf32>
    %c8_78 = arith.constant 8 : index
    %c130_79 = arith.constant 130 : index
    %199 = vector.load %arg7[%c8_78, %c130_79] : memref<24x512xf32, #tpu.memory_space<vmem>>, vector<8x256xf32>
    %200 = vector.extract_strided_slice %35 {offsets = [0, 32], sizes = [8, 1], strides = [1, 1]} : vector<8x63xf32> to vector<8x1xf32>
    %201 = vector.broadcast %200 : vector<8x1xf32> to vector<8x256xf32>
    %202 = arith.mulf %201, %199 : vector<8x256xf32>
    %203 = arith.addf %188, %202 : vector<8x256xf32>
    %c8_80 = arith.constant 8 : index
    %c158_81 = arith.constant 158 : index
    %204 = vector.load %arg7[%c8_80, %c158_81] : memref<24x512xf32, #tpu.memory_space<vmem>>, vector<8x256xf32>
    %205 = vector.extract_strided_slice %35 {offsets = [0, 33], sizes = [8, 1], strides = [1, 1]} : vector<8x63xf32> to vector<8x1xf32>
    %206 = vector.broadcast %205 : vector<8x1xf32> to vector<8x256xf32>
    %207 = arith.mulf %206, %204 : vector<8x256xf32>
    %208 = arith.addf %193, %207 : vector<8x256xf32>
    %c8_82 = arith.constant 8 : index
    %c160_83 = arith.constant 160 : index
    %209 = vector.load %arg7[%c8_82, %c160_83] : memref<24x512xf32, #tpu.memory_space<vmem>>, vector<8x256xf32>
    %210 = vector.extract_strided_slice %35 {offsets = [0, 34], sizes = [8, 1], strides = [1, 1]} : vector<8x63xf32> to vector<8x1xf32>
    %211 = vector.broadcast %210 : vector<8x1xf32> to vector<8x256xf32>
    %212 = arith.mulf %211, %209 : vector<8x256xf32>
    %213 = arith.addf %198, %212 : vector<8x256xf32>
    %c8_84 = arith.constant 8 : index
    %c162_85 = arith.constant 162 : index
    %214 = vector.load %arg7[%c8_84, %c162_85] : memref<24x512xf32, #tpu.memory_space<vmem>>, vector<8x256xf32>
    %215 = vector.extract_strided_slice %35 {offsets = [0, 35], sizes = [8, 1], strides = [1, 1]} : vector<8x63xf32> to vector<8x1xf32>
    %216 = vector.broadcast %215 : vector<8x1xf32> to vector<8x256xf32>
    %217 = arith.mulf %216, %214 : vector<8x256xf32>
    %218 = arith.addf %203, %217 : vector<8x256xf32>
    %c10_86 = arith.constant 10 : index
    %c94_87 = arith.constant 94 : index
    %219 = vector.load %arg7[%c10_86, %c94_87] : memref<24x512xf32, #tpu.memory_space<vmem>>, vector<8x256xf32>
    %220 = vector.extract_strided_slice %35 {offsets = [0, 36], sizes = [8, 1], strides = [1, 1]} : vector<8x63xf32> to vector<8x1xf32>
    %221 = vector.broadcast %220 : vector<8x1xf32> to vector<8x256xf32>
    %222 = arith.mulf %221, %219 : vector<8x256xf32>
    %223 = arith.addf %208, %222 : vector<8x256xf32>
    %c10_88 = arith.constant 10 : index
    %c96_89 = arith.constant 96 : index
    %224 = vector.load %arg7[%c10_88, %c96_89] : memref<24x512xf32, #tpu.memory_space<vmem>>, vector<8x256xf32>
    %225 = vector.extract_strided_slice %35 {offsets = [0, 37], sizes = [8, 1], strides = [1, 1]} : vector<8x63xf32> to vector<8x1xf32>
    %226 = vector.broadcast %225 : vector<8x1xf32> to vector<8x256xf32>
    %227 = arith.mulf %226, %224 : vector<8x256xf32>
    %228 = arith.addf %213, %227 : vector<8x256xf32>
    %c10_90 = arith.constant 10 : index
    %c98_91 = arith.constant 98 : index
    %229 = vector.load %arg7[%c10_90, %c98_91] : memref<24x512xf32, #tpu.memory_space<vmem>>, vector<8x256xf32>
    %230 = vector.extract_strided_slice %35 {offsets = [0, 38], sizes = [8, 1], strides = [1, 1]} : vector<8x63xf32> to vector<8x1xf32>
    %231 = vector.broadcast %230 : vector<8x1xf32> to vector<8x256xf32>
    %232 = arith.mulf %231, %229 : vector<8x256xf32>
    %233 = arith.addf %218, %232 : vector<8x256xf32>
    %c10_92 = arith.constant 10 : index
    %c126_93 = arith.constant 126 : index
    %234 = vector.load %arg7[%c10_92, %c126_93] : memref<24x512xf32, #tpu.memory_space<vmem>>, vector<8x256xf32>
    %235 = vector.extract_strided_slice %35 {offsets = [0, 39], sizes = [8, 1], strides = [1, 1]} : vector<8x63xf32> to vector<8x1xf32>
    %236 = vector.broadcast %235 : vector<8x1xf32> to vector<8x256xf32>
    %237 = arith.mulf %236, %234 : vector<8x256xf32>
    %238 = arith.addf %223, %237 : vector<8x256xf32>
    %c10_94 = arith.constant 10 : index
    %c128_95 = arith.constant 128 : index
    %239 = vector.load %arg7[%c10_94, %c128_95] : memref<24x512xf32, #tpu.memory_space<vmem>>, vector<8x256xf32>
    %240 = vector.extract_strided_slice %35 {offsets = [0, 40], sizes = [8, 1], strides = [1, 1]} : vector<8x63xf32> to vector<8x1xf32>
    %241 = vector.broadcast %240 : vector<8x1xf32> to vector<8x256xf32>
    %242 = arith.mulf %241, %239 : vector<8x256xf32>
    %243 = arith.addf %228, %242 : vector<8x256xf32>
    %c10_96 = arith.constant 10 : index
    %c130_97 = arith.constant 130 : index
    %244 = vector.load %arg7[%c10_96, %c130_97] : memref<24x512xf32, #tpu.memory_space<vmem>>, vector<8x256xf32>
    %245 = vector.extract_strided_slice %35 {offsets = [0, 41], sizes = [8, 1], strides = [1, 1]} : vector<8x63xf32> to vector<8x1xf32>
    %246 = vector.broadcast %245 : vector<8x1xf32> to vector<8x256xf32>
    %247 = arith.mulf %246, %244 : vector<8x256xf32>
    %248 = arith.addf %233, %247 : vector<8x256xf32>
    %c10_98 = arith.constant 10 : index
    %c158_99 = arith.constant 158 : index
    %249 = vector.load %arg7[%c10_98, %c158_99] : memref<24x512xf32, #tpu.memory_space<vmem>>, vector<8x256xf32>
    %250 = vector.extract_strided_slice %35 {offsets = [0, 42], sizes = [8, 1], strides = [1, 1]} : vector<8x63xf32> to vector<8x1xf32>
    %251 = vector.broadcast %250 : vector<8x1xf32> to vector<8x256xf32>
    %252 = arith.mulf %251, %249 : vector<8x256xf32>
    %253 = arith.addf %238, %252 : vector<8x256xf32>
    %c10_100 = arith.constant 10 : index
    %c160_101 = arith.constant 160 : index
    %254 = vector.load %arg7[%c10_100, %c160_101] : memref<24x512xf32, #tpu.memory_space<vmem>>, vector<8x256xf32>
    %255 = vector.extract_strided_slice %35 {offsets = [0, 43], sizes = [8, 1], strides = [1, 1]} : vector<8x63xf32> to vector<8x1xf32>
    %256 = vector.broadcast %255 : vector<8x1xf32> to vector<8x256xf32>
    %257 = arith.mulf %256, %254 : vector<8x256xf32>
    %258 = arith.addf %243, %257 : vector<8x256xf32>
    %c10_102 = arith.constant 10 : index
    %c162_103 = arith.constant 162 : index
    %259 = vector.load %arg7[%c10_102, %c162_103] : memref<24x512xf32, #tpu.memory_space<vmem>>, vector<8x256xf32>
    %260 = vector.extract_strided_slice %35 {offsets = [0, 44], sizes = [8, 1], strides = [1, 1]} : vector<8x63xf32> to vector<8x1xf32>
    %261 = vector.broadcast %260 : vector<8x1xf32> to vector<8x256xf32>
    %262 = arith.mulf %261, %259 : vector<8x256xf32>
    %263 = arith.addf %248, %262 : vector<8x256xf32>
    %c12_104 = arith.constant 12 : index
    %c94_105 = arith.constant 94 : index
    %264 = vector.load %arg7[%c12_104, %c94_105] : memref<24x512xf32, #tpu.memory_space<vmem>>, vector<8x256xf32>
    %265 = vector.extract_strided_slice %35 {offsets = [0, 45], sizes = [8, 1], strides = [1, 1]} : vector<8x63xf32> to vector<8x1xf32>
    %266 = vector.broadcast %265 : vector<8x1xf32> to vector<8x256xf32>
    %267 = arith.mulf %266, %264 : vector<8x256xf32>
    %268 = arith.addf %253, %267 : vector<8x256xf32>
    %c12_106 = arith.constant 12 : index
    %c96_107 = arith.constant 96 : index
    %269 = vector.load %arg7[%c12_106, %c96_107] : memref<24x512xf32, #tpu.memory_space<vmem>>, vector<8x256xf32>
    %270 = vector.extract_strided_slice %35 {offsets = [0, 46], sizes = [8, 1], strides = [1, 1]} : vector<8x63xf32> to vector<8x1xf32>
    %271 = vector.broadcast %270 : vector<8x1xf32> to vector<8x256xf32>
    %272 = arith.mulf %271, %269 : vector<8x256xf32>
    %273 = arith.addf %258, %272 : vector<8x256xf32>
    %c12_108 = arith.constant 12 : index
    %c98_109 = arith.constant 98 : index
    %274 = vector.load %arg7[%c12_108, %c98_109] : memref<24x512xf32, #tpu.memory_space<vmem>>, vector<8x256xf32>
    %275 = vector.extract_strided_slice %35 {offsets = [0, 47], sizes = [8, 1], strides = [1, 1]} : vector<8x63xf32> to vector<8x1xf32>
    %276 = vector.broadcast %275 : vector<8x1xf32> to vector<8x256xf32>
    %277 = arith.mulf %276, %274 : vector<8x256xf32>
    %278 = arith.addf %263, %277 : vector<8x256xf32>
    %c12_110 = arith.constant 12 : index
    %c126_111 = arith.constant 126 : index
    %279 = vector.load %arg7[%c12_110, %c126_111] : memref<24x512xf32, #tpu.memory_space<vmem>>, vector<8x256xf32>
    %280 = vector.extract_strided_slice %35 {offsets = [0, 48], sizes = [8, 1], strides = [1, 1]} : vector<8x63xf32> to vector<8x1xf32>
    %281 = vector.broadcast %280 : vector<8x1xf32> to vector<8x256xf32>
    %282 = arith.mulf %281, %279 : vector<8x256xf32>
    %283 = arith.addf %268, %282 : vector<8x256xf32>
    %c12_112 = arith.constant 12 : index
    %c128_113 = arith.constant 128 : index
    %284 = vector.load %arg7[%c12_112, %c128_113] : memref<24x512xf32, #tpu.memory_space<vmem>>, vector<8x256xf32>
    %285 = vector.extract_strided_slice %35 {offsets = [0, 49], sizes = [8, 1], strides = [1, 1]} : vector<8x63xf32> to vector<8x1xf32>
    %286 = vector.broadcast %285 : vector<8x1xf32> to vector<8x256xf32>
    %287 = arith.mulf %286, %284 : vector<8x256xf32>
    %288 = arith.addf %273, %287 : vector<8x256xf32>
    %c12_114 = arith.constant 12 : index
    %c130_115 = arith.constant 130 : index
    %289 = vector.load %arg7[%c12_114, %c130_115] : memref<24x512xf32, #tpu.memory_space<vmem>>, vector<8x256xf32>
    %290 = vector.extract_strided_slice %35 {offsets = [0, 50], sizes = [8, 1], strides = [1, 1]} : vector<8x63xf32> to vector<8x1xf32>
    %291 = vector.broadcast %290 : vector<8x1xf32> to vector<8x256xf32>
    %292 = arith.mulf %291, %289 : vector<8x256xf32>
    %293 = arith.addf %278, %292 : vector<8x256xf32>
    %c12_116 = arith.constant 12 : index
    %c158_117 = arith.constant 158 : index
    %294 = vector.load %arg7[%c12_116, %c158_117] : memref<24x512xf32, #tpu.memory_space<vmem>>, vector<8x256xf32>
    %295 = vector.extract_strided_slice %35 {offsets = [0, 51], sizes = [8, 1], strides = [1, 1]} : vector<8x63xf32> to vector<8x1xf32>
    %296 = vector.broadcast %295 : vector<8x1xf32> to vector<8x256xf32>
    %297 = arith.mulf %296, %294 : vector<8x256xf32>
    %298 = arith.addf %283, %297 : vector<8x256xf32>
    %c12_118 = arith.constant 12 : index
    %c160_119 = arith.constant 160 : index
    %299 = vector.load %arg7[%c12_118, %c160_119] : memref<24x512xf32, #tpu.memory_space<vmem>>, vector<8x256xf32>
    %300 = vector.extract_strided_slice %35 {offsets = [0, 52], sizes = [8, 1], strides = [1, 1]} : vector<8x63xf32> to vector<8x1xf32>
    %301 = vector.broadcast %300 : vector<8x1xf32> to vector<8x256xf32>
    %302 = arith.mulf %301, %299 : vector<8x256xf32>
    %303 = arith.addf %288, %302 : vector<8x256xf32>
    %c12_120 = arith.constant 12 : index
    %c162_121 = arith.constant 162 : index
    %304 = vector.load %arg7[%c12_120, %c162_121] : memref<24x512xf32, #tpu.memory_space<vmem>>, vector<8x256xf32>
    %305 = vector.extract_strided_slice %35 {offsets = [0, 53], sizes = [8, 1], strides = [1, 1]} : vector<8x63xf32> to vector<8x1xf32>
    %306 = vector.broadcast %305 : vector<8x1xf32> to vector<8x256xf32>
    %307 = arith.mulf %306, %304 : vector<8x256xf32>
    %308 = arith.addf %293, %307 : vector<8x256xf32>
    %c14_122 = arith.constant 14 : index
    %c94_123 = arith.constant 94 : index
    %309 = vector.load %arg7[%c14_122, %c94_123] : memref<24x512xf32, #tpu.memory_space<vmem>>, vector<8x256xf32>
    %310 = vector.extract_strided_slice %35 {offsets = [0, 54], sizes = [8, 1], strides = [1, 1]} : vector<8x63xf32> to vector<8x1xf32>
    %311 = vector.broadcast %310 : vector<8x1xf32> to vector<8x256xf32>
    %312 = arith.mulf %311, %309 : vector<8x256xf32>
    %313 = arith.addf %298, %312 : vector<8x256xf32>
    %c14_124 = arith.constant 14 : index
    %c96_125 = arith.constant 96 : index
    %314 = vector.load %arg7[%c14_124, %c96_125] : memref<24x512xf32, #tpu.memory_space<vmem>>, vector<8x256xf32>
    %315 = vector.extract_strided_slice %35 {offsets = [0, 55], sizes = [8, 1], strides = [1, 1]} : vector<8x63xf32> to vector<8x1xf32>
    %316 = vector.broadcast %315 : vector<8x1xf32> to vector<8x256xf32>
    %317 = arith.mulf %316, %314 : vector<8x256xf32>
    %318 = arith.addf %303, %317 : vector<8x256xf32>
    %c14_126 = arith.constant 14 : index
    %c98_127 = arith.constant 98 : index
    %319 = vector.load %arg7[%c14_126, %c98_127] : memref<24x512xf32, #tpu.memory_space<vmem>>, vector<8x256xf32>
    %320 = vector.extract_strided_slice %35 {offsets = [0, 56], sizes = [8, 1], strides = [1, 1]} : vector<8x63xf32> to vector<8x1xf32>
    %321 = vector.broadcast %320 : vector<8x1xf32> to vector<8x256xf32>
    %322 = arith.mulf %321, %319 : vector<8x256xf32>
    %323 = arith.addf %308, %322 : vector<8x256xf32>
    %c14_128 = arith.constant 14 : index
    %c126_129 = arith.constant 126 : index
    %324 = vector.load %arg7[%c14_128, %c126_129] : memref<24x512xf32, #tpu.memory_space<vmem>>, vector<8x256xf32>
    %325 = vector.extract_strided_slice %35 {offsets = [0, 57], sizes = [8, 1], strides = [1, 1]} : vector<8x63xf32> to vector<8x1xf32>
    %326 = vector.broadcast %325 : vector<8x1xf32> to vector<8x256xf32>
    %327 = arith.mulf %326, %324 : vector<8x256xf32>
    %328 = arith.addf %313, %327 : vector<8x256xf32>
    %c14_130 = arith.constant 14 : index
    %c128_131 = arith.constant 128 : index
    %329 = vector.load %arg7[%c14_130, %c128_131] : memref<24x512xf32, #tpu.memory_space<vmem>>, vector<8x256xf32>
    %330 = vector.extract_strided_slice %35 {offsets = [0, 58], sizes = [8, 1], strides = [1, 1]} : vector<8x63xf32> to vector<8x1xf32>
    %331 = vector.broadcast %330 : vector<8x1xf32> to vector<8x256xf32>
    %332 = arith.mulf %331, %329 : vector<8x256xf32>
    %333 = arith.addf %318, %332 : vector<8x256xf32>
    %c14_132 = arith.constant 14 : index
    %c130_133 = arith.constant 130 : index
    %334 = vector.load %arg7[%c14_132, %c130_133] : memref<24x512xf32, #tpu.memory_space<vmem>>, vector<8x256xf32>
    %335 = vector.extract_strided_slice %35 {offsets = [0, 59], sizes = [8, 1], strides = [1, 1]} : vector<8x63xf32> to vector<8x1xf32>
    %336 = vector.broadcast %335 : vector<8x1xf32> to vector<8x256xf32>
    %337 = arith.mulf %336, %334 : vector<8x256xf32>
    %338 = arith.addf %323, %337 : vector<8x256xf32>
    %c14_134 = arith.constant 14 : index
    %c158_135 = arith.constant 158 : index
    %339 = vector.load %arg7[%c14_134, %c158_135] : memref<24x512xf32, #tpu.memory_space<vmem>>, vector<8x256xf32>
    %340 = vector.extract_strided_slice %35 {offsets = [0, 60], sizes = [8, 1], strides = [1, 1]} : vector<8x63xf32> to vector<8x1xf32>
    %341 = vector.broadcast %340 : vector<8x1xf32> to vector<8x256xf32>
    %342 = arith.mulf %341, %339 : vector<8x256xf32>
    %343 = arith.addf %328, %342 : vector<8x256xf32>
    %c14_136 = arith.constant 14 : index
    %c160_137 = arith.constant 160 : index
    %344 = vector.load %arg7[%c14_136, %c160_137] : memref<24x512xf32, #tpu.memory_space<vmem>>, vector<8x256xf32>
    %345 = vector.extract_strided_slice %35 {offsets = [0, 61], sizes = [8, 1], strides = [1, 1]} : vector<8x63xf32> to vector<8x1xf32>
    %346 = vector.broadcast %345 : vector<8x1xf32> to vector<8x256xf32>
    %347 = arith.mulf %346, %344 : vector<8x256xf32>
    %348 = arith.addf %333, %347 : vector<8x256xf32>
    %c14_138 = arith.constant 14 : index
    %c162_139 = arith.constant 162 : index
    %349 = vector.load %arg7[%c14_138, %c162_139] : memref<24x512xf32, #tpu.memory_space<vmem>>, vector<8x256xf32>
    %350 = vector.extract_strided_slice %35 {offsets = [0, 62], sizes = [8, 1], strides = [1, 1]} : vector<8x63xf32> to vector<8x1xf32>
    %351 = vector.broadcast %350 : vector<8x1xf32> to vector<8x256xf32>
    %352 = arith.mulf %351, %349 : vector<8x256xf32>
    %353 = arith.addf %338, %352 : vector<8x256xf32>
    %c0_140 = arith.constant 0 : index
    %c0_141 = arith.constant 0 : index
    %354 = vector.load %arg4[%c0_140, %c0_141] : memref<3x256xf32, #tpu.memory_space<vmem>>, vector<1x256xf32>
    %355 = vector.broadcast %354 : vector<1x256xf32> to vector<8x256xf32>
    %356 = arith.mulf %343, %355 : vector<8x256xf32>
    %357 = arith.addf %356, %348 : vector<8x256xf32>
    %c2_142 = arith.constant 2 : index
    %c0_143 = arith.constant 0 : index
    %358 = vector.load %arg4[%c2_142, %c0_143] : memref<3x256xf32, #tpu.memory_space<vmem>>, vector<1x256xf32>
    %359 = vector.broadcast %358 : vector<1x256xf32> to vector<8x256xf32>
    %360 = arith.mulf %353, %359 : vector<8x256xf32>
    %361 = arith.addf %357, %360 : vector<8x256xf32>
    %c0_144 = arith.constant 0 : index
    %c0_145 = arith.constant 0 : index
    %c0_146 = arith.constant 0 : index
    %362 = vector.load %arg5[%c0_144, %c0_145, %c0_146] : memref<1x8x256xf32, #tpu.memory_space<vmem>>, vector<1x8x256xf32>
    %363 = vector.shape_cast %362 : vector<1x8x256xf32> to vector<8x256xf32>
    %364 = arith.addf %361, %363 : vector<8x256xf32>
    %c0_147 = arith.constant 0 : index
    %c0_148 = arith.constant 0 : index
    %c0_149 = arith.constant 0 : index
    %365 = vector.load %arg6[%c0_147, %c0_148, %c0_149] : memref<1x8x256xf32, #tpu.memory_space<vmem>>, vector<1x8x256xf32>
    %366 = vector.shape_cast %365 : vector<1x8x256xf32> to vector<8x256xf32>
    %367 = vector.shape_cast %364 : vector<8x256xf32> to vector<1x8x256xf32>
    tpu.vector_store %arg6[%c0_147, %c0_148, %c0_149], %367 {strides = array<i32>} : memref<1x8x256xf32, #tpu.memory_space<vmem>>, vector<1x8x256xf32>,
    return
  }
  func.func @transform_0(%arg0: i32) -> (i32, i32) {
    %c0_i32 = arith.constant 0 : i32
    %c0_i32_0 = arith.constant 0 : i32
    %c0_i32_1 = arith.constant 0 : i32
    return %c0_i32, %c0_i32_0 : i32, i32
  }
  func.func @transform_1(%arg0: i32) -> (i32, i32) {
    %c0_i32 = arith.constant 0 : i32
    %c0_i32_0 = arith.constant 0 : i32
    %c0_i32_1 = arith.constant 0 : i32
    return %c0_i32, %c0_i32_0 : i32, i32
  }
  func.func @transform_2(%arg0: i32) -> (i32, i32) {
    %c0_i32 = arith.constant 0 : i32
    %c0_i32_0 = arith.constant 0 : i32
    %c0_i32_1 = arith.constant 0 : i32
    return %c0_i32, %c0_i32_0 : i32, i32
  }
  func.func @transform_3(%arg0: i32) -> (i32, i32) {
    %c0_i32 = arith.constant 0 : i32
    %c0_i32_0 = arith.constant 0 : i32
    %c0_i32_1 = arith.constant 0 : i32
    return %c0_i32, %c0_i32_0 : i32, i32
  }
  func.func @transform_4(%arg0: i32) -> (i32, i32, i32) {
    %c0_i32 = arith.constant 0 : i32
    %c0_i32_0 = arith.constant 0 : i32
    %c0_i32_1 = arith.constant 0 : i32
    return %arg0, %c0_i32, %c0_i32_0 : i32, i32, i32
  }
  func.func @transform_5(%arg0: i32) -> (i32, i32, i32) {
    %c0_i32 = arith.constant 0 : i32
    %c0_i32_0 = arith.constant 0 : i32
    %c0_i32_1 = arith.constant 0 : i32
    return %arg0, %c0_i32, %c0_i32_0 : i32, i32, i32
  }
}

</mosaic_0001>

<llo_original>
// kernel: binary_dil_group_conv.1
$region0: #{binary_dil_group_conv.1}
  #allocation0 [shape = 'u32[]', space=smem, size = 0x4, offset = 0x4, fixed_abs, tag = 'smem constant byte address 0x4 - core index']
  #allocation1 [shape = 'u32[72,128]{1,0:T(1,128)}', space=vmem, size = 0x9000, scoped, tag = 'internal scratch']
  #allocation2 [shape = 'f32[24,512]{1,0:T(8,128)}', space=vmem, size = 0xc000, scoped, tag = 'scratch operand']
  %s0 = inlined_call_operand.vmem [shape: f32[8,1], index: 0, kind: input, shape index: {}]
  %s1 = inlined_call_operand.vmem [shape: f32[8,1], index: 1, kind: input, shape index: {}]
  %s2 = inlined_call_operand.vmem [shape: f32[8,63], index: 2, kind: input, shape index: {}]
  %s3 = inlined_call_operand.vmem [shape: f32[3,256], index: 3, kind: input, shape index: {}]
  %s4 = inlined_call_operand.vmem [shape: f32[2,8,256], index: 4, kind: input, shape index: {}]
  %s5 = inlined_call_operand.vmem [shape: f32[2,8,256], index: 5, kind: output, shape index: {}]
  %s6 = sld [smem:[#allocation0]]
  $region53: #{binary_dil_group_conv.1} parent=0
    _
  %s8 = ssub.s32 1, %s6
  %s9 = scalar_select 0, %s8, %s6
  loop: start=0, step=1, limit=4
  $region2: #{binary_dil_group_conv.1} parent=0 // loop_pre_header
    _
  $region3: #{binary_dil_group_conv.1} parent=0 // loop_header
    %s11 = sphi 0, %s15
    %p12 = scmp.ge.s32.totalorder %s11, 4
    %s19 = sphi 0, %s19
    %s21 = sphi 0, %s19
    %s22 = sphi 0, %s21
    %s36 = sphi 0, %s22
    %s40 = sphi 0, %s40
    %s42 = sphi 0, %s40
    %s43 = sphi 0, %s42
    %s57 = sphi 0, %s43
    %s61 = sphi 0, %s61
    %s63 = sphi 0, %s61
    %s64 = sphi 0, %s63
    %s78 = sphi 0, %s64
    %s82 = sphi 0, %s82
    %s84 = sphi 0, %s82
    %s85 = sphi 0, %s84
    %s99 = sphi 0, %s85
    %s105 = sphi 0, %s107
    %s108 = sphi 0, %s105
    %s109 = sphi 0, %s108
    %s125 = sphi 0, %s109
    %s131 = sphi 0, %s133
    %s134 = sphi 0, %s131
    %s135 = sphi 0, %s134
    %s151 = sphi 0, %s135
  $region4: #{binary_dil_group_conv.1} parent=0 // loop_header_branch
    %14 = sbr.rel (%p12) target = $region8
  $region5: #{binary_dil_group_conv.1} parent=0 // loop_body
    %s16 = ssub.s32 %s11, 1
    %s17 = ssub.s32 %s11, 2
    %s18 = sadd.s32 %s11, 1
    %s20 = sadd.s32 %s19, 1
    %p23 = scmp.eq.s32.totalorder %s11, 1
    %p24 = scmp.ne.s32.totalorder %s19, %s21
    %p25 = scmp.eq.s32.totalorder %s11, 0
    %p26 = por %p24, %p25
    %p27 = scmp.ne.s32.totalorder %s19, %s21
    %p28 = scmp.eq.s32.totalorder %s16, 1
    %p29 = por %p27, %p28
    %p30 = scmp.ne.s32.totalorder %s21, %s22
    %p31 = scmp.eq.s32.totalorder %s16, 0
    %p32 = por %p30, %p31
    %p33 = scmp.ne.s32.totalorder %s21, %s22
    %p34 = scmp.eq.s32.totalorder %s17, 1
    %p35 = por %p33, %p34
    %p37 = scmp.ne.s32.totalorder %s22, %s36
    %p38 = scmp.eq.s32.totalorder %s17, 0
    %p39 = por %p37, %p38
    %s41 = sadd.s32 %s40, 1
    %p44 = scmp.eq.s32.totalorder %s11, 1
    %p45 = scmp.ne.s32.totalorder %s40, %s42
    %p46 = scmp.eq.s32.totalorder %s11, 0
    %p47 = por %p45, %p46
    %p48 = scmp.ne.s32.totalorder %s40, %s42
    %p49 = scmp.eq.s32.totalorder %s16, 1
    %p50 = por %p48, %p49
    %p51 = scmp.ne.s32.totalorder %s42, %s43
    %p52 = scmp.eq.s32.totalorder %s16, 0
    %p53 = por %p51, %p52
    %p54 = scmp.ne.s32.totalorder %s42, %s43
    %p55 = scmp.eq.s32.totalorder %s17, 1
    %p56 = por %p54, %p55
    %p58 = scmp.ne.s32.totalorder %s43, %s57
    %p59 = scmp.eq.s32.totalorder %s17, 0
    %p60 = por %p58, %p59
    %s62 = sadd.s32 %s61, 1
    %p65 = scmp.eq.s32.totalorder %s11, 1
    %p66 = scmp.ne.s32.totalorder %s61, %s63
    %p67 = scmp.eq.s32.totalorder %s11, 0
    %p68 = por %p66, %p67
    %p69 = scmp.ne.s32.totalorder %s61, %s63
    %p70 = scmp.eq.s32.totalorder %s16, 1
    %p71 = por %p69, %p70
    %p72 = scmp.ne.s32.totalorder %s63, %s64
    %p73 = scmp.eq.s32.totalorder %s16, 0
    %p74 = por %p72, %p73
    %p75 = scmp.ne.s32.totalorder %s63, %s64
    %p76 = scmp.eq.s32.totalorder %s17, 1
    %p77 = por %p75, %p76
    %p79 = scmp.ne.s32.totalorder %s64, %s78
    %p80 = scmp.eq.s32.totalorder %s17, 0
    %p81 = por %p79, %p80
    %s83 = sadd.s32 %s82, 1
    %p86 = scmp.eq.s32.totalorder %s11, 1
    %p87 = scmp.ne.s32.totalorder %s82, %s84
    %p88 = scmp.eq.s32.totalorder %s11, 0
    %p89 = por %p87, %p88
    %p90 = scmp.ne.s32.totalorder %s82, %s84
    %p91 = scmp.eq.s32.totalorder %s16, 1
    %p92 = por %p90, %p91
    %p93 = scmp.ne.s32.totalorder %s84, %s85
    %p94 = scmp.eq.s32.totalorder %s16, 0
    %p95 = por %p93, %p94
    %p96 = scmp.ne.s32.totalorder %s84, %s85
    %p97 = scmp.eq.s32.totalorder %s17, 1
    %p98 = por %p96, %p97
    %p100 = scmp.ne.s32.totalorder %s85, %s99
    %p101 = scmp.eq.s32.totalorder %s17, 0
    %p102 = por %p100, %p101
    %s103 = ssub.s32 %s11, %s18
    %p104 = scmp.eq.s32.totalorder %s103, 0
    %s106 = sadd.s32 %s105, 1
    %s107 = scalar_select %p104, %s105, %s106
    %p110 = pneg %p104
    %p111 = scmp.eq.s32.totalorder %s11, 1
    %p112 = por %p110, %p111
    %p113 = scmp.ne.s32.totalorder %s105, %s108
    %p114 = scmp.eq.s32.totalorder %s11, 0
    %p115 = por %p113, %p114
    %p116 = scmp.ne.s32.totalorder %s105, %s108
    %p117 = scmp.eq.s32.totalorder %s16, 1
    %p118 = por %p116, %p117
    %p119 = scmp.ne.s32.totalorder %s108, %s109
    %p120 = scmp.eq.s32.totalorder %s16, 0
    %p121 = por %p119, %p120
    %p122 = scmp.ne.s32.totalorder %s108, %s109
    %p123 = scmp.eq.s32.totalorder %s17, 1
    %p124 = por %p122, %p123
    %p126 = scmp.ne.s32.totalorder %s109, %s125
    %p127 = scmp.eq.s32.totalorder %s17, 0
    %p128 = por %p126, %p127
    %s129 = ssub.s32 %s11, %s18
    %p130 = scmp.eq.s32.totalorder %s129, 0
    %s132 = sadd.s32 %s131, 1
    %s133 = scalar_select %p130, %s131, %s132
    %p136 = pneg %p130
    %p137 = scmp.eq.s32.totalorder %s11, 1
    %p138 = por %p136, %p137
    %p139 = scmp.ne.s32.totalorder %s131, %s134
    %p140 = scmp.eq.s32.totalorder %s11, 0
    %p141 = por %p139, %p140
    %p142 = scmp.ne.s32.totalorder %s131, %s134
    %p143 = scmp.eq.s32.totalorder %s16, 1
    %p144 = por %p142, %p143
    %p145 = scmp.ne.s32.totalorder %s134, %s135
    %p146 = scmp.eq.s32.totalorder %s16, 0
    %p147 = por %p145, %p146
    %p148 = scmp.ne.s32.totalorder %s134, %s135
    %p149 = scmp.eq.s32.totalorder %s17, 1
    %p150 = por %p148, %p149
    %p152 = scmp.ne.s32.totalorder %s135, %s151
    %p153 = scmp.eq.s32.totalorder %s17, 0
    %p154 = por %p152, %p153
    %p155 = scmp.le.s32.totalorder 1, %s11
    %p156 = scmp.lt.s32.totalorder %s11, 3
    %p157 = pnand %p155, %p156
    %p158 = pneg %p157
    // Predicated region
    $region9: #{binary_dil_group_conv.1} parent=5 // pred_check
      _
    $region10: #{binary_dil_group_conv.1} parent=5 // pred_check_branch
      %160 = sbr.rel (%p157) target = $region12
    $region11: #{binary_dil_group_conv.1} parent=5 // pred_region
      %s161 = ssub.s32 %s11, 1
      // Predicated region
      $region13: #{binary_dil_group_conv.1} parent=11 // pred_check
        %p162 = pneg %p32
      $region14: #{binary_dil_group_conv.1} parent=11 // pred_check_branch
        %164 = sbr.rel (%p162) target = $region16
      $region15: #{binary_dil_group_conv.1} parent=11 // pred_region
        _
      $region16: #{binary_dil_group_conv.1} parent=11 // pred_fallthru
        _
      // Predicated region
      $region17: #{binary_dil_group_conv.1} parent=11 // pred_check
        %p165 = pneg %p53
      $region18: #{binary_dil_group_conv.1} parent=11 // pred_check_branch
        %167 = sbr.rel (%p165) target = $region20
      $region19: #{binary_dil_group_conv.1} parent=11 // pred_region
        _
      $region20: #{binary_dil_group_conv.1} parent=11 // pred_fallthru
        _
      // Predicated region
      $region21: #{binary_dil_group_conv.1} parent=11 // pred_check
        %p168 = pneg %p74
      $region22: #{binary_dil_group_conv.1} parent=11 // pred_check_branch
        %170 = sbr.rel (%p168) target = $region24
      $region23: #{binary_dil_group_conv.1} parent=11 // pred_region
        _
      $region24: #{binary_dil_group_conv.1} parent=11 // pred_fallthru
        _
      // Predicated region
      $region25: #{binary_dil_group_conv.1} parent=11 // pred_check
        %p171 = pneg %p95
      $region26: #{binary_dil_group_conv.1} parent=11 // pred_check_branch
        %173 = sbr.rel (%p171) target = $region28
      $region27: #{binary_dil_group_conv.1} parent=11 // pred_region
        _
      $region28: #{binary_dil_group_conv.1} parent=11 // pred_fallthru
        _
    $region12: #{binary_dil_group_conv.1} parent=5 // pred_fallthru
      _
    %p174 = scmp.lt.s32.totalorder %s11, 2
    // Predicated region
    $region29: #{binary_dil_group_conv.1} parent=5 // pred_check
      %p175 = pneg %p174
    $region30: #{binary_dil_group_conv.1} parent=5 // pred_check_branch
      %177 = sbr.rel (%p175) target = $region32
    $region31: #{binary_dil_group_conv.1} parent=5 // pred_region
      // Predicated region
      $region33: #{binary_dil_group_conv.1} parent=31 // pred_check
        %p178 = pneg %p115
      $region34: #{binary_dil_group_conv.1} parent=31 // pred_check_branch
        %180 = sbr.rel (%p178) target = $region36
      $region35: #{binary_dil_group_conv.1} parent=31 // pred_region
        %p181 = scmp.lt.s32.totalorder %s11, 1
        %s182 = scalar_select %p181, %s11, 1
        %s183 = smul.addr %s182, 2
        %s184 = smul.addr %s183, 8
        %s185 = scalar_lea.vmem %s4, %s184
      $region36: #{binary_dil_group_conv.1} parent=31 // pred_fallthru
        _
    $region32: #{binary_dil_group_conv.1} parent=5 // pred_fallthru
      _
    %p186 = scmp.le.s32.totalorder 1, %s11
    %p187 = scmp.lt.s32.totalorder %s11, 3
    %p188 = pnand %p186, %p187
    %p189 = pneg %p188
    // Predicated region
    $region37: #{binary_dil_group_conv.1} parent=5 // pred_check
      _
    $region38: #{binary_dil_group_conv.1} parent=5 // pred_check_branch
      %191 = sbr.rel (%p188) target = $region40
    $region39: #{binary_dil_group_conv.1} parent=5 // pred_region
      %s192 = ssub.s32 %s11, 1
      %p193 = pneg %p32
      %p194 = pneg %p29
      %p195 = pneg %p53
      %p196 = pneg %p50
      %p197 = pneg %p74
      %p198 = pneg %p71
      %p199 = pneg %p95
      %p200 = pneg %p92
      %p201 = scmp.lt.s32.totalorder %s16, 1
      %s202 = scalar_select %p201, %s16, 1
      %s203 = smul.addr %s202, 2
      %s204 = smul.addr %s203, 8
      %s205 = scalar_lea.vmem %s4, %s204
      %p206 = pneg %p121
      %p207 = pneg %p118
      %p208 = pneg %p147
      %p209 = pneg %p144
      %p210 = scmp.lt.s32.totalorder %s16, 1
      %s211 = scalar_select %p210, %s16, 1
      %s212 = smul.addr %s211, 2
      %s213 = smul.addr %s212, 8
      %s214 = scalar_lea.vmem %s5, %s213
      %p215 = scmp.lt.s32.totalorder %s16, 1
      %s216 = scalar_select %p215, %s16, 1
      %s217 = smul.addr %s216, 2
      %s218 = smul.addr %s217, 8
      %s219 = scalar_lea.vmem %s4, %s218
      %p220 = scmp.lt.s32.totalorder %s16, 1
      %s221 = scalar_select %p220, %s16, 1
      %s222 = smul.addr %s221, 2
      %s223 = smul.addr %s222, 8
      %s224 = scalar_lea.vmem %s5, %s223
      %225 = vst [vmem:[#allocation2] sm:$0xff] 0.0
      %226 = vst [vmem:[#allocation2 + $0x8] sm:$0xff] 0.0
      %227 = vst [vmem:[#allocation2 + $0x10] sm:$0xff] 0.0
      %228 = vst [vmem:[#allocation2 + $0x18] sm:$0xff] 0.0
      %229 = vst [vmem:[#allocation2 + $0x20] sm:$0xff] 0.0
      %230 = vst [vmem:[#allocation2 + $0x28] sm:$0xff] 0.0
      %231 = vst [vmem:[#allocation2 + $0x30] sm:$0xff] 0.0
      %232 = vst [vmem:[#allocation2 + $0x38] sm:$0xff] 0.0
      %233 = vst [vmem:[#allocation2 + $0x40] sm:$0xff] 0.0
      %234 = vst [vmem:[#allocation2 + $0x48] sm:$0xff] 0.0
      %235 = vst [vmem:[#allocation2 + $0x50] sm:$0xff] 0.0
      %236 = vst [vmem:[#allocation2 + $0x58] sm:$0xff] 0.0
      %v237 = vld [vmem:[%s219] sm:$0xff]
      %v238 = vld [vmem:[%s219 + $0x8] sm:$0xff]
      %v239 = vld [vmem:[%s0] sm:$0xff]
      %241 = vset.pattern.permute.xlu0 0
      %242 = vperm.xlu0 %241, %v239
      %v243 = vpop.permute.xlu0 %242
      %v245 = vmul.f32 %v237, %v243
      %v246 = vmul.f32 %v238, %v243
      %v247 = vld [vmem:[%s1] sm:$0xff]
      %249 = vset.pattern.permute.xlu0 0
      %250 = vperm.xlu0 %249, %v247
      %v251 = vpop.permute.xlu0 %250
      %v253 = vadd.f32 %v245, %v251
      %v254 = vadd.f32 %v246, %v251
      %vm255 = vcmp.gt.f32.partialorder %v253, 0.0
      %vm256 = vcmp.gt.f32.partialorder %v254, 0.0
      %vm257 = vcmp.lt.f32.partialorder %v253, 0.0
      %vm258 = vcmp.lt.f32.partialorder %v254, 0.0
      %v259 = vsel %vm257, -1.0, 0.0
      %v260 = vsel %vm258, -1.0, 0.0
      %v261 = vsel %vm255, 1.0, %v259
      %v262 = vsel %vm256, 1.0, %v260
      %v265 = vrot.slane %v262, 7
      %vm266 = vcmask 1040384
      %v267 = vsel %vm266, %v261, %v265
      %v269 = vlaneseq
      %vm270 = vcmp.ge.s32.totalorder %v269, 0
      %vm271 = vcmp.lt.s32.totalorder %v269, 256
      %vm272 = vmand %vm270, %vm271
      %s273 = scalar_lea.vmem [#allocation2], 40
      %274 = vst.msk [vmem:[%s273] ss:$8 sm:$0x3] %vm272, %v267
      %275 = vst.msk [vmem:[%s273] ss:$8 sm:$0x0] %vm272, %v267
      %276 = vst [vmem:[#allocation1] sm:$0xff] %v261
      %277 = vst [vmem:[#allocation1 + $0x9] sm:$0xff] %v262
      %s278 = scalar_lea.vmem [#allocation1], 4
      %v279 = vld [vmem:[%s278] ss:$9 sm:$0xff]
      %s281 = scalar_lea.vmem [#allocation2], 41
      %282 = vst.msk [vmem:[%s281] ss:$8 sm:$0x3] %vm272, %v279
      %283 = vst.msk [vmem:[%s281] ss:$8 sm:$0x0] %vm272, %v279
      %284 = vst [vmem:[#allocation1] sm:$0xff] %v261
      %285 = vst [vmem:[#allocation1 + $0x9] sm:$0xff] %v262
      %s286 = scalar_lea.vmem [#allocation1], 1
      %v287 = vld [vmem:[%s286] ss:$9 sm:$0xff]
      %s289 = scalar_lea.vmem [#allocation2], 42
      %290 = vst.msk [vmem:[%s289] ss:$8 sm:$0x3] %vm272, %v287
      %291 = vst.msk [vmem:[%s289] ss:$8 sm:$0x0] %vm272, %v287
      %292 = vst [vmem:[#allocation1] sm:$0xff] %v261
      %293 = vst [vmem:[#allocation1 + $0x9] sm:$0xff] %v262
      %s294 = scalar_lea.vmem [#allocation1], 5
      %v295 = vld [vmem:[%s294] ss:$9 sm:$0xff]
      %s297 = scalar_lea.vmem [#allocation2], 43
      %298 = vst.msk [vmem:[%s297] ss:$8 sm:$0x3] %vm272, %v295
      %299 = vst.msk [vmem:[%s297] ss:$8 sm:$0x0] %vm272, %v295
      %300 = vst [vmem:[#allocation1] sm:$0xff] %v261
      %301 = vst [vmem:[#allocation1 + $0x9] sm:$0xff] %v262
      %s302 = scalar_lea.vmem [#allocation1], 2
      %v303 = vld [vmem:[%s302] ss:$9 sm:$0xff]
      %s305 = scalar_lea.vmem [#allocation2], 44
      %306 = vst.msk [vmem:[%s305] ss:$8 sm:$0x3] %vm272, %v303
      %307 = vst.msk [vmem:[%s305] ss:$8 sm:$0x0] %vm272, %v303
      %308 = vst [vmem:[#allocation1] sm:$0xff] %v261
      %309 = vst [vmem:[#allocation1 + $0x9] sm:$0xff] %v262
      %s310 = scalar_lea.vmem [#allocation1], 6
      %v311 = vld [vmem:[%s310] ss:$9 sm:$0xff]
      %s313 = scalar_lea.vmem [#allocation2], 45
      %314 = vst.msk [vmem:[%s313] ss:$8 sm:$0x3] %vm272, %v311
      %315 = vst.msk [vmem:[%s313] ss:$8 sm:$0x0] %vm272, %v311
      %316 = vst [vmem:[#allocation1] sm:$0xff] %v261
      %317 = vst [vmem:[#allocation1 + $0x9] sm:$0xff] %v262
      %s318 = scalar_lea.vmem [#allocation1], 3
      %v319 = vld [vmem:[%s318] ss:$9 sm:$0xff]
      %s321 = scalar_lea.vmem [#allocation2], 46
      %322 = vst.msk [vmem:[%s321] ss:$8 sm:$0x3] %vm272, %v319
      %323 = vst.msk [vmem:[%s321] ss:$8 sm:$0x0] %vm272, %v319
      %324 = vst [vmem:[#allocation1] sm:$0xff] %v261
      %325 = vst [vmem:[#allocation1 + $0x9] sm:$0xff] %v262
      %s326 = scalar_lea.vmem [#allocation1], 7
      %v327 = vld [vmem:[%s326] ss:$9 sm:$0xff]
      %s329 = scalar_lea.vmem [#allocation2], 47
      %330 = vst.msk [vmem:[%s329] ss:$8 sm:$0x3] %vm272, %v327
      %331 = vst.msk [vmem:[%s329] ss:$8 sm:$0x0] %vm272, %v327
      %v332 = vld [vmem:[%s2] sm:$0xff]
      %v333 = vld [vmem:[#allocation2] sm:$0xfc]
      %v334 = vld [vmem:[#allocation2 + $0x8] sm:$0xfc]
      %v335 = vld [vmem:[#allocation2 + $0x10] sm:$0xfc]
      %v336 = vld [vmem:[#allocation2 + $0x20] sm:$0x3]
      %v337 = vld [vmem:[#allocation2 + $0x28] sm:$0x3]
      %v338 = vld [vmem:[#allocation2 + $0x30] sm:$0x3]
      %340 = vset.pattern.permute.xlu0 0
      %341 = vperm.xlu0 %340, %v332
      %v342 = vpop.permute.xlu0 %341
      %vm350 = vcmask 1045504
      %v351 = vrot.slane %v333, 2
      %v352 = vrot.slane %v336, 2
      %v353 = vsel %vm350, %v351, %v352
      %v354 = vrot.slane %v334, 2
      %v355 = vrot.slane %v337, 2
      %v356 = vsel %vm350, %v354, %v355
      %v357 = vrot.slane %v335, 2
      %v358 = vrot.slane %v338, 2
      %v359 = vsel %vm350, %v357, %v358
      %360 = vrot.lane.b32.xlu0 %v353, 34
      %v361 = vpop.permute.xlu0 %360
      %362 = vrot.lane.b32.xlu0 %v356, 34
      %v363 = vpop.permute.xlu0 %362
      %364 = vrot.lane.b32.xlu0 %v359, 34
      %v365 = vpop.permute.xlu0 %364
      %vm366 = vcmask 277504
      %v367 = vsel %vm366, %v361, %v363
      %v368 = vsel %vm366, %v363, %v365
      %v371 = vmul.f32 %v342, %v367
      %v372 = vmul.f32 %v342, %v368
      %v373 = vadd.f32 %v371, 0.0
      %v374 = vadd.f32 %v372, 0.0
      %375 = vset.pattern.permute.xlu0 1
      %376 = vperm.xlu0 %375, %v332
      %v377 = vpop.permute.xlu0 %376
      %379 = vrot.lane.b32.xlu0 %v353, 32
      %v380 = vpop.permute.xlu0 %379
      %381 = vrot.lane.b32.xlu0 %v356, 32
      %v382 = vpop.permute.xlu0 %381
      %383 = vrot.lane.b32.xlu0 %v359, 32
      %v384 = vpop.permute.xlu0 %383
      %vm385 = vcmask 261120
      %v386 = vsel %vm385, %v380, %v382
      %v387 = vsel %vm385, %v382, %v384
      %v390 = vmul.f32 %v377, %v386
      %v391 = vmul.f32 %v377, %v387
      %v392 = vadd.f32 %v390, 0.0
      %v393 = vadd.f32 %v391, 0.0
      %394 = vset.pattern.permute.xlu0 2
      %395 = vperm.xlu0 %394, %v332
      %v396 = vpop.permute.xlu0 %395
      %398 = vrot.lane.b32.xlu0 %v353, 30
      %v399 = vpop.permute.xlu0 %398
      %400 = vrot.lane.b32.xlu0 %v356, 30
      %v401 = vpop.permute.xlu0 %400
      %402 = vrot.lane.b32.xlu0 %v359, 30
      %v403 = vpop.permute.xlu0 %402
      %vm404 = vcmask 244736
      %v405 = vsel %vm404, %v399, %v401
      %v406 = vsel %vm404, %v401, %v403
      %v409 = vmul.f32 %v396, %v405
      %v410 = vmul.f32 %v396, %v406
      %v411 = vadd.f32 %v409, 0.0
      %v412 = vadd.f32 %v410, 0.0
      %413 = vset.pattern.permute.xlu0 3
      %414 = vperm.xlu0 %413, %v332
      %v415 = vpop.permute.xlu0 %414
      %417 = vrot.lane.b32.xlu0 %v353, 2
      %v418 = vpop.permute.xlu0 %417
      %419 = vrot.lane.b32.xlu0 %v356, 2
      %v420 = vpop.permute.xlu0 %419
      %421 = vrot.lane.b32.xlu0 %v359, 2
      %v422 = vpop.permute.xlu0 %421
      %vm423 = vcmask 15360
      %v424 = vsel %vm423, %v418, %v420
      %v425 = vsel %vm423, %v420, %v422
      %v428 = vmul.f32 %v415, %v424
      %v429 = vmul.f32 %v415, %v425
      %v430 = vadd.f32 %v373, %v428
      %v431 = vadd.f32 %v374, %v429
      %432 = vset.pattern.permute.xlu0 4
      %433 = vperm.xlu0 %432, %v332
      %v434 = vpop.permute.xlu0 %433
      %v438 = vmul.f32 %v434, %v356
      %v439 = vmul.f32 %v434, %v359
      %v440 = vadd.f32 %v392, %v438
      %v441 = vadd.f32 %v393, %v439
      %v442 = vld [vmem:[#allocation2 + $0x8] sm:$0xfc]
      %v443 = vld [vmem:[#allocation2 + $0x10] sm:$0xfc]
      %v444 = vld [vmem:[#allocation2 + $0x18] sm:$0xfc]
      %v445 = vld [vmem:[#allocation2 + $0x28] sm:$0x3]
      %v446 = vld [vmem:[#allocation2 + $0x30] sm:$0x3]
      %v447 = vld [vmem:[#allocation2 + $0x38] sm:$0x3]
      %448 = vset.pattern.permute.xlu0 5
      %449 = vperm.xlu0 %448, %v332
      %v450 = vpop.permute.xlu0 %449
      %v458 = vrot.slane %v442, 2
      %v459 = vrot.slane %v445, 2
      %v460 = vsel %vm350, %v458, %v459
      %v461 = vrot.slane %v443, 2
      %v462 = vrot.slane %v446, 2
      %v463 = vsel %vm350, %v461, %v462
      %v464 = vrot.slane %v444, 2
      %v465 = vrot.slane %v447, 2
      %v466 = vsel %vm350, %v464, %v465
      %467 = vrot.lane.b32.xlu0 %v460, 126
      %v468 = vpop.permute.xlu0 %467
      %469 = vrot.lane.b32.xlu0 %v463, 126
      %v470 = vpop.permute.xlu0 %469
      %471 = vrot.lane.b32.xlu0 %v466, 126
      %v472 = vpop.permute.xlu0 %471
      %vm473 = vcmask 1031168
      %v474 = vsel %vm473, %v468, %v470
      %v475 = vsel %vm473, %v470, %v472
      %v478 = vmul.f32 %v450, %v474
      %v479 = vmul.f32 %v450, %v475
      %v480 = vadd.f32 %v411, %v478
      %v481 = vadd.f32 %v412, %v479
      %482 = vset.pattern.permute.xlu0 6
      %483 = vperm.xlu0 %482, %v332
      %v484 = vpop.permute.xlu0 %483
      %486 = vrot.lane.b32.xlu0 %v460, 98
      %v487 = vpop.permute.xlu0 %486
      %488 = vrot.lane.b32.xlu0 %v463, 98
      %v489 = vpop.permute.xlu0 %488
      %490 = vrot.lane.b32.xlu0 %v466, 98
      %v491 = vpop.permute.xlu0 %490
      %vm492 = vcmask 801792
      %v493 = vsel %vm492, %v487, %v489
      %v494 = vsel %vm492, %v489, %v491
      %v497 = vmul.f32 %v484, %v493
      %v498 = vmul.f32 %v484, %v494
      %v499 = vadd.f32 %v430, %v497
      %v500 = vadd.f32 %v431, %v498
      %501 = vset.pattern.permute.xlu0 7
      %502 = vperm.xlu0 %501, %v332
      %v503 = vpop.permute.xlu0 %502
      %505 = vrot.lane.b32.xlu0 %v460, 96
      %v506 = vpop.permute.xlu0 %505
      %507 = vrot.lane.b32.xlu0 %v463, 96
      %v508 = vpop.permute.xlu0 %507
      %509 = vrot.lane.b32.xlu0 %v466, 96
      %v510 = vpop.permute.xlu0 %509
      %vm511 = vcmask 785408
      %v512 = vsel %vm511, %v506, %v508
      %v513 = vsel %vm511, %v508, %v510
      %v516 = vmul.f32 %v503, %v512
      %v517 = vmul.f32 %v503, %v513
      %v518 = vadd.f32 %v440, %v516
      %v519 = vadd.f32 %v441, %v517
      %520 = vset.pattern.permute.xlu0 8
      %521 = vperm.xlu0 %520, %v332
      %v522 = vpop.permute.xlu0 %521
      %524 = vrot.lane.b32.xlu0 %v460, 94
      %v525 = vpop.permute.xlu0 %524
      %526 = vrot.lane.b32.xlu0 %v463, 94
      %v527 = vpop.permute.xlu0 %526
      %528 = vrot.lane.b32.xlu0 %v466, 94
      %v529 = vpop.permute.xlu0 %528
      %vm530 = vcmask 769024
      %v531 = vsel %vm530, %v525, %v527
      %v532 = vsel %vm530, %v527, %v529
      %v535 = vmul.f32 %v522, %v531
      %v536 = vmul.f32 %v522, %v532
      %v537 = vadd.f32 %v480, %v535
      %v538 = vadd.f32 %v481, %v536
      %v539 = vld [vmem:[#allocation2] sm:$0xf0]
      %v540 = vld [vmem:[#allocation2 + $0x8] sm:$0xf0]
      %v541 = vld [vmem:[#allocation2 + $0x10] sm:$0xf0]
      %v542 = vld [vmem:[#allocation2 + $0x20] sm:$0xf]
      %v543 = vld [vmem:[#allocation2 + $0x28] sm:$0xf]
      %v544 = vld [vmem:[#allocation2 + $0x30] sm:$0xf]
      %545 = vset.pattern.permute.xlu0 9
      %546 = vperm.xlu0 %545, %v332
      %v547 = vpop.permute.xlu0 %546
      %vm555 = vcmask 1043456
      %v556 = vrot.slane %v539, 4
      %v557 = vrot.slane %v542, 4
      %v558 = vsel %vm555, %v556, %v557
      %v559 = vrot.slane %v540, 4
      %v560 = vrot.slane %v543, 4
      %v561 = vsel %vm555, %v559, %v560
      %v562 = vrot.slane %v541, 4
      %v563 = vrot.slane %v544, 4
      %v564 = vsel %vm555, %v562, %v563
      %565 = vrot.lane.b32.xlu0 %v558, 34
      %v566 = vpop.permute.xlu0 %565
      %567 = vrot.lane.b32.xlu0 %v561, 34
      %v568 = vpop.permute.xlu0 %567
      %569 = vrot.lane.b32.xlu0 %v564, 34
      %v570 = vpop.permute.xlu0 %569
      %v571 = vsel %vm366, %v566, %v568
      %v572 = vsel %vm366, %v568, %v570
      %v575 = vmul.f32 %v547, %v571
      %v576 = vmul.f32 %v547, %v572
      %v577 = vadd.f32 %v499, %v575
      %v578 = vadd.f32 %v500, %v576
      %579 = vset.pattern.permute.xlu0 10
      %580 = vperm.xlu0 %579, %v332
      %v581 = vpop.permute.xlu0 %580
      %583 = vrot.lane.b32.xlu0 %v558, 32
      %v584 = vpop.permute.xlu0 %583
      %585 = vrot.lane.b32.xlu0 %v561, 32
      %v586 = vpop.permute.xlu0 %585
      %587 = vrot.lane.b32.xlu0 %v564, 32
      %v588 = vpop.permute.xlu0 %587
      %v589 = vsel %vm385, %v584, %v586
      %v590 = vsel %vm385, %v586, %v588
      %v593 = vmul.f32 %v581, %v589
      %v594 = vmul.f32 %v581, %v590
      %v595 = vadd.f32 %v518, %v593
      %v596 = vadd.f32 %v519, %v594
      %597 = vset.pattern.permute.xlu0 11
      %598 = vperm.xlu0 %597, %v332
      %v599 = vpop.permute.xlu0 %598
      %601 = vrot.lane.b32.xlu0 %v558, 30
      %v602 = vpop.permute.xlu0 %601
      %603 = vrot.lane.b32.xlu0 %v561, 30
      %v604 = vpop.permute.xlu0 %603
      %605 = vrot.lane.b32.xlu0 %v564, 30
      %v606 = vpop.permute.xlu0 %605
      %v607 = vsel %vm404, %v602, %v604
      %v608 = vsel %vm404, %v604, %v606
      %v611 = vmul.f32 %v599, %v607
      %v612 = vmul.f32 %v599, %v608
      %v613 = vadd.f32 %v537, %v611
      %v614 = vadd.f32 %v538, %v612
      %615 = vset.pattern.permute.xlu0 12
      %616 = vperm.xlu0 %615, %v332
      %v617 = vpop.permute.xlu0 %616
      %619 = vrot.lane.b32.xlu0 %v558, 2
      %v620 = vpop.permute.xlu0 %619
      %621 = vrot.lane.b32.xlu0 %v561, 2
      %v622 = vpop.permute.xlu0 %621
      %623 = vrot.lane.b32.xlu0 %v564, 2
      %v624 = vpop.permute.xlu0 %623
      %v625 = vsel %vm423, %v620, %v622
      %v626 = vsel %vm423, %v622, %v624
      %v629 = vmul.f32 %v617, %v625
      %v630 = vmul.f32 %v617, %v626
      %v631 = vadd.f32 %v577, %v629
      %v632 = vadd.f32 %v578, %v630
      %633 = vset.pattern.permute.xlu0 13
      %634 = vperm.xlu0 %633, %v332
      %v635 = vpop.permute.xlu0 %634
      %v639 = vmul.f32 %v635, %v561
      %v640 = vmul.f32 %v635, %v564
      %v641 = vadd.f32 %v595, %v639
      %v642 = vadd.f32 %v596, %v640
      %v643 = vld [vmem:[#allocation2 + $0x8] sm:$0xf0]
      %v644 = vld [vmem:[#allocation2 + $0x10] sm:$0xf0]
      %v645 = vld [vmem:[#allocation2 + $0x18] sm:$0xf0]
      %v646 = vld [vmem:[#allocation2 + $0x28] sm:$0xf]
      %v647 = vld [vmem:[#allocation2 + $0x30] sm:$0xf]
      %v648 = vld [vmem:[#allocation2 + $0x38] sm:$0xf]
      %649 = vset.pattern.permute.xlu0 14
      %650 = vperm.xlu0 %649, %v332
      %v651 = vpop.permute.xlu0 %650
      %v659 = vrot.slane %v643, 4
      %v660 = vrot.slane %v646, 4
      %v661 = vsel %vm555, %v659, %v660
      %v662 = vrot.slane %v644, 4
      %v663 = vrot.slane %v647, 4
      %v664 = vsel %vm555, %v662, %v663
      %v665 = vrot.slane %v645, 4
      %v666 = vrot.slane %v648, 4
      %v667 = vsel %vm555, %v665, %v666
      %668 = vrot.lane.b32.xlu0 %v661, 126
      %v669 = vpop.permute.xlu0 %668
      %670 = vrot.lane.b32.xlu0 %v664, 126
      %v671 = vpop.permute.xlu0 %670
      %672 = vrot.lane.b32.xlu0 %v667, 126
      %v673 = vpop.permute.xlu0 %672
      %v674 = vsel %vm473, %v669, %v671
      %v675 = vsel %vm473, %v671, %v673
      %v678 = vmul.f32 %v651, %v674
      %v679 = vmul.f32 %v651, %v675
      %v680 = vadd.f32 %v613, %v678
      %v681 = vadd.f32 %v614, %v679
      %682 = vset.pattern.permute.xlu0 15
      %683 = vperm.xlu0 %682, %v332
      %v684 = vpop.permute.xlu0 %683
      %686 = vrot.lane.b32.xlu0 %v661, 98
      %v687 = vpop.permute.xlu0 %686
      %688 = vrot.lane.b32.xlu0 %v664, 98
      %v689 = vpop.permute.xlu0 %688
      %690 = vrot.lane.b32.xlu0 %v667, 98
      %v691 = vpop.permute.xlu0 %690
      %v692 = vsel %vm492, %v687, %v689
      %v693 = vsel %vm492, %v689, %v691
      %v696 = vmul.f32 %v684, %v692
      %v697 = vmul.f32 %v684, %v693
      %v698 = vadd.f32 %v631, %v696
      %v699 = vadd.f32 %v632, %v697
      %700 = vset.pattern.permute.xlu0 16
      %701 = vperm.xlu0 %700, %v332
      %v702 = vpop.permute.xlu0 %701
      %704 = vrot.lane.b32.xlu0 %v661, 96
      %v705 = vpop.permute.xlu0 %704
      %706 = vrot.lane.b32.xlu0 %v664, 96
      %v707 = vpop.permute.xlu0 %706
      %708 = vrot.lane.b32.xlu0 %v667, 96
      %v709 = vpop.permute.xlu0 %708
      %v710 = vsel %vm511, %v705, %v707
      %v711 = vsel %vm511, %v707, %v709
      %v714 = vmul.f32 %v702, %v710
      %v715 = vmul.f32 %v702, %v711
      %v716 = vadd.f32 %v641, %v714
      %v717 = vadd.f32 %v642, %v715
      %718 = vset.pattern.permute.xlu0 17
      %719 = vperm.xlu0 %718, %v332
      %v720 = vpop.permute.xlu0 %719
      %722 = vrot.lane.b32.xlu0 %v661, 94
      %v723 = vpop.permute.xlu0 %722
      %724 = vrot.lane.b32.xlu0 %v664, 94
      %v725 = vpop.permute.xlu0 %724
      %726 = vrot.lane.b32.xlu0 %v667, 94
      %v727 = vpop.permute.xlu0 %726
      %v728 = vsel %vm530, %v723, %v725
      %v729 = vsel %vm530, %v725, %v727
      %v732 = vmul.f32 %v720, %v728
      %v733 = vmul.f32 %v720, %v729
      %v734 = vadd.f32 %v680, %v732
      %v735 = vadd.f32 %v681, %v733
      %v736 = vld [vmem:[#allocation2] sm:$0xc0]
      %v737 = vld [vmem:[#allocation2 + $0x8] sm:$0xc0]
      %v738 = vld [vmem:[#allocation2 + $0x10] sm:$0xc0]
      %v739 = vld [vmem:[#allocation2 + $0x20] sm:$0x3f]
      %v740 = vld [vmem:[#allocation2 + $0x28] sm:$0x3f]
      %v741 = vld [vmem:[#allocation2 + $0x30] sm:$0x3f]
      %742 = vset.pattern.permute.xlu0 18
      %743 = vperm.xlu0 %742, %v332
      %v744 = vpop.permute.xlu0 %743
      %vm752 = vcmask 1041408
      %v753 = vrot.slane %v736, 6
      %v754 = vrot.slane %v739, 6
      %v755 = vsel %vm752, %v753, %v754
      %v756 = vrot.slane %v737, 6
      %v757 = vrot.slane %v740, 6
      %v758 = vsel %vm752, %v756, %v757
      %v759 = vrot.slane %v738, 6
      %v760 = vrot.slane %v741, 6
      %v761 = vsel %vm752, %v759, %v760
      %762 = vrot.lane.b32.xlu0 %v755, 34
      %v763 = vpop.permute.xlu0 %762
      %764 = vrot.lane.b32.xlu0 %v758, 34
      %v765 = vpop.permute.xlu0 %764
      %766 = vrot.lane.b32.xlu0 %v761, 34
      %v767 = vpop.permute.xlu0 %766
      %v768 = vsel %vm366, %v763, %v765
      %v769 = vsel %vm366, %v765, %v767
      %v772 = vmul.f32 %v744, %v768
      %v773 = vmul.f32 %v744, %v769
      %v774 = vadd.f32 %v698, %v772
      %v775 = vadd.f32 %v699, %v773
      %776 = vset.pattern.permute.xlu0 19
      %777 = vperm.xlu0 %776, %v332
      %v778 = vpop.permute.xlu0 %777
      %780 = vrot.lane.b32.xlu0 %v755, 32
      %v781 = vpop.permute.xlu0 %780
      %782 = vrot.lane.b32.xlu0 %v758, 32
      %v783 = vpop.permute.xlu0 %782
      %784 = vrot.lane.b32.xlu0 %v761, 32
      %v785 = vpop.permute.xlu0 %784
      %v786 = vsel %vm385, %v781, %v783
      %v787 = vsel %vm385, %v783, %v785
      %v790 = vmul.f32 %v778, %v786
      %v791 = vmul.f32 %v778, %v787
      %v792 = vadd.f32 %v716, %v790
      %v793 = vadd.f32 %v717, %v791
      %794 = vset.pattern.permute.xlu0 20
      %795 = vperm.xlu0 %794, %v332
      %v796 = vpop.permute.xlu0 %795
      %798 = vrot.lane.b32.xlu0 %v755, 30
      %v799 = vpop.permute.xlu0 %798
      %800 = vrot.lane.b32.xlu0 %v758, 30
      %v801 = vpop.permute.xlu0 %800
      %802 = vrot.lane.b32.xlu0 %v761, 30
      %v803 = vpop.permute.xlu0 %802
      %v804 = vsel %vm404, %v799, %v801
      %v805 = vsel %vm404, %v801, %v803
      %v808 = vmul.f32 %v796, %v804
      %v809 = vmul.f32 %v796, %v805
      %v810 = vadd.f32 %v734, %v808
      %v811 = vadd.f32 %v735, %v809
      %812 = vset.pattern.permute.xlu0 21
      %813 = vperm.xlu0 %812, %v332
      %v814 = vpop.permute.xlu0 %813
      %816 = vrot.lane.b32.xlu0 %v755, 2
      %v817 = vpop.permute.xlu0 %816
      %818 = vrot.lane.b32.xlu0 %v758, 2
      %v819 = vpop.permute.xlu0 %818
      %820 = vrot.lane.b32.xlu0 %v761, 2
      %v821 = vpop.permute.xlu0 %820
      %v822 = vsel %vm423, %v817, %v819
      %v823 = vsel %vm423, %v819, %v821
      %v826 = vmul.f32 %v814, %v822
      %v827 = vmul.f32 %v814, %v823
      %v828 = vadd.f32 %v774, %v826
      %v829 = vadd.f32 %v775, %v827
      %830 = vset.pattern.permute.xlu0 22
      %831 = vperm.xlu0 %830, %v332
      %v832 = vpop.permute.xlu0 %831
      %v836 = vmul.f32 %v832, %v758
      %v837 = vmul.f32 %v832, %v761
      %v838 = vadd.f32 %v792, %v836
      %v839 = vadd.f32 %v793, %v837
      %v840 = vld [vmem:[#allocation2 + $0x8] sm:$0xc0]
      %v841 = vld [vmem:[#allocation2 + $0x10] sm:$0xc0]
      %v842 = vld [vmem:[#allocation2 + $0x18] sm:$0xc0]
      %v843 = vld [vmem:[#allocation2 + $0x28] sm:$0x3f]
      %v844 = vld [vmem:[#allocation2 + $0x30] sm:$0x3f]
      %v845 = vld [vmem:[#allocation2 + $0x38] sm:$0x3f]
      %846 = vset.pattern.permute.xlu0 23
      %847 = vperm.xlu0 %846, %v332
      %v848 = vpop.permute.xlu0 %847
      %v856 = vrot.slane %v840, 6
      %v857 = vrot.slane %v843, 6
      %v858 = vsel %vm752, %v856, %v857
      %v859 = vrot.slane %v841, 6
      %v860 = vrot.slane %v844, 6
      %v861 = vsel %vm752, %v859, %v860
      %v862 = vrot.slane %v842, 6
      %v863 = vrot.slane %v845, 6
      %v864 = vsel %vm752, %v862, %v863
      %865 = vrot.lane.b32.xlu0 %v858, 126
      %v866 = vpop.permute.xlu0 %865
      %867 = vrot.lane.b32.xlu0 %v861, 126
      %v868 = vpop.permute.xlu0 %867
      %869 = vrot.lane.b32.xlu0 %v864, 126
      %v870 = vpop.permute.xlu0 %869
      %v871 = vsel %vm473, %v866, %v868
      %v872 = vsel %vm473, %v868, %v870
      %v875 = vmul.f32 %v848, %v871
      %v876 = vmul.f32 %v848, %v872
      %v877 = vadd.f32 %v810, %v875
      %v878 = vadd.f32 %v811, %v876
      %879 = vset.pattern.permute.xlu0 24
      %880 = vperm.xlu0 %879, %v332
      %v881 = vpop.permute.xlu0 %880
      %883 = vrot.lane.b32.xlu0 %v858, 98
      %v884 = vpop.permute.xlu0 %883
      %885 = vrot.lane.b32.xlu0 %v861, 98
      %v886 = vpop.permute.xlu0 %885
      %887 = vrot.lane.b32.xlu0 %v864, 98
      %v888 = vpop.permute.xlu0 %887
      %v889 = vsel %vm492, %v884, %v886
      %v890 = vsel %vm492, %v886, %v888
      %v893 = vmul.f32 %v881, %v889
      %v894 = vmul.f32 %v881, %v890
      %v895 = vadd.f32 %v828, %v893
      %v896 = vadd.f32 %v829, %v894
      %897 = vset.pattern.permute.xlu0 25
      %898 = vperm.xlu0 %897, %v332
      %v899 = vpop.permute.xlu0 %898
      %901 = vrot.lane.b32.xlu0 %v858, 96
      %v902 = vpop.permute.xlu0 %901
      %903 = vrot.lane.b32.xlu0 %v861, 96
      %v904 = vpop.permute.xlu0 %903
      %905 = vrot.lane.b32.xlu0 %v864, 96
      %v906 = vpop.permute.xlu0 %905
      %v907 = vsel %vm511, %v902, %v904
      %v908 = vsel %vm511, %v904, %v906
      %v911 = vmul.f32 %v899, %v907
      %v912 = vmul.f32 %v899, %v908
      %v913 = vadd.f32 %v838, %v911
      %v914 = vadd.f32 %v839, %v912
      %915 = vset.pattern.permute.xlu0 26
      %916 = vperm.xlu0 %915, %v332
      %v917 = vpop.permute.xlu0 %916
      %919 = vrot.lane.b32.xlu0 %v858, 94
      %v920 = vpop.permute.xlu0 %919
      %921 = vrot.lane.b32.xlu0 %v861, 94
      %v922 = vpop.permute.xlu0 %921
      %923 = vrot.lane.b32.xlu0 %v864, 94
      %v924 = vpop.permute.xlu0 %923
      %v925 = vsel %vm530, %v920, %v922
      %v926 = vsel %vm530, %v922, %v924
      %v929 = vmul.f32 %v917, %v925
      %v930 = vmul.f32 %v917, %v926
      %v931 = vadd.f32 %v877, %v929
      %v932 = vadd.f32 %v878, %v930
      %v933 = vld [vmem:[#allocation2 + $0x20] sm:$0xff]
      %v934 = vld [vmem:[#allocation2 + $0x28] sm:$0xff]
      %v935 = vld [vmem:[#allocation2 + $0x30] sm:$0xff]
      %936 = vset.pattern.permute.xlu0 27
      %937 = vperm.xlu0 %936, %v332
      %v938 = vpop.permute.xlu0 %937
      %v940 = vmul.f32 %v938, %v933
      %v941 = vmul.f32 %v938, %v934
      %v942 = vmul.f32 %v938, %v935
      %946 = vrot.lane.b32.xlu0 %v940, 34
      %v947 = vpop.permute.xlu0 %946
      %948 = vrot.lane.b32.xlu0 %v941, 34
      %v949 = vpop.permute.xlu0 %948
      %950 = vrot.lane.b32.xlu0 %v942, 34
      %v951 = vpop.permute.xlu0 %950
      %v952 = vsel %vm366, %v947, %v949
      %v953 = vsel %vm366, %v949, %v951
      %v956 = vadd.f32 %v895, %v952
      %v957 = vadd.f32 %v896, %v953
      %958 = vset.pattern.permute.xlu0 28
      %959 = vperm.xlu0 %958, %v332
      %v960 = vpop.permute.xlu0 %959
      %v962 = vmul.f32 %v960, %v933
      %v963 = vmul.f32 %v960, %v934
      %v964 = vmul.f32 %v960, %v935
      %968 = vrot.lane.b32.xlu0 %v962, 32
      %v969 = vpop.permute.xlu0 %968
      %970 = vrot.lane.b32.xlu0 %v963, 32
      %v971 = vpop.permute.xlu0 %970
      %972 = vrot.lane.b32.xlu0 %v964, 32
      %v973 = vpop.permute.xlu0 %972
      %v974 = vsel %vm385, %v969, %v971
      %v975 = vsel %vm385, %v971, %v973
      %v978 = vadd.f32 %v913, %v974
      %v979 = vadd.f32 %v914, %v975
      %980 = vset.pattern.permute.xlu0 29
      %981 = vperm.xlu0 %980, %v332
      %v982 = vpop.permute.xlu0 %981
      %v984 = vmul.f32 %v982, %v933
      %v985 = vmul.f32 %v982, %v934
      %v986 = vmul.f32 %v982, %v935
      %990 = vrot.lane.b32.xlu0 %v984, 30
      %v991 = vpop.permute.xlu0 %990
      %992 = vrot.lane.b32.xlu0 %v985, 30
      %v993 = vpop.permute.xlu0 %992
      %994 = vrot.lane.b32.xlu0 %v986, 30
      %v995 = vpop.permute.xlu0 %994
      %v996 = vsel %vm404, %v991, %v993
      %v997 = vsel %vm404, %v993, %v995
      %v1000 = vadd.f32 %v931, %v996
      %v1001 = vadd.f32 %v932, %v997
      %1002 = vset.pattern.permute.xlu0 30
      %1003 = vperm.xlu0 %1002, %v332
      %v1004 = vpop.permute.xlu0 %1003
      %v1006 = vmul.f32 %v1004, %v933
      %v1007 = vmul.f32 %v1004, %v934
      %v1008 = vmul.f32 %v1004, %v935
      %1012 = vrot.lane.b32.xlu0 %v1006, 2
      %v1013 = vpop.permute.xlu0 %1012
      %1014 = vrot.lane.b32.xlu0 %v1007, 2
      %v1015 = vpop.permute.xlu0 %1014
      %1016 = vrot.lane.b32.xlu0 %v1008, 2
      %v1017 = vpop.permute.xlu0 %1016
      %v1018 = vsel %vm423, %v1013, %v1015
      %v1019 = vsel %vm423, %v1015, %v1017
      %v1022 = vadd.f32 %v956, %v1018
      %v1023 = vadd.f32 %v957, %v1019
      %1024 = vset.pattern.permute.xlu0 31
      %1025 = vperm.xlu0 %1024, %v332
      %v1026 = vpop.permute.xlu0 %1025
      %v1028 = vmul.f32 %v1026, %v934
      %v1029 = vmul.f32 %v1026, %v935
      %v1030 = vadd.f32 %v978, %v1028
      %v1031 = vadd.f32 %v979, %v1029
      %v1032 = vld [vmem:[#allocation2 + $0x28] sm:$0xff]
      %v1033 = vld [vmem:[#allocation2 + $0x30] sm:$0xff]
      %v1034 = vld [vmem:[#allocation2 + $0x38] sm:$0xff]
      %1035 = vset.pattern.permute.xlu0 32
      %1036 = vperm.xlu0 %1035, %v332
      %v1037 = vpop.permute.xlu0 %1036
      %v1039 = vmul.f32 %v1037, %v1032
      %v1040 = vmul.f32 %v1037, %v1033
      %v1041 = vmul.f32 %v1037, %v1034
      %1045 = vrot.lane.b32.xlu0 %v1039, 126
      %v1046 = vpop.permute.xlu0 %1045
      %1047 = vrot.lane.b32.xlu0 %v1040, 126
      %v1048 = vpop.permute.xlu0 %1047
      %1049 = vrot.lane.b32.xlu0 %v1041, 126
      %v1050 = vpop.permute.xlu0 %1049
      %v1051 = vsel %vm473, %v1046, %v1048
      %v1052 = vsel %vm473, %v1048, %v1050
      %v1055 = vadd.f32 %v1000, %v1051
      %v1056 = vadd.f32 %v1001, %v1052
      %1057 = vset.pattern.permute.xlu0 33
      %1058 = vperm.xlu0 %1057, %v332
      %v1059 = vpop.permute.xlu0 %1058
      %v1061 = vmul.f32 %v1059, %v1032
      %v1062 = vmul.f32 %v1059, %v1033
      %v1063 = vmul.f32 %v1059, %v1034
      %1067 = vrot.lane.b32.xlu0 %v1061, 98
      %v1068 = vpop.permute.xlu0 %1067
      %1069 = vrot.lane.b32.xlu0 %v1062, 98
      %v1070 = vpop.permute.xlu0 %1069
      %1071 = vrot.lane.b32.xlu0 %v1063, 98
      %v1072 = vpop.permute.xlu0 %1071
      %v1073 = vsel %vm492, %v1068, %v1070
      %v1074 = vsel %vm492, %v1070, %v1072
      %v1077 = vadd.f32 %v1022, %v1073
      %v1078 = vadd.f32 %v1023, %v1074
      %1079 = vset.pattern.permute.xlu0 34
      %1080 = vperm.xlu0 %1079, %v332
      %v1081 = vpop.permute.xlu0 %1080
      %v1083 = vmul.f32 %v1081, %v1032
      %v1084 = vmul.f32 %v1081, %v1033
      %v1085 = vmul.f32 %v1081, %v1034
      %1089 = vrot.lane.b32.xlu0 %v1083, 96
      %v1090 = vpop.permute.xlu0 %1089
      %1091 = vrot.lane.b32.xlu0 %v1084, 96
      %v1092 = vpop.permute.xlu0 %1091
      %1093 = vrot.lane.b32.xlu0 %v1085, 96
      %v1094 = vpop.permute.xlu0 %1093
      %v1095 = vsel %vm511, %v1090, %v1092
      %v1096 = vsel %vm511, %v1092, %v1094
      %v1099 = vadd.f32 %v1030, %v1095
      %v1100 = vadd.f32 %v1031, %v1096
      %1101 = vset.pattern.permute.xlu0 35
      %1102 = vperm.xlu0 %1101, %v332
      %v1103 = vpop.permute.xlu0 %1102
      %v1105 = vmul.f32 %v1103, %v1032
      %v1106 = vmul.f32 %v1103, %v1033
      %v1107 = vmul.f32 %v1103, %v1034
      %1111 = vrot.lane.b32.xlu0 %v1105, 94
      %v1112 = vpop.permute.xlu0 %1111
      %1113 = vrot.lane.b32.xlu0 %v1106, 94
      %v1114 = vpop.permute.xlu0 %1113
      %1115 = vrot.lane.b32.xlu0 %v1107, 94
      %v1116 = vpop.permute.xlu0 %1115
      %v1117 = vsel %vm530, %v1112, %v1114
      %v1118 = vsel %vm530, %v1114, %v1116
      %v1121 = vadd.f32 %v1055, %v1117
      %v1122 = vadd.f32 %v1056, %v1118
      %v1123 = vld [vmem:[#allocation2 + $0x20] sm:$0xfc]
      %v1124 = vld [vmem:[#allocation2 + $0x28] sm:$0xfc]
      %v1125 = vld [vmem:[#allocation2 + $0x30] sm:$0xfc]
      %v1126 = vld [vmem:[#allocation2 + $0x40] sm:$0x3]
      %v1127 = vld [vmem:[#allocation2 + $0x48] sm:$0x3]
      %v1128 = vld [vmem:[#allocation2 + $0x50] sm:$0x3]
      %1129 = vset.pattern.permute.xlu0 36
      %1130 = vperm.xlu0 %1129, %v332
      %v1131 = vpop.permute.xlu0 %1130
      %v1139 = vrot.slane %v1123, 2
      %v1140 = vrot.slane %v1126, 2
      %v1141 = vsel %vm350, %v1139, %v1140
      %v1142 = vrot.slane %v1124, 2
      %v1143 = vrot.slane %v1127, 2
      %v1144 = vsel %vm350, %v1142, %v1143
      %v1145 = vrot.slane %v1125, 2
      %v1146 = vrot.slane %v1128, 2
      %v1147 = vsel %vm350, %v1145, %v1146
      %1148 = vrot.lane.b32.xlu0 %v1141, 34
      %v1149 = vpop.permute.xlu0 %1148
      %1150 = vrot.lane.b32.xlu0 %v1144, 34
      %v1151 = vpop.permute.xlu0 %1150
      %1152 = vrot.lane.b32.xlu0 %v1147, 34
      %v1153 = vpop.permute.xlu0 %1152
      %v1154 = vsel %vm366, %v1149, %v1151
      %v1155 = vsel %vm366, %v1151, %v1153
      %v1158 = vmul.f32 %v1131, %v1154
      %v1159 = vmul.f32 %v1131, %v1155
      %v1160 = vadd.f32 %v1077, %v1158
      %v1161 = vadd.f32 %v1078, %v1159
      %1162 = vset.pattern.permute.xlu0 37
      %1163 = vperm.xlu0 %1162, %v332
      %v1164 = vpop.permute.xlu0 %1163
      %1166 = vrot.lane.b32.xlu0 %v1141, 32
      %v1167 = vpop.permute.xlu0 %1166
      %1168 = vrot.lane.b32.xlu0 %v1144, 32
      %v1169 = vpop.permute.xlu0 %1168
      %1170 = vrot.lane.b32.xlu0 %v1147, 32
      %v1171 = vpop.permute.xlu0 %1170
      %v1172 = vsel %vm385, %v1167, %v1169
      %v1173 = vsel %vm385, %v1169, %v1171
      %v1176 = vmul.f32 %v1164, %v1172
      %v1177 = vmul.f32 %v1164, %v1173
      %v1178 = vadd.f32 %v1099, %v1176
      %v1179 = vadd.f32 %v1100, %v1177
      %1180 = vset.pattern.permute.xlu0 38
      %1181 = vperm.xlu0 %1180, %v332
      %v1182 = vpop.permute.xlu0 %1181
      %1184 = vrot.lane.b32.xlu0 %v1141, 30
      %v1185 = vpop.permute.xlu0 %1184
      %1186 = vrot.lane.b32.xlu0 %v1144, 30
      %v1187 = vpop.permute.xlu0 %1186
      %1188 = vrot.lane.b32.xlu0 %v1147, 30
      %v1189 = vpop.permute.xlu0 %1188
      %v1190 = vsel %vm404, %v1185, %v1187
      %v1191 = vsel %vm404, %v1187, %v1189
      %v1194 = vmul.f32 %v1182, %v1190
      %v1195 = vmul.f32 %v1182, %v1191
      %v1196 = vadd.f32 %v1121, %v1194
      %v1197 = vadd.f32 %v1122, %v1195
      %1198 = vset.pattern.permute.xlu0 39
      %1199 = vperm.xlu0 %1198, %v332
      %v1200 = vpop.permute.xlu0 %1199
      %1202 = vrot.lane.b32.xlu0 %v1141, 2
      %v1203 = vpop.permute.xlu0 %1202
      %1204 = vrot.lane.b32.xlu0 %v1144, 2
      %v1205 = vpop.permute.xlu0 %1204
      %1206 = vrot.lane.b32.xlu0 %v1147, 2
      %v1207 = vpop.permute.xlu0 %1206
      %v1208 = vsel %vm423, %v1203, %v1205
      %v1209 = vsel %vm423, %v1205, %v1207
      %v1212 = vmul.f32 %v1200, %v1208
      %v1213 = vmul.f32 %v1200, %v1209
      %v1214 = vadd.f32 %v1160, %v1212
      %v1215 = vadd.f32 %v1161, %v1213
      %1216 = vset.pattern.permute.xlu0 40
      %1217 = vperm.xlu0 %1216, %v332
      %v1218 = vpop.permute.xlu0 %1217
      %v1222 = vmul.f32 %v1218, %v1144
      %v1223 = vmul.f32 %v1218, %v1147
      %v1224 = vadd.f32 %v1178, %v1222
      %v1225 = vadd.f32 %v1179, %v1223
      %v1226 = vld [vmem:[#allocation2 + $0x28] sm:$0xfc]
      %v1227 = vld [vmem:[#allocation2 + $0x30] sm:$0xfc]
      %v1228 = vld [vmem:[#allocation2 + $0x38] sm:$0xfc]
      %v1229 = vld [vmem:[#allocation2 + $0x48] sm:$0x3]
      %v1230 = vld [vmem:[#allocation2 + $0x50] sm:$0x3]
      %v1231 = vld [vmem:[#allocation2 + $0x58] sm:$0x3]
      %1232 = vset.pattern.permute.xlu0 41
      %1233 = vperm.xlu0 %1232, %v332
      %v1234 = vpop.permute.xlu0 %1233
      %v1242 = vrot.slane %v1226, 2
      %v1243 = vrot.slane %v1229, 2
      %v1244 = vsel %vm350, %v1242, %v1243
      %v1245 = vrot.slane %v1227, 2
      %v1246 = vrot.slane %v1230, 2
      %v1247 = vsel %vm350, %v1245, %v1246
      %v1248 = vrot.slane %v1228, 2
      %v1249 = vrot.slane %v1231, 2
      %v1250 = vsel %vm350, %v1248, %v1249
      %1251 = vrot.lane.b32.xlu0 %v1244, 126
      %v1252 = vpop.permute.xlu0 %1251
      %1253 = vrot.lane.b32.xlu0 %v1247, 126
      %v1254 = vpop.permute.xlu0 %1253
      %1255 = vrot.lane.b32.xlu0 %v1250, 126
      %v1256 = vpop.permute.xlu0 %1255
      %v1257 = vsel %vm473, %v1252, %v1254
      %v1258 = vsel %vm473, %v1254, %v1256
      %v1261 = vmul.f32 %v1234, %v1257
      %v1262 = vmul.f32 %v1234, %v1258
      %v1263 = vadd.f32 %v1196, %v1261
      %v1264 = vadd.f32 %v1197, %v1262
      %1265 = vset.pattern.permute.xlu0 42
      %1266 = vperm.xlu0 %1265, %v332
      %v1267 = vpop.permute.xlu0 %1266
      %1269 = vrot.lane.b32.xlu0 %v1244, 98
      %v1270 = vpop.permute.xlu0 %1269
      %1271 = vrot.lane.b32.xlu0 %v1247, 98
      %v1272 = vpop.permute.xlu0 %1271
      %1273 = vrot.lane.b32.xlu0 %v1250, 98
      %v1274 = vpop.permute.xlu0 %1273
      %v1275 = vsel %vm492, %v1270, %v1272
      %v1276 = vsel %vm492, %v1272, %v1274
      %v1279 = vmul.f32 %v1267, %v1275
      %v1280 = vmul.f32 %v1267, %v1276
      %v1281 = vadd.f32 %v1214, %v1279
      %v1282 = vadd.f32 %v1215, %v1280
      %1283 = vset.pattern.permute.xlu0 43
      %1284 = vperm.xlu0 %1283, %v332
      %v1285 = vpop.permute.xlu0 %1284
      %1287 = vrot.lane.b32.xlu0 %v1244, 96
      %v1288 = vpop.permute.xlu0 %1287
      %1289 = vrot.lane.b32.xlu0 %v1247, 96
      %v1290 = vpop.permute.xlu0 %1289
      %1291 = vrot.lane.b32.xlu0 %v1250, 96
      %v1292 = vpop.permute.xlu0 %1291
      %v1293 = vsel %vm511, %v1288, %v1290
      %v1294 = vsel %vm511, %v1290, %v1292
      %v1297 = vmul.f32 %v1285, %v1293
      %v1298 = vmul.f32 %v1285, %v1294
      %v1299 = vadd.f32 %v1224, %v1297
      %v1300 = vadd.f32 %v1225, %v1298
      %1301 = vset.pattern.permute.xlu0 44
      %1302 = vperm.xlu0 %1301, %v332
      %v1303 = vpop.permute.xlu0 %1302
      %1305 = vrot.lane.b32.xlu0 %v1244, 94
      %v1306 = vpop.permute.xlu0 %1305
      %1307 = vrot.lane.b32.xlu0 %v1247, 94
      %v1308 = vpop.permute.xlu0 %1307
      %1309 = vrot.lane.b32.xlu0 %v1250, 94
      %v1310 = vpop.permute.xlu0 %1309
      %v1311 = vsel %vm530, %v1306, %v1308
      %v1312 = vsel %vm530, %v1308, %v1310
      %v1315 = vmul.f32 %v1303, %v1311
      %v1316 = vmul.f32 %v1303, %v1312
      %v1317 = vadd.f32 %v1263, %v1315
      %v1318 = vadd.f32 %v1264, %v1316
      %v1319 = vld [vmem:[#allocation2 + $0x20] sm:$0xf0]
      %v1320 = vld [vmem:[#allocation2 + $0x28] sm:$0xf0]
      %v1321 = vld [vmem:[#allocation2 + $0x30] sm:$0xf0]
      %v1322 = vld [vmem:[#allocation2 + $0x40] sm:$0xf]
      %v1323 = vld [vmem:[#allocation2 + $0x48] sm:$0xf]
      %v1324 = vld [vmem:[#allocation2 + $0x50] sm:$0xf]
      %1325 = vset.pattern.permute.xlu0 45
      %1326 = vperm.xlu0 %1325, %v332
      %v1327 = vpop.permute.xlu0 %1326
      %v1335 = vrot.slane %v1319, 4
      %v1336 = vrot.slane %v1322, 4
      %v1337 = vsel %vm555, %v1335, %v1336
      %v1338 = vrot.slane %v1320, 4
      %v1339 = vrot.slane %v1323, 4
      %v1340 = vsel %vm555, %v1338, %v1339
      %v1341 = vrot.slane %v1321, 4
      %v1342 = vrot.slane %v1324, 4
      %v1343 = vsel %vm555, %v1341, %v1342
      %1344 = vrot.lane.b32.xlu0 %v1337, 34
      %v1345 = vpop.permute.xlu0 %1344
      %1346 = vrot.lane.b32.xlu0 %v1340, 34
      %v1347 = vpop.permute.xlu0 %1346
      %1348 = vrot.lane.b32.xlu0 %v1343, 34
      %v1349 = vpop.permute.xlu0 %1348
      %v1350 = vsel %vm366, %v1345, %v1347
      %v1351 = vsel %vm366, %v1347, %v1349
      %v1354 = vmul.f32 %v1327, %v1350
      %v1355 = vmul.f32 %v1327, %v1351
      %v1356 = vadd.f32 %v1281, %v1354
      %v1357 = vadd.f32 %v1282, %v1355
      %1358 = vset.pattern.permute.xlu0 46
      %1359 = vperm.xlu0 %1358, %v332
      %v1360 = vpop.permute.xlu0 %1359
      %1362 = vrot.lane.b32.xlu0 %v1337, 32
      %v1363 = vpop.permute.xlu0 %1362
      %1364 = vrot.lane.b32.xlu0 %v1340, 32
      %v1365 = vpop.permute.xlu0 %1364
      %1366 = vrot.lane.b32.xlu0 %v1343, 32
      %v1367 = vpop.permute.xlu0 %1366
      %v1368 = vsel %vm385, %v1363, %v1365
      %v1369 = vsel %vm385, %v1365, %v1367
      %v1372 = vmul.f32 %v1360, %v1368
      %v1373 = vmul.f32 %v1360, %v1369
      %v1374 = vadd.f32 %v1299, %v1372
      %v1375 = vadd.f32 %v1300, %v1373
      %1376 = vset.pattern.permute.xlu0 47
      %1377 = vperm.xlu0 %1376, %v332
      %v1378 = vpop.permute.xlu0 %1377
      %1380 = vrot.lane.b32.xlu0 %v1337, 30
      %v1381 = vpop.permute.xlu0 %1380
      %1382 = vrot.lane.b32.xlu0 %v1340, 30
      %v1383 = vpop.permute.xlu0 %1382
      %1384 = vrot.lane.b32.xlu0 %v1343, 30
      %v1385 = vpop.permute.xlu0 %1384
      %v1386 = vsel %vm404, %v1381, %v1383
      %v1387 = vsel %vm404, %v1383, %v1385
      %v1390 = vmul.f32 %v1378, %v1386
      %v1391 = vmul.f32 %v1378, %v1387
      %v1392 = vadd.f32 %v1317, %v1390
      %v1393 = vadd.f32 %v1318, %v1391
      %1394 = vset.pattern.permute.xlu0 48
      %1395 = vperm.xlu0 %1394, %v332
      %v1396 = vpop.permute.xlu0 %1395
      %1398 = vrot.lane.b32.xlu0 %v1337, 2
      %v1399 = vpop.permute.xlu0 %1398
      %1400 = vrot.lane.b32.xlu0 %v1340, 2
      %v1401 = vpop.permute.xlu0 %1400
      %1402 = vrot.lane.b32.xlu0 %v1343, 2
      %v1403 = vpop.permute.xlu0 %1402
      %v1404 = vsel %vm423, %v1399, %v1401
      %v1405 = vsel %vm423, %v1401, %v1403
      %v1408 = vmul.f32 %v1396, %v1404
      %v1409 = vmul.f32 %v1396, %v1405
      %v1410 = vadd.f32 %v1356, %v1408
      %v1411 = vadd.f32 %v1357, %v1409
      %1412 = vset.pattern.permute.xlu0 49
      %1413 = vperm.xlu0 %1412, %v332
      %v1414 = vpop.permute.xlu0 %1413
      %v1418 = vmul.f32 %v1414, %v1340
      %v1419 = vmul.f32 %v1414, %v1343
      %v1420 = vadd.f32 %v1374, %v1418
      %v1421 = vadd.f32 %v1375, %v1419
      %v1422 = vld [vmem:[#allocation2 + $0x28] sm:$0xf0]
      %v1423 = vld [vmem:[#allocation2 + $0x30] sm:$0xf0]
      %v1424 = vld [vmem:[#allocation2 + $0x38] sm:$0xf0]
      %v1425 = vld [vmem:[#allocation2 + $0x48] sm:$0xf]
      %v1426 = vld [vmem:[#allocation2 + $0x50] sm:$0xf]
      %v1427 = vld [vmem:[#allocation2 + $0x58] sm:$0xf]
      %1428 = vset.pattern.permute.xlu0 50
      %1429 = vperm.xlu0 %1428, %v332
      %v1430 = vpop.permute.xlu0 %1429
      %v1438 = vrot.slane %v1422, 4
      %v1439 = vrot.slane %v1425, 4
      %v1440 = vsel %vm555, %v1438, %v1439
      %v1441 = vrot.slane %v1423, 4
      %v1442 = vrot.slane %v1426, 4
      %v1443 = vsel %vm555, %v1441, %v1442
      %v1444 = vrot.slane %v1424, 4
      %v1445 = vrot.slane %v1427, 4
      %v1446 = vsel %vm555, %v1444, %v1445
      %1447 = vrot.lane.b32.xlu0 %v1440, 126
      %v1448 = vpop.permute.xlu0 %1447
      %1449 = vrot.lane.b32.xlu0 %v1443, 126
      %v1450 = vpop.permute.xlu0 %1449
      %1451 = vrot.lane.b32.xlu0 %v1446, 126
      %v1452 = vpop.permute.xlu0 %1451
      %v1453 = vsel %vm473, %v1448, %v1450
      %v1454 = vsel %vm473, %v1450, %v1452
      %v1457 = vmul.f32 %v1430, %v1453
      %v1458 = vmul.f32 %v1430, %v1454
      %v1459 = vadd.f32 %v1392, %v1457
      %v1460 = vadd.f32 %v1393, %v1458
      %1461 = vset.pattern.permute.xlu0 51
      %1462 = vperm.xlu0 %1461, %v332
      %v1463 = vpop.permute.xlu0 %1462
      %1465 = vrot.lane.b32.xlu0 %v1440, 98
      %v1466 = vpop.permute.xlu0 %1465
      %1467 = vrot.lane.b32.xlu0 %v1443, 98
      %v1468 = vpop.permute.xlu0 %1467
      %1469 = vrot.lane.b32.xlu0 %v1446, 98
      %v1470 = vpop.permute.xlu0 %1469
      %v1471 = vsel %vm492, %v1466, %v1468
      %v1472 = vsel %vm492, %v1468, %v1470
      %v1475 = vmul.f32 %v1463, %v1471
      %v1476 = vmul.f32 %v1463, %v1472
      %v1477 = vadd.f32 %v1410, %v1475
      %v1478 = vadd.f32 %v1411, %v1476
      %1479 = vset.pattern.permute.xlu0 52
      %1480 = vperm.xlu0 %1479, %v332
      %v1481 = vpop.permute.xlu0 %1480
      %1483 = vrot.lane.b32.xlu0 %v1440, 96
      %v1484 = vpop.permute.xlu0 %1483
      %1485 = vrot.lane.b32.xlu0 %v1443, 96
      %v1486 = vpop.permute.xlu0 %1485
      %1487 = vrot.lane.b32.xlu0 %v1446, 96
      %v1488 = vpop.permute.xlu0 %1487
      %v1489 = vsel %vm511, %v1484, %v1486
      %v1490 = vsel %vm511, %v1486, %v1488
      %v1493 = vmul.f32 %v1481, %v1489
      %v1494 = vmul.f32 %v1481, %v1490
      %v1495 = vadd.f32 %v1420, %v1493
      %v1496 = vadd.f32 %v1421, %v1494
      %1497 = vset.pattern.permute.xlu0 53
      %1498 = vperm.xlu0 %1497, %v332
      %v1499 = vpop.permute.xlu0 %1498
      %1501 = vrot.lane.b32.xlu0 %v1440, 94
      %v1502 = vpop.permute.xlu0 %1501
      %1503 = vrot.lane.b32.xlu0 %v1443, 94
      %v1504 = vpop.permute.xlu0 %1503
      %1505 = vrot.lane.b32.xlu0 %v1446, 94
      %v1506 = vpop.permute.xlu0 %1505
      %v1507 = vsel %vm530, %v1502, %v1504
      %v1508 = vsel %vm530, %v1504, %v1506
      %v1511 = vmul.f32 %v1499, %v1507
      %v1512 = vmul.f32 %v1499, %v1508
      %v1513 = vadd.f32 %v1459, %v1511
      %v1514 = vadd.f32 %v1460, %v1512
      %v1515 = vld [vmem:[#allocation2 + $0x20] sm:$0xc0]
      %v1516 = vld [vmem:[#allocation2 + $0x28] sm:$0xc0]
      %v1517 = vld [vmem:[#allocation2 + $0x30] sm:$0xc0]
      %v1518 = vld [vmem:[#allocation2 + $0x40] sm:$0x3f]
      %v1519 = vld [vmem:[#allocation2 + $0x48] sm:$0x3f]
      %v1520 = vld [vmem:[#allocation2 + $0x50] sm:$0x3f]
      %1521 = vset.pattern.permute.xlu0 54
      %1522 = vperm.xlu0 %1521, %v332
      %v1523 = vpop.permute.xlu0 %1522
      %v1531 = vrot.slane %v1515, 6
      %v1532 = vrot.slane %v1518, 6
      %v1533 = vsel %vm752, %v1531, %v1532
      %v1534 = vrot.slane %v1516, 6
      %v1535 = vrot.slane %v1519, 6
      %v1536 = vsel %vm752, %v1534, %v1535
      %v1537 = vrot.slane %v1517, 6
      %v1538 = vrot.slane %v1520, 6
      %v1539 = vsel %vm752, %v1537, %v1538
      %1540 = vrot.lane.b32.xlu0 %v1533, 34
      %v1541 = vpop.permute.xlu0 %1540
      %1542 = vrot.lane.b32.xlu0 %v1536, 34
      %v1543 = vpop.permute.xlu0 %1542
      %1544 = vrot.lane.b32.xlu0 %v1539, 34
      %v1545 = vpop.permute.xlu0 %1544
      %v1546 = vsel %vm366, %v1541, %v1543
      %v1547 = vsel %vm366, %v1543, %v1545
      %v1550 = vmul.f32 %v1523, %v1546
      %v1551 = vmul.f32 %v1523, %v1547
      %v1552 = vadd.f32 %v1477, %v1550
      %v1553 = vadd.f32 %v1478, %v1551
      %1554 = vset.pattern.permute.xlu0 55
      %1555 = vperm.xlu0 %1554, %v332
      %v1556 = vpop.permute.xlu0 %1555
      %1558 = vrot.lane.b32.xlu0 %v1533, 32
      %v1559 = vpop.permute.xlu0 %1558
      %1560 = vrot.lane.b32.xlu0 %v1536, 32
      %v1561 = vpop.permute.xlu0 %1560
      %1562 = vrot.lane.b32.xlu0 %v1539, 32
      %v1563 = vpop.permute.xlu0 %1562
      %v1564 = vsel %vm385, %v1559, %v1561
      %v1565 = vsel %vm385, %v1561, %v1563
      %v1568 = vmul.f32 %v1556, %v1564
      %v1569 = vmul.f32 %v1556, %v1565
      %v1570 = vadd.f32 %v1495, %v1568
      %v1571 = vadd.f32 %v1496, %v1569
      %1572 = vset.pattern.permute.xlu0 56
      %1573 = vperm.xlu0 %1572, %v332
      %v1574 = vpop.permute.xlu0 %1573
      %1576 = vrot.lane.b32.xlu0 %v1533, 30
      %v1577 = vpop.permute.xlu0 %1576
      %1578 = vrot.lane.b32.xlu0 %v1536, 30
      %v1579 = vpop.permute.xlu0 %1578
      %1580 = vrot.lane.b32.xlu0 %v1539, 30
      %v1581 = vpop.permute.xlu0 %1580
      %v1582 = vsel %vm404, %v1577, %v1579
      %v1583 = vsel %vm404, %v1579, %v1581
      %v1586 = vmul.f32 %v1574, %v1582
      %v1587 = vmul.f32 %v1574, %v1583
      %v1588 = vadd.f32 %v1513, %v1586
      %v1589 = vadd.f32 %v1514, %v1587
      %1590 = vset.pattern.permute.xlu0 57
      %1591 = vperm.xlu0 %1590, %v332
      %v1592 = vpop.permute.xlu0 %1591
      %1594 = vrot.lane.b32.xlu0 %v1533, 2
      %v1595 = vpop.permute.xlu0 %1594
      %1596 = vrot.lane.b32.xlu0 %v1536, 2
      %v1597 = vpop.permute.xlu0 %1596
      %1598 = vrot.lane.b32.xlu0 %v1539, 2
      %v1599 = vpop.permute.xlu0 %1598
      %v1600 = vsel %vm423, %v1595, %v1597
      %v1601 = vsel %vm423, %v1597, %v1599
      %v1604 = vmul.f32 %v1592, %v1600
      %v1605 = vmul.f32 %v1592, %v1601
      %v1606 = vadd.f32 %v1552, %v1604
      %v1607 = vadd.f32 %v1553, %v1605
      %1608 = vset.pattern.permute.xlu0 58
      %1609 = vperm.xlu0 %1608, %v332
      %v1610 = vpop.permute.xlu0 %1609
      %v1614 = vmul.f32 %v1610, %v1536
      %v1615 = vmul.f32 %v1610, %v1539
      %v1616 = vadd.f32 %v1570, %v1614
      %v1617 = vadd.f32 %v1571, %v1615
      %v1618 = vld [vmem:[#allocation2 + $0x28] sm:$0xc0]
      %v1619 = vld [vmem:[#allocation2 + $0x30] sm:$0xc0]
      %v1620 = vld [vmem:[#allocation2 + $0x38] sm:$0xc0]
      %v1621 = vld [vmem:[#allocation2 + $0x48] sm:$0x3f]
      %v1622 = vld [vmem:[#allocation2 + $0x50] sm:$0x3f]
      %v1623 = vld [vmem:[#allocation2 + $0x58] sm:$0x3f]
      %1624 = vset.pattern.permute.xlu0 59
      %1625 = vperm.xlu0 %1624, %v332
      %v1626 = vpop.permute.xlu0 %1625
      %v1634 = vrot.slane %v1618, 6
      %v1635 = vrot.slane %v1621, 6
      %v1636 = vsel %vm752, %v1634, %v1635
      %v1637 = vrot.slane %v1619, 6
      %v1638 = vrot.slane %v1622, 6
      %v1639 = vsel %vm752, %v1637, %v1638
      %v1640 = vrot.slane %v1620, 6
      %v1641 = vrot.slane %v1623, 6
      %v1642 = vsel %vm752, %v1640, %v1641
      %1643 = vrot.lane.b32.xlu0 %v1636, 126
      %v1644 = vpop.permute.xlu0 %1643
      %1645 = vrot.lane.b32.xlu0 %v1639, 126
      %v1646 = vpop.permute.xlu0 %1645
      %1647 = vrot.lane.b32.xlu0 %v1642, 126
      %v1648 = vpop.permute.xlu0 %1647
      %v1649 = vsel %vm473, %v1644, %v1646
      %v1650 = vsel %vm473, %v1646, %v1648
      %v1653 = vmul.f32 %v1626, %v1649
      %v1654 = vmul.f32 %v1626, %v1650
      %v1655 = vadd.f32 %v1588, %v1653
      %v1656 = vadd.f32 %v1589, %v1654
      %1657 = vset.pattern.permute.xlu0 60
      %1658 = vperm.xlu0 %1657, %v332
      %v1659 = vpop.permute.xlu0 %1658
      %1661 = vrot.lane.b32.xlu0 %v1636, 98
      %v1662 = vpop.permute.xlu0 %1661
      %1663 = vrot.lane.b32.xlu0 %v1639, 98
      %v1664 = vpop.permute.xlu0 %1663
      %1665 = vrot.lane.b32.xlu0 %v1642, 98
      %v1666 = vpop.permute.xlu0 %1665
      %v1667 = vsel %vm492, %v1662, %v1664
      %v1668 = vsel %vm492, %v1664, %v1666
      %v1671 = vmul.f32 %v1659, %v1667
      %v1672 = vmul.f32 %v1659, %v1668
      %v1673 = vadd.f32 %v1606, %v1671
      %v1674 = vadd.f32 %v1607, %v1672
      %1675 = vset.pattern.permute.xlu0 61
      %1676 = vperm.xlu0 %1675, %v332
      %v1677 = vpop.permute.xlu0 %1676
      %1679 = vrot.lane.b32.xlu0 %v1636, 96
      %v1680 = vpop.permute.xlu0 %1679
      %1681 = vrot.lane.b32.xlu0 %v1639, 96
      %v1682 = vpop.permute.xlu0 %1681
      %1683 = vrot.lane.b32.xlu0 %v1642, 96
      %v1684 = vpop.permute.xlu0 %1683
      %v1685 = vsel %vm511, %v1680, %v1682
      %v1686 = vsel %vm511, %v1682, %v1684
      %v1689 = vmul.f32 %v1677, %v1685
      %v1690 = vmul.f32 %v1677, %v1686
      %v1691 = vadd.f32 %v1616, %v1689
      %v1692 = vadd.f32 %v1617, %v1690
      %1693 = vset.pattern.permute.xlu0 62
      %1694 = vperm.xlu0 %1693, %v332
      %v1695 = vpop.permute.xlu0 %1694
      %1697 = vrot.lane.b32.xlu0 %v1636, 94
      %v1698 = vpop.permute.xlu0 %1697
      %1699 = vrot.lane.b32.xlu0 %v1639, 94
      %v1700 = vpop.permute.xlu0 %1699
      %1701 = vrot.lane.b32.xlu0 %v1642, 94
      %v1702 = vpop.permute.xlu0 %1701
      %v1703 = vsel %vm530, %v1698, %v1700
      %v1704 = vsel %vm530, %v1700, %v1702
      %v1707 = vmul.f32 %v1695, %v1703
      %v1708 = vmul.f32 %v1695, %v1704
      %v1709 = vadd.f32 %v1655, %v1707
      %v1710 = vadd.f32 %v1656, %v1708
      %v1711 = vld [vmem:[%s3] ss:$4 sm:$0x3]
      %v1713 = vperm.slane %v1711, 0
      %v1714 = vperm.slane %v1711, 1
      %v1717 = vmul.f32 %v1673, %v1713
      %v1718 = vmul.f32 %v1674, %v1714
      %v1719 = vadd.f32 %v1717, %v1691
      %v1720 = vadd.f32 %v1718, %v1692
      %s1721 = scalar_lea.vmem %s3, 2
      %v1722 = vld [vmem:[%s1721] ss:$4 sm:$0x3]
      %v1724 = vperm.slane %v1722, 0
      %v1725 = vperm.slane %v1722, 1
      %v1728 = vmul.f32 %v1709, %v1724
      %v1729 = vmul.f32 %v1710, %v1725
      %v1730 = vadd.f32 %v1719, %v1728
      %v1731 = vadd.f32 %v1720, %v1729
      %v1732 = vld [vmem:[%s219] sm:$0xff]
      %v1733 = vld [vmem:[%s219 + $0x8] sm:$0xff]
      %v1734 = vadd.f32 %v1730, %v1732
      %v1735 = vadd.f32 %v1731, %v1733
      %1736 = vst [vmem:[%s224] sm:$0xff] %v1734
      %1737 = vst [vmem:[%s224 + $0x8] sm:$0xff] %v1735
      %p1738 = scmp.lt.s32.totalorder %s16, 1
      %s1739 = scalar_select %p1738, %s16, 1
      %s1740 = smul.addr %s1739, 2
      %s1741 = smul.addr %s1740, 8
      %s1742 = scalar_lea.vmem %s5, %s1741
      // Predicated region
      $region41: #{binary_dil_group_conv.1} parent=39 // pred_check
        %p1743 = pneg %p144
      $region42: #{binary_dil_group_conv.1} parent=39 // pred_check_branch
        %1745 = sbr.rel (%p1743) target = $region44
      $region43: #{binary_dil_group_conv.1} parent=39 // pred_region
        _
      $region44: #{binary_dil_group_conv.1} parent=39 // pred_fallthru
        _
    $region40: #{binary_dil_group_conv.1} parent=5 // pred_fallthru
      _
    %p1746 = scmp.le.s32.totalorder 2, %s11
    // Predicated region
    $region45: #{binary_dil_group_conv.1} parent=5 // pred_check
      %p1747 = pneg %p1746
    $region46: #{binary_dil_group_conv.1} parent=5 // pred_check_branch
      %1749 = sbr.rel (%p1747) target = $region48
    $region47: #{binary_dil_group_conv.1} parent=5 // pred_region
      %s1750 = ssub.s32 %s11, 2
      // Predicated region
      $region49: #{binary_dil_group_conv.1} parent=47 // pred_check
        %p1751 = pneg %p150
      $region50: #{binary_dil_group_conv.1} parent=47 // pred_check_branch
        %1753 = sbr.rel (%p1751) target = $region52
      $region51: #{binary_dil_group_conv.1} parent=47 // pred_region
        %p1754 = scmp.lt.s32.totalorder %s17, 1
        %s1755 = scalar_select %p1754, %s17, 1
        %s1756 = smul.addr %s1755, 2
        %s1757 = smul.addr %s1756, 8
        %s1758 = scalar_lea.vmem %s5, %s1757
      $region52: #{binary_dil_group_conv.1} parent=47 // pred_fallthru
        _
    $region48: #{binary_dil_group_conv.1} parent=5 // pred_fallthru
      _
  $region6: #{binary_dil_group_conv.1} parent=0 // loop_footer
    %s15 = sadd.s32 1, %s11
  $region7: #{binary_dil_group_conv.1} parent=0 // loop_footer_branch
    %10 = sbr.rel target = $region3
  $region8: #{binary_dil_group_conv.1} parent=0 // loop_exit
    _

// kernel: binary_dil_group_conv.1
$region0: #{binary_dil_group_conv.1}
  #allocation0 [shape = 'u32[]', space=smem, size = 0x4, offset = 0x4, fixed_abs, tag = 'smem constant byte address 0x4 - core index']
  #allocation1 [shape = 'u32[72,128]{1,0:T(1,128)}', space=vmem, size = 0x9000, scoped, tag = 'internal scratch']
  #allocation2 [shape = 'f32[24,512]{1,0:T(8,128)}', space=vmem, size = 0xc000, scoped, tag = 'scratch operand']
  %s0 = inlined_call_operand.vmem [shape: f32[8,1], index: 0, kind: input, shape index: {}]
  %s1 = inlined_call_operand.vmem [shape: f32[8,1], index: 1, kind: input, shape index: {}]
  %s2 = inlined_call_operand.vmem [shape: f32[8,63], index: 2, kind: input, shape index: {}]
  %s3 = inlined_call_operand.vmem [shape: f32[3,256], index: 3, kind: input, shape index: {}]
  %s4 = inlined_call_operand.vmem [shape: f32[2,8,256], index: 4, kind: input, shape index: {}]
  %s5 = inlined_call_operand.vmem [shape: f32[2,8,256], index: 5, kind: output, shape index: {}]
  %s6 = sld [smem:[#allocation0]]
  $region53: #{binary_dil_group_conv.1} parent=0
    _
  %s8 = ssub.s32 1, %s6
  %s9 = scalar_select 0, %s8, %s6
  loop: start=0, step=1, limit=4
  $region2: #{binary_dil_group_conv.1} parent=0 // loop_pre_header
    _
  $region3: #{binary_dil_group_conv.1} parent=0 // loop_header
    %s11 = sphi 0, %s15
    %p12 = scmp.ge.s32.totalorder %s11, 4
    %s19 = sphi 0, %s19
    %s21 = sphi 0, %s19
    %s22 = sphi 0, %s21
    %s36 = sphi 0, %s22
    %s40 = sphi 0, %s40
    %s42 = sphi 0, %s40
    %s43 = sphi 0, %s42
    %s57 = sphi 0, %s43
    %s61 = sphi 0, %s61
    %s63 = sphi 0, %s61
    %s64 = sphi 0, %s63
    %s78 = sphi 0, %s64
    %s82 = sphi 0, %s82
    %s84 = sphi 0, %s82
    %s85 = sphi 0, %s84
    %s99 = sphi 0, %s85
    %s105 = sphi 0, %s107
    %s108 = sphi 0, %s105
    %s109 = sphi 0, %s108
    %s125 = sphi 0, %s109
    %s131 = sphi 0, %s133
    %s134 = sphi 0, %s131
    %s135 = sphi 0, %s134
    %s151 = sphi 0, %s135
  $region4: #{binary_dil_group_conv.1} parent=0 // loop_header_branch
    %14 = sbr.rel (%p12) target = $region8
  $region5: #{binary_dil_group_conv.1} parent=0 // loop_body
    %s16 = ssub.s32 %s11, 1
    %s17 = ssub.s32 %s11, 2
    %s18 = sadd.s32 %s11, 1
    %s20 = sadd.s32 %s19, 1
    %p23 = scmp.eq.s32.totalorder %s11, 1
    %p24 = scmp.ne.s32.totalorder %s19, %s21
    %p25 = scmp.eq.s32.totalorder %s11, 0
    %p26 = por %p24, %p25
    %p27 = scmp.ne.s32.totalorder %s19, %s21
    %p28 = scmp.eq.s32.totalorder %s16, 1
    %p29 = por %p27, %p28
    %p30 = scmp.ne.s32.totalorder %s21, %s22
    %p31 = scmp.eq.s32.totalorder %s16, 0
    %p32 = por %p30, %p31
    %p33 = scmp.ne.s32.totalorder %s21, %s22
    %p34 = scmp.eq.s32.totalorder %s17, 1
    %p35 = por %p33, %p34
    %p37 = scmp.ne.s32.totalorder %s22, %s36
    %p38 = scmp.eq.s32.totalorder %s17, 0
    %p39 = por %p37, %p38
    %s41 = sadd.s32 %s40, 1
    %p44 = scmp.eq.s32.totalorder %s11, 1
    %p45 = scmp.ne.s32.totalorder %s40, %s42
    %p46 = scmp.eq.s32.totalorder %s11, 0
    %p47 = por %p45, %p46
    %p48 = scmp.ne.s32.totalorder %s40, %s42
    %p49 = scmp.eq.s32.totalorder %s16, 1
    %p50 = por %p48, %p49
    %p51 = scmp.ne.s32.totalorder %s42, %s43
    %p52 = scmp.eq.s32.totalorder %s16, 0
    %p53 = por %p51, %p52
    %p54 = scmp.ne.s32.totalorder %s42, %s43
    %p55 = scmp.eq.s32.totalorder %s17, 1
    %p56 = por %p54, %p55
    %p58 = scmp.ne.s32.totalorder %s43, %s57
    %p59 = scmp.eq.s32.totalorder %s17, 0
    %p60 = por %p58, %p59
    %s62 = sadd.s32 %s61, 1
    %p65 = scmp.eq.s32.totalorder %s11, 1
    %p66 = scmp.ne.s32.totalorder %s61, %s63
    %p67 = scmp.eq.s32.totalorder %s11, 0
    %p68 = por %p66, %p67
    %p69 = scmp.ne.s32.totalorder %s61, %s63
    %p70 = scmp.eq.s32.totalorder %s16, 1
    %p71 = por %p69, %p70
    %p72 = scmp.ne.s32.totalorder %s63, %s64
    %p73 = scmp.eq.s32.totalorder %s16, 0
    %p74 = por %p72, %p73
    %p75 = scmp.ne.s32.totalorder %s63, %s64
    %p76 = scmp.eq.s32.totalorder %s17, 1
    %p77 = por %p75, %p76
    %p79 = scmp.ne.s32.totalorder %s64, %s78
    %p80 = scmp.eq.s32.totalorder %s17, 0
    %p81 = por %p79, %p80
    %s83 = sadd.s32 %s82, 1
    %p86 = scmp.eq.s32.totalorder %s11, 1
    %p87 = scmp.ne.s32.totalorder %s82, %s84
    %p88 = scmp.eq.s32.totalorder %s11, 0
    %p89 = por %p87, %p88
    %p90 = scmp.ne.s32.totalorder %s82, %s84
    %p91 = scmp.eq.s32.totalorder %s16, 1
    %p92 = por %p90, %p91
    %p93 = scmp.ne.s32.totalorder %s84, %s85
    %p94 = scmp.eq.s32.totalorder %s16, 0
    %p95 = por %p93, %p94
    %p96 = scmp.ne.s32.totalorder %s84, %s85
    %p97 = scmp.eq.s32.totalorder %s17, 1
    %p98 = por %p96, %p97
    %p100 = scmp.ne.s32.totalorder %s85, %s99
    %p101 = scmp.eq.s32.totalorder %s17, 0
    %p102 = por %p100, %p101
    %s103 = ssub.s32 %s11, %s18
    %p104 = scmp.eq.s32.totalorder %s103, 0
    %s106 = sadd.s32 %s105, 1
    %s107 = scalar_select %p104, %s105, %s106
    %p110 = pneg %p104
    %p111 = scmp.eq.s32.totalorder %s11, 1
    %p112 = por %p110, %p111
    %p113 = scmp.ne.s32.totalorder %s105, %s108
    %p114 = scmp.eq.s32.totalorder %s11, 0
    %p115 = por %p113, %p114
    %p116 = scmp.ne.s32.totalorder %s105, %s108
    %p117 = scmp.eq.s32.totalorder %s16, 1
    %p118 = por %p116, %p117
    %p119 = scmp.ne.s32.totalorder %s108, %s109
    %p120 = scmp.eq.s32.totalorder %s16, 0
    %p121 = por %p119, %p120
    %p122 = scmp.ne.s32.totalorder %s108, %s109
    %p123 = scmp.eq.s32.totalorder %s17, 1
    %p124 = por %p122, %p123
    %p126 = scmp.ne.s32.totalorder %s109, %s125
    %p127 = scmp.eq.s32.totalorder %s17, 0
    %p128 = por %p126, %p127
    %s129 = ssub.s32 %s11, %s18
    %p130 = scmp.eq.s32.totalorder %s129, 0
    %s132 = sadd.s32 %s131, 1
    %s133 = scalar_select %p130, %s131, %s132
    %p136 = pneg %p130
    %p137 = scmp.eq.s32.totalorder %s11, 1
    %p138 = por %p136, %p137
    %p139 = scmp.ne.s32.totalorder %s131, %s134
    %p140 = scmp.eq.s32.totalorder %s11, 0
    %p141 = por %p139, %p140
    %p142 = scmp.ne.s32.totalorder %s131, %s134
    %p143 = scmp.eq.s32.totalorder %s16, 1
    %p144 = por %p142, %p143
    %p145 = scmp.ne.s32.totalorder %s134, %s135
    %p146 = scmp.eq.s32.totalorder %s16, 0
    %p147 = por %p145, %p146
    %p148 = scmp.ne.s32.totalorder %s134, %s135
    %p149 = scmp.eq.s32.totalorder %s17, 1
    %p150 = por %p148, %p149
    %p152 = scmp.ne.s32.totalorder %s135, %s151
    %p153 = scmp.eq.s32.totalorder %s17, 0
    %p154 = por %p152, %p153
    %p155 = scmp.le.s32.totalorder 1, %s11
    %p156 = scmp.lt.s32.totalorder %s11, 3
    %p157 = pnand %p155, %p156
    %p158 = pneg %p157
    // Predicated region
    $region9: #{binary_dil_group_conv.1} parent=5 // pred_check
      _
    $region10: #{binary_dil_group_conv.1} parent=5 // pred_check_branch
      %160 = sbr.rel (%p157) target = $region12
    $region11: #{binary_dil_group_conv.1} parent=5 // pred_region
      %s161 = ssub.s32 %s11, 1
      // Predicated region
      $region13: #{binary_dil_group_conv.1} parent=11 // pred_check
        %p162 = pneg %p32
      $region14: #{binary_dil_group_conv.1} parent=11 // pred_check_branch
        %164 = sbr.rel (%p162) target = $region16
      $region15: #{binary_dil_group_conv.1} parent=11 // pred_region
        _
      $region16: #{binary_dil_group_conv.1} parent=11 // pred_fallthru
        _
      // Predicated region
      $region17: #{binary_dil_group_conv.1} parent=11 // pred_check
        %p165 = pneg %p53
      $region18: #{binary_dil_group_conv.1} parent=11 // pred_check_branch
        %167 = sbr.rel (%p165) target = $region20
      $region19: #{binary_dil_group_conv.1} parent=11 // pred_region
        _
      $region20: #{binary_dil_group_conv.1} parent=11 // pred_fallthru
        _
      // Predicated region
      $region21: #{binary_dil_group_conv.1} parent=11 // pred_check
        %p168 = pneg %p74
      $region22: #{binary_dil_group_conv.1} parent=11 // pred_check_branch
        %170 = sbr.rel (%p168) target = $region24
      $region23: #{binary_dil_group_conv.1} parent=11 // pred_region
        _
      $region24: #{binary_dil_group_conv.1} parent=11 // pred_fallthru
        _
      // Predicated region
      $region25: #{binary_dil_group_conv.1} parent=11 // pred_check
        %p171 = pneg %p95
      $region26: #{binary_dil_group_conv.1} parent=11 // pred_check_branch
        %173 = sbr.rel (%p171) target = $region28
      $region27: #{binary_dil_group_conv.1} parent=11 // pred_region
        _
      $region28: #{binary_dil_group_conv.1} parent=11 // pred_fallthru
        _
    $region12: #{binary_dil_group_conv.1} parent=5 // pred_fallthru
      _
    %p174 = scmp.lt.s32.totalorder %s11, 2
    // Predicated region
    $region29: #{binary_dil_group_conv.1} parent=5 // pred_check
      %p175 = pneg %p174
    $region30: #{binary_dil_group_conv.1} parent=5 // pred_check_branch
      %177 = sbr.rel (%p175) target = $region32
    $region31: #{binary_dil_group_conv.1} parent=5 // pred_region
      // Predicated region
      $region33: #{binary_dil_group_conv.1} parent=31 // pred_check
        %p178 = pneg %p115
      $region34: #{binary_dil_group_conv.1} parent=31 // pred_check_branch
        %180 = sbr.rel (%p178) target = $region36
      $region35: #{binary_dil_group_conv.1} parent=31 // pred_region
        %p181 = scmp.lt.s32.totalorder %s11, 1
        %s182 = scalar_select %p181, %s11, 1
        %s183 = smul.addr %s182, 2
        %s184 = smul.addr %s183, 8
        %s185 = scalar_lea.vmem %s4, %s184
      $region36: #{binary_dil_group_conv.1} parent=31 // pred_fallthru
        _
    $region32: #{binary_dil_group_conv.1} parent=5 // pred_fallthru
      _
    %p186 = scmp.le.s32.totalorder 1, %s11
    %p187 = scmp.lt.s32.totalorder %s11, 3
    %p188 = pnand %p186, %p187
    %p189 = pneg %p188
    // Predicated region
    $region37: #{binary_dil_group_conv.1} parent=5 // pred_check
      _
    $region38: #{binary_dil_group_conv.1} parent=5 // pred_check_branch
      %191 = sbr.rel (%p188) target = $region40
    $region39: #{binary_dil_group_conv.1} parent=5 // pred_region
      %s192 = ssub.s32 %s11, 1
      %p193 = pneg %p32
      %p194 = pneg %p29
      %p195 = pneg %p53
      %p196 = pneg %p50
      %p197 = pneg %p74
      %p198 = pneg %p71
      %p199 = pneg %p95
      %p200 = pneg %p92
      %p201 = scmp.lt.s32.totalorder %s16, 1
      %s202 = scalar_select %p201, %s16, 1
      %s203 = smul.addr %s202, 2
      %s204 = smul.addr %s203, 8
      %s205 = scalar_lea.vmem %s4, %s204
      %p206 = pneg %p121
      %p207 = pneg %p118
      %p208 = pneg %p147
      %p209 = pneg %p144
      %p210 = scmp.lt.s32.totalorder %s16, 1
      %s211 = scalar_select %p210, %s16, 1
      %s212 = smul.addr %s211, 2
      %s213 = smul.addr %s212, 8
      %s214 = scalar_lea.vmem %s5, %s213
      %p215 = scmp.lt.s32.totalorder %s16, 1
      %s216 = scalar_select %p215, %s16, 1
      %s217 = smul.addr %s216, 2
      %s218 = smul.addr %s217, 8
      %s219 = scalar_lea.vmem %s4, %s218
      %p220 = scmp.lt.s32.totalorder %s16, 1
      %s221 = scalar_select %p220, %s16, 1
      %s222 = smul.addr %s221, 2
      %s223 = smul.addr %s222, 8
      %s224 = scalar_lea.vmem %s5, %s223
      %225 = vst [vmem:[#allocation2] sm:$0xff] 0.0
      %226 = vst [vmem:[#allocation2 + $0x8] sm:$0xff] 0.0
      %227 = vst [vmem:[#allocation2 + $0x10] sm:$0xff] 0.0
      %228 = vst [vmem:[#allocation2 + $0x18] sm:$0xff] 0.0
      %229 = vst [vmem:[#allocation2 + $0x20] sm:$0xff] 0.0
      %230 = vst [vmem:[#allocation2 + $0x28] sm:$0xff] 0.0
      %231 = vst [vmem:[#allocation2 + $0x30] sm:$0xff] 0.0
      %232 = vst [vmem:[#allocation2 + $0x38] sm:$0xff] 0.0
      %233 = vst [vmem:[#allocation2 + $0x40] sm:$0xff] 0.0
      %234 = vst [vmem:[#allocation2 + $0x48] sm:$0xff] 0.0
      %235 = vst [vmem:[#allocation2 + $0x50] sm:$0xff] 0.0
      %236 = vst [vmem:[#allocation2 + $0x58] sm:$0xff] 0.0
      %v237 = vld [vmem:[%s219] sm:$0xff]
      %v238 = vld [vmem:[%s219 + $0x8] sm:$0xff]
      %v239 = vld [vmem:[%s0] sm:$0xff]
      %241 = vset.pattern.permute.xlu0 0
      %242 = vperm.xlu0 %241, %v239
      %v243 = vpop.permute.xlu0 %242
      %v245 = vmul.f32 %v237, %v243
      %v246 = vmul.f32 %v238, %v243
      %v247 = vld [vmem:[%s1] sm:$0xff]
      %249 = vset.pattern.permute.xlu0 0
      %250 = vperm.xlu0 %249, %v247
      %v251 = vpop.permute.xlu0 %250
      %v253 = vadd.f32 %v245, %v251
      %v254 = vadd.f32 %v246, %v251
      %vm255 = vcmp.gt.f32.partialorder %v253, 0.0
      %vm256 = vcmp.gt.f32.partialorder %v254, 0.0
      %vm257 = vcmp.lt.f32.partialorder %v253, 0.0
      %vm258 = vcmp.lt.f32.partialorder %v254, 0.0
      %v259 = vsel %vm257, -1.0, 0.0
      %v260 = vsel %vm258, -1.0, 0.0
      %v261 = vsel %vm255, 1.0, %v259
      %v262 = vsel %vm256, 1.0, %v260
      %v265 = vrot.slane %v262, 7
      %vm266 = vcmask 1040384
      %v267 = vsel %vm266, %v261, %v265
      %v269 = vlaneseq
      %vm270 = vcmp.ge.s32.totalorder %v269, 0
      %vm271 = vcmp.lt.s32.totalorder %v269, 256
      %vm272 = vmand %vm270, %vm271
      %s273 = scalar_lea.vmem [#allocation2], 40
      %274 = vst.msk [vmem:[%s273] ss:$8 sm:$0x3] %vm272, %v267
      %275 = vst.msk [vmem:[%s273] ss:$8 sm:$0x0] %vm272, %v267
      %276 = vst [vmem:[#allocation1] sm:$0xff] %v261
      %277 = vst [vmem:[#allocation1 + $0x9] sm:$0xff] %v262
      %s278 = scalar_lea.vmem [#allocation1], 4
      %v279 = vld [vmem:[%s278] ss:$9 sm:$0xff]
      %s281 = scalar_lea.vmem [#allocation2], 41
      %282 = vst.msk [vmem:[%s281] ss:$8 sm:$0x3] %vm272, %v279
      %283 = vst.msk [vmem:[%s281] ss:$8 sm:$0x0] %vm272, %v279
      %284 = vst [vmem:[#allocation1] sm:$0xff] %v261
      %285 = vst [vmem:[#allocation1 + $0x9] sm:$0xff] %v262
      %s286 = scalar_lea.vmem [#allocation1], 1
      %v287 = vld [vmem:[%s286] ss:$9 sm:$0xff]
      %s289 = scalar_lea.vmem [#allocation2], 42
      %290 = vst.msk [vmem:[%s289] ss:$8 sm:$0x3] %vm272, %v287
      %291 = vst.msk [vmem:[%s289] ss:$8 sm:$0x0] %vm272, %v287
      %292 = vst [vmem:[#allocation1] sm:$0xff] %v261
      %293 = vst [vmem:[#allocation1 + $0x9] sm:$0xff] %v262
      %s294 = scalar_lea.vmem [#allocation1], 5
      %v295 = vld [vmem:[%s294] ss:$9 sm:$0xff]
      %s297 = scalar_lea.vmem [#allocation2], 43
      %298 = vst.msk [vmem:[%s297] ss:$8 sm:$0x3] %vm272, %v295
      %299 = vst.msk [vmem:[%s297] ss:$8 sm:$0x0] %vm272, %v295
      %300 = vst [vmem:[#allocation1] sm:$0xff] %v261
      %301 = vst [vmem:[#allocation1 + $0x9] sm:$0xff] %v262
      %s302 = scalar_lea.vmem [#allocation1], 2
      %v303 = vld [vmem:[%s302] ss:$9 sm:$0xff]
      %s305 = scalar_lea.vmem [#allocation2], 44
      %306 = vst.msk [vmem:[%s305] ss:$8 sm:$0x3] %vm272, %v303
      %307 = vst.msk [vmem:[%s305] ss:$8 sm:$0x0] %vm272, %v303
      %308 = vst [vmem:[#allocation1] sm:$0xff] %v261
      %309 = vst [vmem:[#allocation1 + $0x9] sm:$0xff] %v262
      %s310 = scalar_lea.vmem [#allocation1], 6
      %v311 = vld [vmem:[%s310] ss:$9 sm:$0xff]
      %s313 = scalar_lea.vmem [#allocation2], 45
      %314 = vst.msk [vmem:[%s313] ss:$8 sm:$0x3] %vm272, %v311
      %315 = vst.msk [vmem:[%s313] ss:$8 sm:$0x0] %vm272, %v311
      %316 = vst [vmem:[#allocation1] sm:$0xff] %v261
      %317 = vst [vmem:[#allocation1 + $0x9] sm:$0xff] %v262
      %s318 = scalar_lea.vmem [#allocation1], 3
      %v319 = vld [vmem:[%s318] ss:$9 sm:$0xff]
      %s321 = scalar_lea.vmem [#allocation2], 46
      %322 = vst.msk [vmem:[%s321] ss:$8 sm:$0x3] %vm272, %v319
      %323 = vst.msk [vmem:[%s321] ss:$8 sm:$0x0] %vm272, %v319
      %324 = vst [vmem:[#allocation1] sm:$0xff] %v261
      %325 = vst [vmem:[#allocation1 + $0x9] sm:$0xff] %v262
      %s326 = scalar_lea.vmem [#allocation1], 7
      %v327 = vld [vmem:[%s326] ss:$9 sm:$0xff]
      %s329 = scalar_lea.vmem [#allocation2], 47
      %330 = vst.msk [vmem:[%s329] ss:$8 sm:$0x3] %vm272, %v327
      %331 = vst.msk [vmem:[%s329] ss:$8 sm:$0x0] %vm272, %v327
      %v332 = vld [vmem:[%s2] sm:$0xff]
      %v333 = vld [vmem:[#allocation2] sm:$0xfc]
      %v334 = vld [vmem:[#allocation2 + $0x8] sm:$0xfc]
      %v335 = vld [vmem:[#allocation2 + $0x10] sm:$0xfc]
      %v336 = vld [vmem:[#allocation2 + $0x20] sm:$0x3]
      %v337 = vld [vmem:[#allocation2 + $0x28] sm:$0x3]
      %v338 = vld [vmem:[#allocation2 + $0x30] sm:$0x3]
      %340 = vset.pattern.permute.xlu0 0
      %341 = vperm.xlu0 %340, %v332
      %v342 = vpop.permute.xlu0 %341
      %vm350 = vcmask 1045504
      %v351 = vrot.slane %v333, 2
      %v352 = vrot.slane %v336, 2
      %v353 = vsel %vm350, %v351, %v352
      %v354 = vrot.slane %v334, 2
      %v355 = vrot.slane %v337, 2
      %v356 = vsel %vm350, %v354, %v355
      %v357 = vrot.slane %v335, 2
      %v358 = vrot.slane %v338, 2
      %v359 = vsel %vm350, %v357, %v358
      %360 = vrot.lane.b32.xlu0 %v353, 34
      %v361 = vpop.permute.xlu0 %360
      %362 = vrot.lane.b32.xlu0 %v356, 34
      %v363 = vpop.permute.xlu0 %362
      %364 = vrot.lane.b32.xlu0 %v359, 34
      %v365 = vpop.permute.xlu0 %364
      %vm366 = vcmask 277504
      %v367 = vsel %vm366, %v361, %v363
      %v368 = vsel %vm366, %v363, %v365
      %v371 = vmul.f32 %v342, %v367
      %v372 = vmul.f32 %v342, %v368
      %v373 = vadd.f32 %v371, 0.0
      %v374 = vadd.f32 %v372, 0.0
      %375 = vset.pattern.permute.xlu0 1
      %376 = vperm.xlu0 %375, %v332
      %v377 = vpop.permute.xlu0 %376
      %379 = vrot.lane.b32.xlu0 %v353, 32
      %v380 = vpop.permute.xlu0 %379
      %381 = vrot.lane.b32.xlu0 %v356, 32
      %v382 = vpop.permute.xlu0 %381
      %383 = vrot.lane.b32.xlu0 %v359, 32
      %v384 = vpop.permute.xlu0 %383
      %vm385 = vcmask 261120
      %v386 = vsel %vm385, %v380, %v382
      %v387 = vsel %vm385, %v382, %v384
      %v390 = vmul.f32 %v377, %v386
      %v391 = vmul.f32 %v377, %v387
      %v392 = vadd.f32 %v390, 0.0
      %v393 = vadd.f32 %v391, 0.0
      %394 = vset.pattern.permute.xlu0 2
      %395 = vperm.xlu0 %394, %v332
      %v396 = vpop.permute.xlu0 %395
      %398 = vrot.lane.b32.xlu0 %v353, 30
      %v399 = vpop.permute.xlu0 %398
      %400 = vrot.lane.b32.xlu0 %v356, 30
      %v401 = vpop.permute.xlu0 %400
      %402 = vrot.lane.b32.xlu0 %v359, 30
      %v403 = vpop.permute.xlu0 %402
      %vm404 = vcmask 244736
      %v405 = vsel %vm404, %v399, %v401
      %v406 = vsel %vm404, %v401, %v403
      %v409 = vmul.f32 %v396, %v405
      %v410 = vmul.f32 %v396, %v406
      %v411 = vadd.f32 %v409, 0.0
      %v412 = vadd.f32 %v410, 0.0
      %413 = vset.pattern.permute.xlu0 3
      %414 = vperm.xlu0 %413, %v332
      %v415 = vpop.permute.xlu0 %414
      %417 = vrot.lane.b32.xlu0 %v353, 2
      %v418 = vpop.permute.xlu0 %417
      %419 = vrot.lane.b32.xlu0 %v356, 2
      %v420 = vpop.permute.xlu0 %419
      %421 = vrot.lane.b32.xlu0 %v359, 2
      %v422 = vpop.permute.xlu0 %421
      %vm423 = vcmask 15360
      %v424 = vsel %vm423, %v418, %v420
      %v425 = vsel %vm423, %v420, %v422
      %v428 = vmul.f32 %v415, %v424
      %v429 = vmul.f32 %v415, %v425
      %v430 = vadd.f32 %v373, %v428
      %v431 = vadd.f32 %v374, %v429
      %432 = vset.pattern.permute.xlu0 4
      %433 = vperm.xlu0 %432, %v332
      %v434 = vpop.permute.xlu0 %433
      %v438 = vmul.f32 %v434, %v356
      %v439 = vmul.f32 %v434, %v359
      %v440 = vadd.f32 %v392, %v438
      %v441 = vadd.f32 %v393, %v439
      %v442 = vld [vmem:[#allocation2 + $0x8] sm:$0xfc]
      %v443 = vld [vmem:[#allocation2 + $0x10] sm:$0xfc]
      %v444 = vld [vmem:[#allocation2 + $0x18] sm:$0xfc]
      %v445 = vld [vmem:[#allocation2 + $0x28] sm:$0x3]
      %v446 = vld [vmem:[#allocation2 + $0x30] sm:$0x3]
      %v447 = vld [vmem:[#allocation2 + $0x38] sm:$0x3]
      %448 = vset.pattern.permute.xlu0 5
      %449 = vperm.xlu0 %448, %v332
      %v450 = vpop.permute.xlu0 %449
      %v458 = vrot.slane %v442, 2
      %v459 = vrot.slane %v445, 2
      %v460 = vsel %vm350, %v458, %v459
      %v461 = vrot.slane %v443, 2
      %v462 = vrot.slane %v446, 2
      %v463 = vsel %vm350, %v461, %v462
      %v464 = vrot.slane %v444, 2
      %v465 = vrot.slane %v447, 2
      %v466 = vsel %vm350, %v464, %v465
      %467 = vrot.lane.b32.xlu0 %v460, 126
      %v468 = vpop.permute.xlu0 %467
      %469 = vrot.lane.b32.xlu0 %v463, 126
      %v470 = vpop.permute.xlu0 %469
      %471 = vrot.lane.b32.xlu0 %v466, 126
      %v472 = vpop.permute.xlu0 %471
      %vm473 = vcmask 1031168
      %v474 = vsel %vm473, %v468, %v470
      %v475 = vsel %vm473, %v470, %v472
      %v478 = vmul.f32 %v450, %v474
      %v479 = vmul.f32 %v450, %v475
      %v480 = vadd.f32 %v411, %v478
      %v481 = vadd.f32 %v412, %v479
      %482 = vset.pattern.permute.xlu0 6
      %483 = vperm.xlu0 %482, %v332
      %v484 = vpop.permute.xlu0 %483
      %486 = vrot.lane.b32.xlu0 %v460, 98
      %v487 = vpop.permute.xlu0 %486
      %488 = vrot.lane.b32.xlu0 %v463, 98
      %v489 = vpop.permute.xlu0 %488
      %490 = vrot.lane.b32.xlu0 %v466, 98
      %v491 = vpop.permute.xlu0 %490
      %vm492 = vcmask 801792
      %v493 = vsel %vm492, %v487, %v489
      %v494 = vsel %vm492, %v489, %v491
      %v497 = vmul.f32 %v484, %v493
      %v498 = vmul.f32 %v484, %v494
      %v499 = vadd.f32 %v430, %v497
      %v500 = vadd.f32 %v431, %v498
      %501 = vset.pattern.permute.xlu0 7
      %502 = vperm.xlu0 %501, %v332
      %v503 = vpop.permute.xlu0 %502
      %505 = vrot.lane.b32.xlu0 %v460, 96
      %v506 = vpop.permute.xlu0 %505
      %507 = vrot.lane.b32.xlu0 %v463, 96
      %v508 = vpop.permute.xlu0 %507
      %509 = vrot.lane.b32.xlu0 %v466, 96
      %v510 = vpop.permute.xlu0 %509
      %vm511 = vcmask 785408
      %v512 = vsel %vm511, %v506, %v508
      %v513 = vsel %vm511, %v508, %v510
      %v516 = vmul.f32 %v503, %v512
      %v517 = vmul.f32 %v503, %v513
      %v518 = vadd.f32 %v440, %v516
      %v519 = vadd.f32 %v441, %v517
      %520 = vset.pattern.permute.xlu0 8
      %521 = vperm.xlu0 %520, %v332
      %v522 = vpop.permute.xlu0 %521
      %524 = vrot.lane.b32.xlu0 %v460, 94
      %v525 = vpop.permute.xlu0 %524
      %526 = vrot.lane.b32.xlu0 %v463, 94
      %v527 = vpop.permute.xlu0 %526
      %528 = vrot.lane.b32.xlu0 %v466, 94
      %v529 = vpop.permute.xlu0 %528
      %vm530 = vcmask 769024
      %v531 = vsel %vm530, %v525, %v527
      %v532 = vsel %vm530, %v527, %v529
      %v535 = vmul.f32 %v522, %v531
      %v536 = vmul.f32 %v522, %v532
      %v537 = vadd.f32 %v480, %v535
      %v538 = vadd.f32 %v481, %v536
      %v539 = vld [vmem:[#allocation2] sm:$0xf0]
      %v540 = vld [vmem:[#allocation2 + $0x8] sm:$0xf0]
      %v541 = vld [vmem:[#allocation2 + $0x10] sm:$0xf0]
      %v542 = vld [vmem:[#allocation2 + $0x20] sm:$0xf]
      %v543 = vld [vmem:[#allocation2 + $0x28] sm:$0xf]
      %v544 = vld [vmem:[#allocation2 + $0x30] sm:$0xf]
      %545 = vset.pattern.permute.xlu0 9
      %546 = vperm.xlu0 %545, %v332
      %v547 = vpop.permute.xlu0 %546
      %vm555 = vcmask 1043456
      %v556 = vrot.slane %v539, 4
      %v557 = vrot.slane %v542, 4
      %v558 = vsel %vm555, %v556, %v557
      %v559 = vrot.slane %v540, 4
      %v560 = vrot.slane %v543, 4
      %v561 = vsel %vm555, %v559, %v560
      %v562 = vrot.slane %v541, 4
      %v563 = vrot.slane %v544, 4
      %v564 = vsel %vm555, %v562, %v563
      %565 = vrot.lane.b32.xlu0 %v558, 34
      %v566 = vpop.permute.xlu0 %565
      %567 = vrot.lane.b32.xlu0 %v561, 34
      %v568 = vpop.permute.xlu0 %567
      %569 = vrot.lane.b32.xlu0 %v564, 34
      %v570 = vpop.permute.xlu0 %569
      %v571 = vsel %vm366, %v566, %v568
      %v572 = vsel %vm366, %v568, %v570
      %v575 = vmul.f32 %v547, %v571
      %v576 = vmul.f32 %v547, %v572
      %v577 = vadd.f32 %v499, %v575
      %v578 = vadd.f32 %v500, %v576
      %579 = vset.pattern.permute.xlu0 10
      %580 = vperm.xlu0 %579, %v332
      %v581 = vpop.permute.xlu0 %580
      %583 = vrot.lane.b32.xlu0 %v558, 32
      %v584 = vpop.permute.xlu0 %583
      %585 = vrot.lane.b32.xlu0 %v561, 32
      %v586 = vpop.permute.xlu0 %585
      %587 = vrot.lane.b32.xlu0 %v564, 32
      %v588 = vpop.permute.xlu0 %587
      %v589 = vsel %vm385, %v584, %v586
      %v590 = vsel %vm385, %v586, %v588
      %v593 = vmul.f32 %v581, %v589
      %v594 = vmul.f32 %v581, %v590
      %v595 = vadd.f32 %v518, %v593
      %v596 = vadd.f32 %v519, %v594
      %597 = vset.pattern.permute.xlu0 11
      %598 = vperm.xlu0 %597, %v332
      %v599 = vpop.permute.xlu0 %598
      %601 = vrot.lane.b32.xlu0 %v558, 30
      %v602 = vpop.permute.xlu0 %601
      %603 = vrot.lane.b32.xlu0 %v561, 30
      %v604 = vpop.permute.xlu0 %603
      %605 = vrot.lane.b32.xlu0 %v564, 30
      %v606 = vpop.permute.xlu0 %605
      %v607 = vsel %vm404, %v602, %v604
      %v608 = vsel %vm404, %v604, %v606
      %v611 = vmul.f32 %v599, %v607
      %v612 = vmul.f32 %v599, %v608
      %v613 = vadd.f32 %v537, %v611
      %v614 = vadd.f32 %v538, %v612
      %615 = vset.pattern.permute.xlu0 12
      %616 = vperm.xlu0 %615, %v332
      %v617 = vpop.permute.xlu0 %616
      %619 = vrot.lane.b32.xlu0 %v558, 2
      %v620 = vpop.permute.xlu0 %619
      %621 = vrot.lane.b32.xlu0 %v561, 2
      %v622 = vpop.permute.xlu0 %621
      %623 = vrot.lane.b32.xlu0 %v564, 2
      %v624 = vpop.permute.xlu0 %623
      %v625 = vsel %vm423, %v620, %v622
      %v626 = vsel %vm423, %v622, %v624
      %v629 = vmul.f32 %v617, %v625
      %v630 = vmul.f32 %v617, %v626
      %v631 = vadd.f32 %v577, %v629
      %v632 = vadd.f32 %v578, %v630
      %633 = vset.pattern.permute.xlu0 13
      %634 = vperm.xlu0 %633, %v332
      %v635 = vpop.permute.xlu0 %634
      %v639 = vmul.f32 %v635, %v561
      %v640 = vmul.f32 %v635, %v564
      %v641 = vadd.f32 %v595, %v639
      %v642 = vadd.f32 %v596, %v640
      %v643 = vld [vmem:[#allocation2 + $0x8] sm:$0xf0]
      %v644 = vld [vmem:[#allocation2 + $0x10] sm:$0xf0]
      %v645 = vld [vmem:[#allocation2 + $0x18] sm:$0xf0]
      %v646 = vld [vmem:[#allocation2 + $0x28] sm:$0xf]
      %v647 = vld [vmem:[#allocation2 + $0x30] sm:$0xf]
      %v648 = vld [vmem:[#allocation2 + $0x38] sm:$0xf]
      %649 = vset.pattern.permute.xlu0 14
      %650 = vperm.xlu0 %649, %v332
      %v651 = vpop.permute.xlu0 %650
      %v659 = vrot.slane %v643, 4
      %v660 = vrot.slane %v646, 4
      %v661 = vsel %vm555, %v659, %v660
      %v662 = vrot.slane %v644, 4
      %v663 = vrot.slane %v647, 4
      %v664 = vsel %vm555, %v662, %v663
      %v665 = vrot.slane %v645, 4
      %v666 = vrot.slane %v648, 4
      %v667 = vsel %vm555, %v665, %v666
      %668 = vrot.lane.b32.xlu0 %v661, 126
      %v669 = vpop.permute.xlu0 %668
      %670 = vrot.lane.b32.xlu0 %v664, 126
      %v671 = vpop.permute.xlu0 %670
      %672 = vrot.lane.b32.xlu0 %v667, 126
      %v673 = vpop.permute.xlu0 %672
      %v674 = vsel %vm473, %v669, %v671
      %v675 = vsel %vm473, %v671, %v673
      %v678 = vmul.f32 %v651, %v674
      %v679 = vmul.f32 %v651, %v675
      %v680 = vadd.f32 %v613, %v678
      %v681 = vadd.f32 %v614, %v679
      %682 = vset.pattern.permute.xlu0 15
      %683 = vperm.xlu0 %682, %v332
      %v684 = vpop.permute.xlu0 %683
      %686 = vrot.lane.b32.xlu0 %v661, 98
      %v687 = vpop.permute.xlu0 %686
      %688 = vrot.lane.b32.xlu0 %v664, 98
      %v689 = vpop.permute.xlu0 %688
      %690 = vrot.lane.b32.xlu0 %v667, 98
      %v691 = vpop.permute.xlu0 %690
      %v692 = vsel %vm492, %v687, %v689
      %v693 = vsel %vm492, %v689, %v691
      %v696 = vmul.f32 %v684, %v692
      %v697 = vmul.f32 %v684, %v693
      %v698 = vadd.f32 %v631, %v696
      %v699 = vadd.f32 %v632, %v697
      %700 = vset.pattern.permute.xlu0 16
      %701 = vperm.xlu0 %700, %v332
      %v702 = vpop.permute.xlu0 %701
      %704 = vrot.lane.b32.xlu0 %v661, 96
      %v705 = vpop.permute.xlu0 %704
      %706 = vrot.lane.b32.xlu0 %v664, 96
      %v707 = vpop.permute.xlu0 %706
      %708 = vrot.lane.b32.xlu0 %v667, 96
      %v709 = vpop.permute.xlu0 %708
      %v710 = vsel %vm511, %v705, %v707
      %v711 = vsel %vm511, %v707, %v709
      %v714 = vmul.f32 %v702, %v710
      %v715 = vmul.f32 %v702, %v711
      %v716 = vadd.f32 %v641, %v714
      %v717 = vadd.f32 %v642, %v715
      %718 = vset.pattern.permute.xlu0 17
      %719 = vperm.xlu0 %718, %v332
      %v720 = vpop.permute.xlu0 %719
      %722 = vrot.lane.b32.xlu0 %v661, 94
      %v723 = vpop.permute.xlu0 %722
      %724 = vrot.lane.b32.xlu0 %v664, 94
      %v725 = vpop.permute.xlu0 %724
      %726 = vrot.lane.b32.xlu0 %v667, 94
      %v727 = vpop.permute.xlu0 %726
      %v728 = vsel %vm530, %v723, %v725
      %v729 = vsel %vm530, %v725, %v727
      %v732 = vmul.f32 %v720, %v728
      %v733 = vmul.f32 %v720, %v729
      %v734 = vadd.f32 %v680, %v732
      %v735 = vadd.f32 %v681, %v733
      %v736 = vld [vmem:[#allocation2] sm:$0xc0]
      %v737 = vld [vmem:[#allocation2 + $0x8] sm:$0xc0]
      %v738 = vld [vmem:[#allocation2 + $0x10] sm:$0xc0]
      %v739 = vld [vmem:[#allocation2 + $0x20] sm:$0x3f]
      %v740 = vld [vmem:[#allocation2 + $0x28] sm:$0x3f]
      %v741 = vld [vmem:[#allocation2 + $0x30] sm:$0x3f]
      %742 = vset.pattern.permute.xlu0 18
      %743 = vperm.xlu0 %742, %v332
      %v744 = vpop.permute.xlu0 %743
      %vm752 = vcmask 1041408
      %v753 = vrot.slane %v736, 6
      %v754 = vrot.slane %v739, 6
      %v755 = vsel %vm752, %v753, %v754
      %v756 = vrot.slane %v737, 6
      %v757 = vrot.slane %v740, 6
      %v758 = vsel %vm752, %v756, %v757
      %v759 = vrot.slane %v738, 6
      %v760 = vrot.slane %v741, 6
      %v761 = vsel %vm752, %v759, %v760
      %762 = vrot.lane.b32.xlu0 %v755, 34
      %v763 = vpop.permute.xlu0 %762
      %764 = vrot.lane.b32.xlu0 %v758, 34
      %v765 = vpop.permute.xlu0 %764
      %766 = vrot.lane.b32.xlu0 %v761, 34
      %v767 = vpop.permute.xlu0 %766
      %v768 = vsel %vm366, %v763, %v765
      %v769 = vsel %vm366, %v765, %v767
      %v772 = vmul.f32 %v744, %v768
      %v773 = vmul.f32 %v744, %v769
      %v774 = vadd.f32 %v698, %v772
      %v775 = vadd.f32 %v699, %v773
      %776 = vset.pattern.permute.xlu0 19
      %777 = vperm.xlu0 %776, %v332
      %v778 = vpop.permute.xlu0 %777
      %780 = vrot.lane.b32.xlu0 %v755, 32
      %v781 = vpop.permute.xlu0 %780
      %782 = vrot.lane.b32.xlu0 %v758, 32
      %v783 = vpop.permute.xlu0 %782
      %784 = vrot.lane.b32.xlu0 %v761, 32
      %v785 = vpop.permute.xlu0 %784
      %v786 = vsel %vm385, %v781, %v783
      %v787 = vsel %vm385, %v783, %v785
      %v790 = vmul.f32 %v778, %v786
      %v791 = vmul.f32 %v778, %v787
      %v792 = vadd.f32 %v716, %v790
      %v793 = vadd.f32 %v717, %v791
      %794 = vset.pattern.permute.xlu0 20
      %795 = vperm.xlu0 %794, %v332
      %v796 = vpop.permute.xlu0 %795
      %798 = vrot.lane.b32.xlu0 %v755, 30
      %v799 = vpop.permute.xlu0 %798
      %800 = vrot.lane.b32.xlu0 %v758, 30
      %v801 = vpop.permute.xlu0 %800
      %802 = vrot.lane.b32.xlu0 %v761, 30
      %v803 = vpop.permute.xlu0 %802
      %v804 = vsel %vm404, %v799, %v801
      %v805 = vsel %vm404, %v801, %v803
      %v808 = vmul.f32 %v796, %v804
      %v809 = vmul.f32 %v796, %v805
      %v810 = vadd.f32 %v734, %v808
      %v811 = vadd.f32 %v735, %v809
      %812 = vset.pattern.permute.xlu0 21
      %813 = vperm.xlu0 %812, %v332
      %v814 = vpop.permute.xlu0 %813
      %816 = vrot.lane.b32.xlu0 %v755, 2
      %v817 = vpop.permute.xlu0 %816
      %818 = vrot.lane.b32.xlu0 %v758, 2
      %v819 = vpop.permute.xlu0 %818
      %820 = vrot.lane.b32.xlu0 %v761, 2
      %v821 = vpop.permute.xlu0 %820
      %v822 = vsel %vm423, %v817, %v819
      %v823 = vsel %vm423, %v819, %v821
      %v826 = vmul.f32 %v814, %v822
      %v827 = vmul.f32 %v814, %v823
      %v828 = vadd.f32 %v774, %v826
      %v829 = vadd.f32 %v775, %v827
      %830 = vset.pattern.permute.xlu0 22
      %831 = vperm.xlu0 %830, %v332
      %v832 = vpop.permute.xlu0 %831
      %v836 = vmul.f32 %v832, %v758
      %v837 = vmul.f32 %v832, %v761
      %v838 = vadd.f32 %v792, %v836
      %v839 = vadd.f32 %v793, %v837
      %v840 = vld [vmem:[#allocation2 + $0x8] sm:$0xc0]
      %v841 = vld [vmem:[#allocation2 + $0x10] sm:$0xc0]
      %v842 = vld [vmem:[#allocation2 + $0x18] sm:$0xc0]
      %v843 = vld [vmem:[#allocation2 + $0x28] sm:$0x3f]
      %v844 = vld [vmem:[#allocation2 + $0x30] sm:$0x3f]
      %v845 = vld [vmem:[#allocation2 + $0x38] sm:$0x3f]
      %846 = vset.pattern.permute.xlu0 23
      %847 = vperm.xlu0 %846, %v332
      %v848 = vpop.permute.xlu0 %847
      %v856 = vrot.slane %v840, 6
      %v857 = vrot.slane %v843, 6
      %v858 = vsel %vm752, %v856, %v857
      %v859 = vrot.slane %v841, 6
      %v860 = vrot.slane %v844, 6
      %v861 = vsel %vm752, %v859, %v860
      %v862 = vrot.slane %v842, 6
      %v863 = vrot.slane %v845, 6
      %v864 = vsel %vm752, %v862, %v863
      %865 = vrot.lane.b32.xlu0 %v858, 126
      %v866 = vpop.permute.xlu0 %865
      %867 = vrot.lane.b32.xlu0 %v861, 126
      %v868 = vpop.permute.xlu0 %867
      %869 = vrot.lane.b32.xlu0 %v864, 126
      %v870 = vpop.permute.xlu0 %869
      %v871 = vsel %vm473, %v866, %v868
      %v872 = vsel %vm473, %v868, %v870
      %v875 = vmul.f32 %v848, %v871
      %v876 = vmul.f32 %v848, %v872
      %v877 = vadd.f32 %v810, %v875
      %v878 = vadd.f32 %v811, %v876
      %879 = vset.pattern.permute.xlu0 24
      %880 = vperm.xlu0 %879, %v332
      %v881 = vpop.permute.xlu0 %880
      %883 = vrot.lane.b32.xlu0 %v858, 98
      %v884 = vpop.permute.xlu0 %883
      %885 = vrot.lane.b32.xlu0 %v861, 98
      %v886 = vpop.permute.xlu0 %885
      %887 = vrot.lane.b32.xlu0 %v864, 98
      %v888 = vpop.permute.xlu0 %887
      %v889 = vsel %vm492, %v884, %v886
      %v890 = vsel %vm492, %v886, %v888
      %v893 = vmul.f32 %v881, %v889
      %v894 = vmul.f32 %v881, %v890
      %v895 = vadd.f32 %v828, %v893
      %v896 = vadd.f32 %v829, %v894
      %897 = vset.pattern.permute.xlu0 25
      %898 = vperm.xlu0 %897, %v332
      %v899 = vpop.permute.xlu0 %898
      %901 = vrot.lane.b32.xlu0 %v858, 96
      %v902 = vpop.permute.xlu0 %901
      %903 = vrot.lane.b32.xlu0 %v861, 96
      %v904 = vpop.permute.xlu0 %903
      %905 = vrot.lane.b32.xlu0 %v864, 96
      %v906 = vpop.permute.xlu0 %905
      %v907 = vsel %vm511, %v902, %v904
      %v908 = vsel %vm511, %v904, %v906
      %v911 = vmul.f32 %v899, %v907
      %v912 = vmul.f32 %v899, %v908
      %v913 = vadd.f32 %v838, %v911
      %v914 = vadd.f32 %v839, %v912
      %915 = vset.pattern.permute.xlu0 26
      %916 = vperm.xlu0 %915, %v332
      %v917 = vpop.permute.xlu0 %916
      %919 = vrot.lane.b32.xlu0 %v858, 94
      %v920 = vpop.permute.xlu0 %919
      %921 = vrot.lane.b32.xlu0 %v861, 94
      %v922 = vpop.permute.xlu0 %921
      %923 = vrot.lane.b32.xlu0 %v864, 94
      %v924 = vpop.permute.xlu0 %923
      %v925 = vsel %vm530, %v920, %v922
      %v926 = vsel %vm530, %v922, %v924
      %v929 = vmul.f32 %v917, %v925
      %v930 = vmul.f32 %v917, %v926
      %v931 = vadd.f32 %v877, %v929
      %v932 = vadd.f32 %v878, %v930
      %v933 = vld [vmem:[#allocation2 + $0x20] sm:$0xff]
      %v934 = vld [vmem:[#allocation2 + $0x28] sm:$0xff]
      %v935 = vld [vmem:[#allocation2 + $0x30] sm:$0xff]
      %936 = vset.pattern.permute.xlu0 27
      %937 = vperm.xlu0 %936, %v332
      %v938 = vpop.permute.xlu0 %937
      %v940 = vmul.f32 %v938, %v933
      %v941 = vmul.f32 %v938, %v934
      %v942 = vmul.f32 %v938, %v935
      %946 = vrot.lane.b32.xlu0 %v940, 34
      %v947 = vpop.permute.xlu0 %946
      %948 = vrot.lane.b32.xlu0 %v941, 34
      %v949 = vpop.permute.xlu0 %948
      %950 = vrot.lane.b32.xlu0 %v942, 34
      %v951 = vpop.permute.xlu0 %950
      %v952 = vsel %vm366, %v947, %v949
      %v953 = vsel %vm366, %v949, %v951
      %v956 = vadd.f32 %v895, %v952
      %v957 = vadd.f32 %v896, %v953
      %958 = vset.pattern.permute.xlu0 28
      %959 = vperm.xlu0 %958, %v332
      %v960 = vpop.permute.xlu0 %959
      %v962 = vmul.f32 %v960, %v933
      %v963 = vmul.f32 %v960, %v934
      %v964 = vmul.f32 %v960, %v935
      %968 = vrot.lane.b32.xlu0 %v962, 32
      %v969 = vpop.permute.xlu0 %968
      %970 = vrot.lane.b32.xlu0 %v963, 32
      %v971 = vpop.permute.xlu0 %970
      %972 = vrot.lane.b32.xlu0 %v964, 32
      %v973 = vpop.permute.xlu0 %972
      %v974 = vsel %vm385, %v969, %v971
      %v975 = vsel %vm385, %v971, %v973
      %v978 = vadd.f32 %v913, %v974
      %v979 = vadd.f32 %v914, %v975
      %980 = vset.pattern.permute.xlu0 29
      %981 = vperm.xlu0 %980, %v332
      %v982 = vpop.permute.xlu0 %981
      %v984 = vmul.f32 %v982, %v933
      %v985 = vmul.f32 %v982, %v934
      %v986 = vmul.f32 %v982, %v935
      %990 = vrot.lane.b32.xlu0 %v984, 30
      %v991 = vpop.permute.xlu0 %990
      %992 = vrot.lane.b32.xlu0 %v985, 30
      %v993 = vpop.permute.xlu0 %992
      %994 = vrot.lane.b32.xlu0 %v986, 30
      %v995 = vpop.permute.xlu0 %994
      %v996 = vsel %vm404, %v991, %v993
      %v997 = vsel %vm404, %v993, %v995
      %v1000 = vadd.f32 %v931, %v996
      %v1001 = vadd.f32 %v932, %v997
      %1002 = vset.pattern.permute.xlu0 30
      %1003 = vperm.xlu0 %1002, %v332
      %v1004 = vpop.permute.xlu0 %1003
      %v1006 = vmul.f32 %v1004, %v933
      %v1007 = vmul.f32 %v1004, %v934
      %v1008 = vmul.f32 %v1004, %v935
      %1012 = vrot.lane.b32.xlu0 %v1006, 2
      %v1013 = vpop.permute.xlu0 %1012
      %1014 = vrot.lane.b32.xlu0 %v1007, 2
      %v1015 = vpop.permute.xlu0 %1014
      %1016 = vrot.lane.b32.xlu0 %v1008, 2
      %v1017 = vpop.permute.xlu0 %1016
      %v1018 = vsel %vm423, %v1013, %v1015
      %v1019 = vsel %vm423, %v1015, %v1017
      %v1022 = vadd.f32 %v956, %v1018
      %v1023 = vadd.f32 %v957, %v1019
      %1024 = vset.pattern.permute.xlu0 31
      %1025 = vperm.xlu0 %1024, %v332
      %v1026 = vpop.permute.xlu0 %1025
      %v1028 = vmul.f32 %v1026, %v934
      %v1029 = vmul.f32 %v1026, %v935
      %v1030 = vadd.f32 %v978, %v1028
      %v1031 = vadd.f32 %v979, %v1029
      %v1032 = vld [vmem:[#allocation2 + $0x28] sm:$0xff]
      %v1033 = vld [vmem:[#allocation2 + $0x30] sm:$0xff]
      %v1034 = vld [vmem:[#allocation2 + $0x38] sm:$0xff]
      %1035 = vset.pattern.permute.xlu0 32
      %1036 = vperm.xlu0 %1035, %v332
      %v1037 = vpop.permute.xlu0 %1036
      %v1039 = vmul.f32 %v1037, %v1032
      %v1040 = vmul.f32 %v1037, %v1033
      %v1041 = vmul.f32 %v1037, %v1034
      %1045 = vrot.lane.b32.xlu0 %v1039, 126
      %v1046 = vpop.permute.xlu0 %1045
      %1047 = vrot.lane.b32.xlu0 %v1040, 126
      %v1048 = vpop.permute.xlu0 %1047
      %1049 = vrot.lane.b32.xlu0 %v1041, 126
      %v1050 = vpop.permute.xlu0 %1049
      %v1051 = vsel %vm473, %v1046, %v1048
      %v1052 = vsel %vm473, %v1048, %v1050
      %v1055 = vadd.f32 %v1000, %v1051
      %v1056 = vadd.f32 %v1001, %v1052
      %1057 = vset.pattern.permute.xlu0 33
      %1058 = vperm.xlu0 %1057, %v332
      %v1059 = vpop.permute.xlu0 %1058
      %v1061 = vmul.f32 %v1059, %v1032
      %v1062 = vmul.f32 %v1059, %v1033
      %v1063 = vmul.f32 %v1059, %v1034
      %1067 = vrot.lane.b32.xlu0 %v1061, 98
      %v1068 = vpop.permute.xlu0 %1067
      %1069 = vrot.lane.b32.xlu0 %v1062, 98
      %v1070 = vpop.permute.xlu0 %1069
      %1071 = vrot.lane.b32.xlu0 %v1063, 98
      %v1072 = vpop.permute.xlu0 %1071
      %v1073 = vsel %vm492, %v1068, %v1070
      %v1074 = vsel %vm492, %v1070, %v1072
      %v1077 = vadd.f32 %v1022, %v1073
      %v1078 = vadd.f32 %v1023, %v1074
      %1079 = vset.pattern.permute.xlu0 34
      %1080 = vperm.xlu0 %1079, %v332
      %v1081 = vpop.permute.xlu0 %1080
      %v1083 = vmul.f32 %v1081, %v1032
      %v1084 = vmul.f32 %v1081, %v1033
      %v1085 = vmul.f32 %v1081, %v1034
      %1089 = vrot.lane.b32.xlu0 %v1083, 96
      %v1090 = vpop.permute.xlu0 %1089
      %1091 = vrot.lane.b32.xlu0 %v1084, 96
      %v1092 = vpop.permute.xlu0 %1091
      %1093 = vrot.lane.b32.xlu0 %v1085, 96
      %v1094 = vpop.permute.xlu0 %1093
      %v1095 = vsel %vm511, %v1090, %v1092
      %v1096 = vsel %vm511, %v1092, %v1094
      %v1099 = vadd.f32 %v1030, %v1095
      %v1100 = vadd.f32 %v1031, %v1096
      %1101 = vset.pattern.permute.xlu0 35
      %1102 = vperm.xlu0 %1101, %v332
      %v1103 = vpop.permute.xlu0 %1102
      %v1105 = vmul.f32 %v1103, %v1032
      %v1106 = vmul.f32 %v1103, %v1033
      %v1107 = vmul.f32 %v1103, %v1034
      %1111 = vrot.lane.b32.xlu0 %v1105, 94
      %v1112 = vpop.permute.xlu0 %1111
      %1113 = vrot.lane.b32.xlu0 %v1106, 94
      %v1114 = vpop.permute.xlu0 %1113
      %1115 = vrot.lane.b32.xlu0 %v1107, 94
      %v1116 = vpop.permute.xlu0 %1115
      %v1117 = vsel %vm530, %v1112, %v1114
      %v1118 = vsel %vm530, %v1114, %v1116
      %v1121 = vadd.f32 %v1055, %v1117
      %v1122 = vadd.f32 %v1056, %v1118
      %v1123 = vld [vmem:[#allocation2 + $0x20] sm:$0xfc]
      %v1124 = vld [vmem:[#allocation2 + $0x28] sm:$0xfc]
      %v1125 = vld [vmem:[#allocation2 + $0x30] sm:$0xfc]
      %v1126 = vld [vmem:[#allocation2 + $0x40] sm:$0x3]
      %v1127 = vld [vmem:[#allocation2 + $0x48] sm:$0x3]
      %v1128 = vld [vmem:[#allocation2 + $0x50] sm:$0x3]
      %1129 = vset.pattern.permute.xlu0 36
      %1130 = vperm.xlu0 %1129, %v332
      %v1131 = vpop.permute.xlu0 %1130
      %v1139 = vrot.slane %v1123, 2
      %v1140 = vrot.slane %v1126, 2
      %v1141 = vsel %vm350, %v1139, %v1140
      %v1142 = vrot.slane %v1124, 2
      %v1143 = vrot.slane %v1127, 2
      %v1144 = vsel %vm350, %v1142, %v1143
      %v1145 = vrot.slane %v1125, 2
      %v1146 = vrot.slane %v1128, 2
      %v1147 = vsel %vm350, %v1145, %v1146
      %1148 = vrot.lane.b32.xlu0 %v1141, 34
      %v1149 = vpop.permute.xlu0 %1148
      %1150 = vrot.lane.b32.xlu0 %v1144, 34
      %v1151 = vpop.permute.xlu0 %1150
      %1152 = vrot.lane.b32.xlu0 %v1147, 34
      %v1153 = vpop.permute.xlu0 %1152
      %v1154 = vsel %vm366, %v1149, %v1151
      %v1155 = vsel %vm366, %v1151, %v1153
      %v1158 = vmul.f32 %v1131, %v1154
      %v1159 = vmul.f32 %v1131, %v1155
      %v1160 = vadd.f32 %v1077, %v1158
      %v1161 = vadd.f32 %v1078, %v1159
      %1162 = vset.pattern.permute.xlu0 37
      %1163 = vperm.xlu0 %1162, %v332
      %v1164 = vpop.permute.xlu0 %1163
      %1166 = vrot.lane.b32.xlu0 %v1141, 32
      %v1167 = vpop.permute.xlu0 %1166
      %1168 = vrot.lane.b32.xlu0 %v1144, 32
      %v1169 = vpop.permute.xlu0 %1168
      %1170 = vrot.lane.b32.xlu0 %v1147, 32
      %v1171 = vpop.permute.xlu0 %1170
      %v1172 = vsel %vm385, %v1167, %v1169
      %v1173 = vsel %vm385, %v1169, %v1171
      %v1176 = vmul.f32 %v1164, %v1172
      %v1177 = vmul.f32 %v1164, %v1173
      %v1178 = vadd.f32 %v1099, %v1176
      %v1179 = vadd.f32 %v1100, %v1177
      %1180 = vset.pattern.permute.xlu0 38
      %1181 = vperm.xlu0 %1180, %v332
      %v1182 = vpop.permute.xlu0 %1181
      %1184 = vrot.lane.b32.xlu0 %v1141, 30
      %v1185 = vpop.permute.xlu0 %1184
      %1186 = vrot.lane.b32.xlu0 %v1144, 30
      %v1187 = vpop.permute.xlu0 %1186
      %1188 = vrot.lane.b32.xlu0 %v1147, 30
      %v1189 = vpop.permute.xlu0 %1188
      %v1190 = vsel %vm404, %v1185, %v1187
      %v1191 = vsel %vm404, %v1187, %v1189
      %v1194 = vmul.f32 %v1182, %v1190
      %v1195 = vmul.f32 %v1182, %v1191
      %v1196 = vadd.f32 %v1121, %v1194
      %v1197 = vadd.f32 %v1122, %v1195
      %1198 = vset.pattern.permute.xlu0 39
      %1199 = vperm.xlu0 %1198, %v332
      %v1200 = vpop.permute.xlu0 %1199
      %1202 = vrot.lane.b32.xlu0 %v1141, 2
      %v1203 = vpop.permute.xlu0 %1202
      %1204 = vrot.lane.b32.xlu0 %v1144, 2
      %v1205 = vpop.permute.xlu0 %1204
      %1206 = vrot.lane.b32.xlu0 %v1147, 2
      %v1207 = vpop.permute.xlu0 %1206
      %v1208 = vsel %vm423, %v1203, %v1205
      %v1209 = vsel %vm423, %v1205, %v1207
      %v1212 = vmul.f32 %v1200, %v1208
      %v1213 = vmul.f32 %v1200, %v1209
      %v1214 = vadd.f32 %v1160, %v1212
      %v1215 = vadd.f32 %v1161, %v1213
      %1216 = vset.pattern.permute.xlu0 40
      %1217 = vperm.xlu0 %1216, %v332
      %v1218 = vpop.permute.xlu0 %1217
      %v1222 = vmul.f32 %v1218, %v1144
      %v1223 = vmul.f32 %v1218, %v1147
      %v1224 = vadd.f32 %v1178, %v1222
      %v1225 = vadd.f32 %v1179, %v1223
      %v1226 = vld [vmem:[#allocation2 + $0x28] sm:$0xfc]
      %v1227 = vld [vmem:[#allocation2 + $0x30] sm:$0xfc]
      %v1228 = vld [vmem:[#allocation2 + $0x38] sm:$0xfc]
      %v1229 = vld [vmem:[#allocation2 + $0x48] sm:$0x3]
      %v1230 = vld [vmem:[#allocation2 + $0x50] sm:$0x3]
      %v1231 = vld [vmem:[#allocation2 + $0x58] sm:$0x3]
      %1232 = vset.pattern.permute.xlu0 41
      %1233 = vperm.xlu0 %1232, %v332
      %v1234 = vpop.permute.xlu0 %1233
      %v1242 = vrot.slane %v1226, 2
      %v1243 = vrot.slane %v1229, 2
      %v1244 = vsel %vm350, %v1242, %v1243
      %v1245 = vrot.slane %v1227, 2
      %v1246 = vrot.slane %v1230, 2
      %v1247 = vsel %vm350, %v1245, %v1246
      %v1248 = vrot.slane %v1228, 2
      %v1249 = vrot.slane %v1231, 2
      %v1250 = vsel %vm350, %v1248, %v1249
      %1251 = vrot.lane.b32.xlu0 %v1244, 126
      %v1252 = vpop.permute.xlu0 %1251
      %1253 = vrot.lane.b32.xlu0 %v1247, 126
      %v1254 = vpop.permute.xlu0 %1253
      %1255 = vrot.lane.b32.xlu0 %v1250, 126
      %v1256 = vpop.permute.xlu0 %1255
      %v1257 = vsel %vm473, %v1252, %v1254
      %v1258 = vsel %vm473, %v1254, %v1256
      %v1261 = vmul.f32 %v1234, %v1257
      %v1262 = vmul.f32 %v1234, %v1258
      %v1263 = vadd.f32 %v1196, %v1261
      %v1264 = vadd.f32 %v1197, %v1262
      %1265 = vset.pattern.permute.xlu0 42
      %1266 = vperm.xlu0 %1265, %v332
      %v1267 = vpop.permute.xlu0 %1266
      %1269 = vrot.lane.b32.xlu0 %v1244, 98
      %v1270 = vpop.permute.xlu0 %1269
      %1271 = vrot.lane.b32.xlu0 %v1247, 98
      %v1272 = vpop.permute.xlu0 %1271
      %1273 = vrot.lane.b32.xlu0 %v1250, 98
      %v1274 = vpop.permute.xlu0 %1273
      %v1275 = vsel %vm492, %v1270, %v1272
      %v1276 = vsel %vm492, %v1272, %v1274
      %v1279 = vmul.f32 %v1267, %v1275
      %v1280 = vmul.f32 %v1267, %v1276
      %v1281 = vadd.f32 %v1214, %v1279
      %v1282 = vadd.f32 %v1215, %v1280
      %1283 = vset.pattern.permute.xlu0 43
      %1284 = vperm.xlu0 %1283, %v332
      %v1285 = vpop.permute.xlu0 %1284
      %1287 = vrot.lane.b32.xlu0 %v1244, 96
      %v1288 = vpop.permute.xlu0 %1287
      %1289 = vrot.lane.b32.xlu0 %v1247, 96
      %v1290 = vpop.permute.xlu0 %1289
      %1291 = vrot.lane.b32.xlu0 %v1250, 96
      %v1292 = vpop.permute.xlu0 %1291
      %v1293 = vsel %vm511, %v1288, %v1290
      %v1294 = vsel %vm511, %v1290, %v1292
      %v1297 = vmul.f32 %v1285, %v1293
      %v1298 = vmul.f32 %v1285, %v1294
      %v1299 = vadd.f32 %v1224, %v1297
      %v1300 = vadd.f32 %v1225, %v1298
      %1301 = vset.pattern.permute.xlu0 44
      %1302 = vperm.xlu0 %1301, %v332
      %v1303 = vpop.permute.xlu0 %1302
      %1305 = vrot.lane.b32.xlu0 %v1244, 94
      %v1306 = vpop.permute.xlu0 %1305
      %1307 = vrot.lane.b32.xlu0 %v1247, 94
      %v1308 = vpop.permute.xlu0 %1307
      %1309 = vrot.lane.b32.xlu0 %v1250, 94
      %v1310 = vpop.permute.xlu0 %1309
      %v1311 = vsel %vm530, %v1306, %v1308
      %v1312 = vsel %vm530, %v1308, %v1310
      %v1315 = vmul.f32 %v1303, %v1311
      %v1316 = vmul.f32 %v1303, %v1312
      %v1317 = vadd.f32 %v1263, %v1315
      %v1318 = vadd.f32 %v1264, %v1316
      %v1319 = vld [vmem:[#allocation2 + $0x20] sm:$0xf0]
      %v1320 = vld [vmem:[#allocation2 + $0x28] sm:$0xf0]
      %v1321 = vld [vmem:[#allocation2 + $0x30] sm:$0xf0]
      %v1322 = vld [vmem:[#allocation2 + $0x40] sm:$0xf]
      %v1323 = vld [vmem:[#allocation2 + $0x48] sm:$0xf]
      %v1324 = vld [vmem:[#allocation2 + $0x50] sm:$0xf]
      %1325 = vset.pattern.permute.xlu0 45
      %1326 = vperm.xlu0 %1325, %v332
      %v1327 = vpop.permute.xlu0 %1326
      %v1335 = vrot.slane %v1319, 4
      %v1336 = vrot.slane %v1322, 4
      %v1337 = vsel %vm555, %v1335, %v1336
      %v1338 = vrot.slane %v1320, 4
      %v1339 = vrot.slane %v1323, 4
      %v1340 = vsel %vm555, %v1338, %v1339
      %v1341 = vrot.slane %v1321, 4
      %v1342 = vrot.slane %v1324, 4
      %v1343 = vsel %vm555, %v1341, %v1342
      %1344 = vrot.lane.b32.xlu0 %v1337, 34
      %v1345 = vpop.permute.xlu0 %1344
      %1346 = vrot.lane.b32.xlu0 %v1340, 34
      %v1347 = vpop.permute.xlu0 %1346
      %1348 = vrot.lane.b32.xlu0 %v1343, 34
      %v1349 = vpop.permute.xlu0 %1348
      %v1350 = vsel %vm366, %v1345, %v1347
      %v1351 = vsel %vm366, %v1347, %v1349
      %v1354 = vmul.f32 %v1327, %v1350
      %v1355 = vmul.f32 %v1327, %v1351
      %v1356 = vadd.f32 %v1281, %v1354
      %v1357 = vadd.f32 %v1282, %v1355
      %1358 = vset.pattern.permute.xlu0 46
      %1359 = vperm.xlu0 %1358, %v332
      %v1360 = vpop.permute.xlu0 %1359
      %1362 = vrot.lane.b32.xlu0 %v1337, 32
      %v1363 = vpop.permute.xlu0 %1362
      %1364 = vrot.lane.b32.xlu0 %v1340, 32
      %v1365 = vpop.permute.xlu0 %1364
      %1366 = vrot.lane.b32.xlu0 %v1343, 32
      %v1367 = vpop.permute.xlu0 %1366
      %v1368 = vsel %vm385, %v1363, %v1365
      %v1369 = vsel %vm385, %v1365, %v1367
      %v1372 = vmul.f32 %v1360, %v1368
      %v1373 = vmul.f32 %v1360, %v1369
      %v1374 = vadd.f32 %v1299, %v1372
      %v1375 = vadd.f32 %v1300, %v1373
      %1376 = vset.pattern.permute.xlu0 47
      %1377 = vperm.xlu0 %1376, %v332
      %v1378 = vpop.permute.xlu0 %1377
      %1380 = vrot.lane.b32.xlu0 %v1337, 30
      %v1381 = vpop.permute.xlu0 %1380
      %1382 = vrot.lane.b32.xlu0 %v1340, 30
      %v1383 = vpop.permute.xlu0 %1382
      %1384 = vrot.lane.b32.xlu0 %v1343, 30
      %v1385 = vpop.permute.xlu0 %1384
      %v1386 = vsel %vm404, %v1381, %v1383
      %v1387 = vsel %vm404, %v1383, %v1385
      %v1390 = vmul.f32 %v1378, %v1386
      %v1391 = vmul.f32 %v1378, %v1387
      %v1392 = vadd.f32 %v1317, %v1390
      %v1393 = vadd.f32 %v1318, %v1391
      %1394 = vset.pattern.permute.xlu0 48
      %1395 = vperm.xlu0 %1394, %v332
      %v1396 = vpop.permute.xlu0 %1395
      %1398 = vrot.lane.b32.xlu0 %v1337, 2
      %v1399 = vpop.permute.xlu0 %1398
      %1400 = vrot.lane.b32.xlu0 %v1340, 2
      %v1401 = vpop.permute.xlu0 %1400
      %1402 = vrot.lane.b32.xlu0 %v1343, 2
      %v1403 = vpop.permute.xlu0 %1402
      %v1404 = vsel %vm423, %v1399, %v1401
      %v1405 = vsel %vm423, %v1401, %v1403
      %v1408 = vmul.f32 %v1396, %v1404
      %v1409 = vmul.f32 %v1396, %v1405
      %v1410 = vadd.f32 %v1356, %v1408
      %v1411 = vadd.f32 %v1357, %v1409
      %1412 = vset.pattern.permute.xlu0 49
      %1413 = vperm.xlu0 %1412, %v332
      %v1414 = vpop.permute.xlu0 %1413
      %v1418 = vmul.f32 %v1414, %v1340
      %v1419 = vmul.f32 %v1414, %v1343
      %v1420 = vadd.f32 %v1374, %v1418
      %v1421 = vadd.f32 %v1375, %v1419
      %v1422 = vld [vmem:[#allocation2 + $0x28] sm:$0xf0]
      %v1423 = vld [vmem:[#allocation2 + $0x30] sm:$0xf0]
      %v1424 = vld [vmem:[#allocation2 + $0x38] sm:$0xf0]
      %v1425 = vld [vmem:[#allocation2 + $0x48] sm:$0xf]
      %v1426 = vld [vmem:[#allocation2 + $0x50] sm:$0xf]
      %v1427 = vld [vmem:[#allocation2 + $0x58] sm:$0xf]
      %1428 = vset.pattern.permute.xlu0 50
      %1429 = vperm.xlu0 %1428, %v332
      %v1430 = vpop.permute.xlu0 %1429
      %v1438 = vrot.slane %v1422, 4
      %v1439 = vrot.slane %v1425, 4
      %v1440 = vsel %vm555, %v1438, %v1439
      %v1441 = vrot.slane %v1423, 4
      %v1442 = vrot.slane %v1426, 4
      %v1443 = vsel %vm555, %v1441, %v1442
      %v1444 = vrot.slane %v1424, 4
      %v1445 = vrot.slane %v1427, 4
      %v1446 = vsel %vm555, %v1444, %v1445
      %1447 = vrot.lane.b32.xlu0 %v1440, 126
      %v1448 = vpop.permute.xlu0 %1447
      %1449 = vrot.lane.b32.xlu0 %v1443, 126
      %v1450 = vpop.permute.xlu0 %1449
      %1451 = vrot.lane.b32.xlu0 %v1446, 126
      %v1452 = vpop.permute.xlu0 %1451
      %v1453 = vsel %vm473, %v1448, %v1450
      %v1454 = vsel %vm473, %v1450, %v1452
      %v1457 = vmul.f32 %v1430, %v1453
      %v1458 = vmul.f32 %v1430, %v1454
      %v1459 = vadd.f32 %v1392, %v1457
      %v1460 = vadd.f32 %v1393, %v1458
      %1461 = vset.pattern.permute.xlu0 51
      %1462 = vperm.xlu0 %1461, %v332
      %v1463 = vpop.permute.xlu0 %1462
      %1465 = vrot.lane.b32.xlu0 %v1440, 98
      %v1466 = vpop.permute.xlu0 %1465
      %1467 = vrot.lane.b32.xlu0 %v1443, 98
      %v1468 = vpop.permute.xlu0 %1467
      %1469 = vrot.lane.b32.xlu0 %v1446, 98
      %v1470 = vpop.permute.xlu0 %1469
      %v1471 = vsel %vm492, %v1466, %v1468
      %v1472 = vsel %vm492, %v1468, %v1470
      %v1475 = vmul.f32 %v1463, %v1471
      %v1476 = vmul.f32 %v1463, %v1472
      %v1477 = vadd.f32 %v1410, %v1475
      %v1478 = vadd.f32 %v1411, %v1476
      %1479 = vset.pattern.permute.xlu0 52
      %1480 = vperm.xlu0 %1479, %v332
      %v1481 = vpop.permute.xlu0 %1480
      %1483 = vrot.lane.b32.xlu0 %v1440, 96
      %v1484 = vpop.permute.xlu0 %1483
      %1485 = vrot.lane.b32.xlu0 %v1443, 96
      %v1486 = vpop.permute.xlu0 %1485
      %1487 = vrot.lane.b32.xlu0 %v1446, 96
      %v1488 = vpop.permute.xlu0 %1487
      %v1489 = vsel %vm511, %v1484, %v1486
      %v1490 = vsel %vm511, %v1486, %v1488
      %v1493 = vmul.f32 %v1481, %v1489
      %v1494 = vmul.f32 %v1481, %v1490
      %v1495 = vadd.f32 %v1420, %v1493
      %v1496 = vadd.f32 %v1421, %v1494
      %1497 = vset.pattern.permute.xlu0 53
      %1498 = vperm.xlu0 %1497, %v332
      %v1499 = vpop.permute.xlu0 %1498
      %1501 = vrot.lane.b32.xlu0 %v1440, 94
      %v1502 = vpop.permute.xlu0 %1501
      %1503 = vrot.lane.b32.xlu0 %v1443, 94
      %v1504 = vpop.permute.xlu0 %1503
      %1505 = vrot.lane.b32.xlu0 %v1446, 94
      %v1506 = vpop.permute.xlu0 %1505
      %v1507 = vsel %vm530, %v1502, %v1504
      %v1508 = vsel %vm530, %v1504, %v1506
      %v1511 = vmul.f32 %v1499, %v1507
      %v1512 = vmul.f32 %v1499, %v1508
      %v1513 = vadd.f32 %v1459, %v1511
      %v1514 = vadd.f32 %v1460, %v1512
      %v1515 = vld [vmem:[#allocation2 + $0x20] sm:$0xc0]
      %v1516 = vld [vmem:[#allocation2 + $0x28] sm:$0xc0]
      %v1517 = vld [vmem:[#allocation2 + $0x30] sm:$0xc0]
      %v1518 = vld [vmem:[#allocation2 + $0x40] sm:$0x3f]
      %v1519 = vld [vmem:[#allocation2 + $0x48] sm:$0x3f]
      %v1520 = vld [vmem:[#allocation2 + $0x50] sm:$0x3f]
      %1521 = vset.pattern.permute.xlu0 54
      %1522 = vperm.xlu0 %1521, %v332
      %v1523 = vpop.permute.xlu0 %1522
      %v1531 = vrot.slane %v1515, 6
      %v1532 = vrot.slane %v1518, 6
      %v1533 = vsel %vm752, %v1531, %v1532
      %v1534 = vrot.slane %v1516, 6
      %v1535 = vrot.slane %v1519, 6
      %v1536 = vsel %vm752, %v1534, %v1535
      %v1537 = vrot.slane %v1517, 6
      %v1538 = vrot.slane %v1520, 6
      %v1539 = vsel %vm752, %v1537, %v1538
      %1540 = vrot.lane.b32.xlu0 %v1533, 34
      %v1541 = vpop.permute.xlu0 %1540
      %1542 = vrot.lane.b32.xlu0 %v1536, 34
      %v1543 = vpop.permute.xlu0 %1542
      %1544 = vrot.lane.b32.xlu0 %v1539, 34
      %v1545 = vpop.permute.xlu0 %1544
      %v1546 = vsel %vm366, %v1541, %v1543
      %v1547 = vsel %vm366, %v1543, %v1545
      %v1550 = vmul.f32 %v1523, %v1546
      %v1551 = vmul.f32 %v1523, %v1547
      %v1552 = vadd.f32 %v1477, %v1550
      %v1553 = vadd.f32 %v1478, %v1551
      %1554 = vset.pattern.permute.xlu0 55
      %1555 = vperm.xlu0 %1554, %v332
      %v1556 = vpop.permute.xlu0 %1555
      %1558 = vrot.lane.b32.xlu0 %v1533, 32
      %v1559 = vpop.permute.xlu0 %1558
      %1560 = vrot.lane.b32.xlu0 %v1536, 32
      %v1561 = vpop.permute.xlu0 %1560
      %1562 = vrot.lane.b32.xlu0 %v1539, 32
      %v1563 = vpop.permute.xlu0 %1562
      %v1564 = vsel %vm385, %v1559, %v1561
      %v1565 = vsel %vm385, %v1561, %v1563
      %v1568 = vmul.f32 %v1556, %v1564
      %v1569 = vmul.f32 %v1556, %v1565
      %v1570 = vadd.f32 %v1495, %v1568
      %v1571 = vadd.f32 %v1496, %v1569
      %1572 = vset.pattern.permute.xlu0 56
      %1573 = vperm.xlu0 %1572, %v332
      %v1574 = vpop.permute.xlu0 %1573
      %1576 = vrot.lane.b32.xlu0 %v1533, 30
      %v1577 = vpop.permute.xlu0 %1576
      %1578 = vrot.lane.b32.xlu0 %v1536, 30
      %v1579 = vpop.permute.xlu0 %1578
      %1580 = vrot.lane.b32.xlu0 %v1539, 30
      %v1581 = vpop.permute.xlu0 %1580
      %v1582 = vsel %vm404, %v1577, %v1579
      %v1583 = vsel %vm404, %v1579, %v1581
      %v1586 = vmul.f32 %v1574, %v1582
      %v1587 = vmul.f32 %v1574, %v1583
      %v1588 = vadd.f32 %v1513, %v1586
      %v1589 = vadd.f32 %v1514, %v1587
      %1590 = vset.pattern.permute.xlu0 57
      %1591 = vperm.xlu0 %1590, %v332
      %v1592 = vpop.permute.xlu0 %1591
      %1594 = vrot.lane.b32.xlu0 %v1533, 2
      %v1595 = vpop.permute.xlu0 %1594
      %1596 = vrot.lane.b32.xlu0 %v1536, 2
      %v1597 = vpop.permute.xlu0 %1596
      %1598 = vrot.lane.b32.xlu0 %v1539, 2
      %v1599 = vpop.permute.xlu0 %1598
      %v1600 = vsel %vm423, %v1595, %v1597
      %v1601 = vsel %vm423, %v1597, %v1599
      %v1604 = vmul.f32 %v1592, %v1600
      %v1605 = vmul.f32 %v1592, %v1601
      %v1606 = vadd.f32 %v1552, %v1604
      %v1607 = vadd.f32 %v1553, %v1605
      %1608 = vset.pattern.permute.xlu0 58
      %1609 = vperm.xlu0 %1608, %v332
      %v1610 = vpop.permute.xlu0 %1609
      %v1614 = vmul.f32 %v1610, %v1536
      %v1615 = vmul.f32 %v1610, %v1539
      %v1616 = vadd.f32 %v1570, %v1614
      %v1617 = vadd.f32 %v1571, %v1615
      %v1618 = vld [vmem:[#allocation2 + $0x28] sm:$0xc0]
      %v1619 = vld [vmem:[#allocation2 + $0x30] sm:$0xc0]
      %v1620 = vld [vmem:[#allocation2 + $0x38] sm:$0xc0]
      %v1621 = vld [vmem:[#allocation2 + $0x48] sm:$0x3f]
      %v1622 = vld [vmem:[#allocation2 + $0x50] sm:$0x3f]
      %v1623 = vld [vmem:[#allocation2 + $0x58] sm:$0x3f]
      %1624 = vset.pattern.permute.xlu0 59
      %1625 = vperm.xlu0 %1624, %v332
      %v1626 = vpop.permute.xlu0 %1625
      %v1634 = vrot.slane %v1618, 6
      %v1635 = vrot.slane %v1621, 6
      %v1636 = vsel %vm752, %v1634, %v1635
      %v1637 = vrot.slane %v1619, 6
      %v1638 = vrot.slane %v1622, 6
      %v1639 = vsel %vm752, %v1637, %v1638
      %v1640 = vrot.slane %v1620, 6
      %v1641 = vrot.slane %v1623, 6
      %v1642 = vsel %vm752, %v1640, %v1641
      %1643 = vrot.lane.b32.xlu0 %v1636, 126
      %v1644 = vpop.permute.xlu0 %1643
      %1645 = vrot.lane.b32.xlu0 %v1639, 126
      %v1646 = vpop.permute.xlu0 %1645
      %1647 = vrot.lane.b32.xlu0 %v1642, 126
      %v1648 = vpop.permute.xlu0 %1647
      %v1649 = vsel %vm473, %v1644, %v1646
      %v1650 = vsel %vm473, %v1646, %v1648
      %v1653 = vmul.f32 %v1626, %v1649
      %v1654 = vmul.f32 %v1626, %v1650
      %v1655 = vadd.f32 %v1588, %v1653
      %v1656 = vadd.f32 %v1589, %v1654
      %1657 = vset.pattern.permute.xlu0 60
      %1658 = vperm.xlu0 %1657, %v332
      %v1659 = vpop.permute.xlu0 %1658
      %1661 = vrot.lane.b32.xlu0 %v1636, 98
      %v1662 = vpop.permute.xlu0 %1661
      %1663 = vrot.lane.b32.xlu0 %v1639, 98
      %v1664 = vpop.permute.xlu0 %1663
      %1665 = vrot.lane.b32.xlu0 %v1642, 98
      %v1666 = vpop.permute.xlu0 %1665
      %v1667 = vsel %vm492, %v1662, %v1664
      %v1668 = vsel %vm492, %v1664, %v1666
      %v1671 = vmul.f32 %v1659, %v1667
      %v1672 = vmul.f32 %v1659, %v1668
      %v1673 = vadd.f32 %v1606, %v1671
      %v1674 = vadd.f32 %v1607, %v1672
      %1675 = vset.pattern.permute.xlu0 61
      %1676 = vperm.xlu0 %1675, %v332
      %v1677 = vpop.permute.xlu0 %1676
      %1679 = vrot.lane.b32.xlu0 %v1636, 96
      %v1680 = vpop.permute.xlu0 %1679
      %1681 = vrot.lane.b32.xlu0 %v1639, 96
      %v1682 = vpop.permute.xlu0 %1681
      %1683 = vrot.lane.b32.xlu0 %v1642, 96
      %v1684 = vpop.permute.xlu0 %1683
      %v1685 = vsel %vm511, %v1680, %v1682
      %v1686 = vsel %vm511, %v1682, %v1684
      %v1689 = vmul.f32 %v1677, %v1685
      %v1690 = vmul.f32 %v1677, %v1686
      %v1691 = vadd.f32 %v1616, %v1689
      %v1692 = vadd.f32 %v1617, %v1690
      %1693 = vset.pattern.permute.xlu0 62
      %1694 = vperm.xlu0 %1693, %v332
      %v1695 = vpop.permute.xlu0 %1694
      %1697 = vrot.lane.b32.xlu0 %v1636, 94
      %v1698 = vpop.permute.xlu0 %1697
      %1699 = vrot.lane.b32.xlu0 %v1639, 94
      %v1700 = vpop.permute.xlu0 %1699
      %1701 = vrot.lane.b32.xlu0 %v1642, 94
      %v1702 = vpop.permute.xlu0 %1701
      %v1703 = vsel %vm530, %v1698, %v1700
      %v1704 = vsel %vm530, %v1700, %v1702
      %v1707 = vmul.f32 %v1695, %v1703
      %v1708 = vmul.f32 %v1695, %v1704
      %v1709 = vadd.f32 %v1655, %v1707
      %v1710 = vadd.f32 %v1656, %v1708
      %v1711 = vld [vmem:[%s3] ss:$4 sm:$0x3]
      %v1713 = vperm.slane %v1711, 0
      %v1714 = vperm.slane %v1711, 1
      %v1717 = vmul.f32 %v1673, %v1713
      %v1718 = vmul.f32 %v1674, %v1714
      %v1719 = vadd.f32 %v1717, %v1691
      %v1720 = vadd.f32 %v1718, %v1692
      %s1721 = scalar_lea.vmem %s3, 2
      %v1722 = vld [vmem:[%s1721] ss:$4 sm:$0x3]
      %v1724 = vperm.slane %v1722, 0
      %v1725 = vperm.slane %v1722, 1
      %v1728 = vmul.f32 %v1709, %v1724
      %v1729 = vmul.f32 %v1710, %v1725
      %v1730 = vadd.f32 %v1719, %v1728
      %v1731 = vadd.f32 %v1720, %v1729
      %v1732 = vld [vmem:[%s219] sm:$0xff]
      %v1733 = vld [vmem:[%s219 + $0x8] sm:$0xff]
      %v1734 = vadd.f32 %v1730, %v1732
      %v1735 = vadd.f32 %v1731, %v1733
      %1736 = vst [vmem:[%s224] sm:$0xff] %v1734
      %1737 = vst [vmem:[%s224 + $0x8] sm:$0xff] %v1735
      %p1738 = scmp.lt.s32.totalorder %s16, 1
      %s1739 = scalar_select %p1738, %s16, 1
      %s1740 = smul.addr %s1739, 2
      %s1741 = smul.addr %s1740, 8
      %s1742 = scalar_lea.vmem %s5, %s1741
      // Predicated region
      $region41: #{binary_dil_group_conv.1} parent=39 // pred_check
        %p1743 = pneg %p144
      $region42: #{binary_dil_group_conv.1} parent=39 // pred_check_branch
        %1745 = sbr.rel (%p1743) target = $region44
      $region43: #{binary_dil_group_conv.1} parent=39 // pred_region
        _
      $region44: #{binary_dil_group_conv.1} parent=39 // pred_fallthru
        _
    $region40: #{binary_dil_group_conv.1} parent=5 // pred_fallthru
      _
    %p1746 = scmp.le.s32.totalorder 2, %s11
    // Predicated region
    $region45: #{binary_dil_group_conv.1} parent=5 // pred_check
      %p1747 = pneg %p1746
    $region46: #{binary_dil_group_conv.1} parent=5 // pred_check_branch
      %1749 = sbr.rel (%p1747) target = $region48
    $region47: #{binary_dil_group_conv.1} parent=5 // pred_region
      %s1750 = ssub.s32 %s11, 2
      // Predicated region
      $region49: #{binary_dil_group_conv.1} parent=47 // pred_check
        %p1751 = pneg %p150
      $region50: #{binary_dil_group_conv.1} parent=47 // pred_check_branch
        %1753 = sbr.rel (%p1751) target = $region52
      $region51: #{binary_dil_group_conv.1} parent=47 // pred_region
        %p1754 = scmp.lt.s32.totalorder %s17, 1
        %s1755 = scalar_select %p1754, %s17, 1
        %s1756 = smul.addr %s1755, 2
        %s1757 = smul.addr %s1756, 8
        %s1758 = scalar_lea.vmem %s5, %s1757
      $region52: #{binary_dil_group_conv.1} parent=47 // pred_fallthru
        _
    $region48: #{binary_dil_group_conv.1} parent=5 // pred_fallthru
      _
  $region6: #{binary_dil_group_conv.1} parent=0 // loop_footer
    %s15 = sadd.s32 1, %s11
  $region7: #{binary_dil_group_conv.1} parent=0 // loop_footer_branch
    %10 = sbr.rel target = $region3
  $region8: #{binary_dil_group_conv.1} parent=0 // loop_exit
    _

</llo_original>
